<compile_context>
chip_gen: v7x
topology: tpu7x:2x2x1
jax: 0.10.0
libtpu: 0.0.40
codegen_flags: <defaults>
</compile_context>

<pallas_src>
import numpy as np
import jax
import jax.numpy as jnp
from jax import lax
from jax.experimental import pallas as pl
from jax.experimental.pallas import tpu as pltpu

_EPS = 1e-9             # floor on |tanh| so the leave-one-out division stays finite
_ONE_MINUS_CLIP = 1e-6  # denominator floor factor == clipping the LOO product at 1-1e-6


def _spa_step_kernel(llr_ref, h_ref, out_ref, ext_ref, colsum_ref):
    """One sum-product iteration for one batch tile.

    Grid = (batch_tiles, num_iters); this body runs once per (b, t) point.
      llr_ref:    (TB, Np)         f32  channel LLRs (lane padded)
      h_ref:      (NC, MC, Np)     f32  parity-check mask, chunked over checks
      out_ref:    (1, TB, Np)      f32  soft output of iteration t, batch tile b
      ext_ref:    (NC, TB, MC, Np) f32  persistent extrinsic messages (VMEM scratch)
      colsum_ref: (TB, Np)         f32  persistent per-variable sum of extrinsics
    """
    t_idx = pl.program_id(1)

    @pl.when(t_idx == 0)
    def _():
        ext_ref[...] = jnp.zeros_like(ext_ref)
        colsum_ref[...] = jnp.zeros_like(colsum_ref)

    TB, Np = llr_ref.shape
    NC, MC, _ = h_ref.shape
    n_rot = Np.bit_length() - 1          # log2(Np); wrapper guarantees power of two

    llr = llr_ref[...]                   # (TB, Np)
    llr_b = llr[:, None, :]              # (TB, 1, Np)
    col_b = colsum_ref[...][:, None, :]  # (TB, 1, Np): sum_m ext[m] from previous iter

    def chunk_body(c, acc):
        h = h_ref[c]                     # (MC, Np)
        e = ext_ref[c]                   # (TB, MC, Np)

        # --- variable_node_process + scattered llr (leave-one-out column sums) ---
        # No "* H" on the llr term: off-edge entries are overwritten by the
        # where(mask, ., 1) below and the final "* h", so that multiply is redundant.
        msg = (col_b - e) + llr_b                          # (TB, MC, Np)

        # --- check_node_process: 2*atanh(leave-one-out signed prod of tanh(msg/2)) ---
        t = jnp.tanh(0.5 * msg)
        t = jnp.where(h[None, :, :] > 0.0, t, 1.0)         # non-edges & lane pad -> 1
        s = jnp.where(t < 0.0, -1.0, 1.0)
        t_abs = jnp.maximum(jnp.abs(t), _EPS)

        # Full-row signed product via lane rotate-and-multiply (XLU + VPU); replaces
        # the full-size log + lane-sum + exp EUP path and the sign-parity lane sum.
        # After log2(Np) steps every lane holds the product of all Np lanes.
        p2 = (s * t_abs).reshape(TB * MC, Np)
        for k in range(n_rot):
            p2 = p2 * pltpu.roll(p2, 1 << k, axis=1)
        p = p2.reshape(TB, MC, Np)
        row_sign = jnp.where(p < 0.0, -1.0, 1.0)
        row_prod = jnp.abs(p)

        # 2*atanh(row_prod / t_abs) = log((t_abs + row_prod) / (t_abs - row_prod));
        # flooring the denominator at t_abs*1e-6 == clipping the LOO product at
        # 1 - 1e-6.  The floor is load-bearing: row_prod can round above t_abs.
        num = t_abs + row_prod
        den = jnp.maximum(t_abs - row_prod, t_abs * _ONE_MINUS_CLIP)
        inv = pl.reciprocal(den, approx=True)              # EUP slot, nearly free
        inv = inv * (2.0 - den * inv)                      # one Newton step (VPU)
        ext_new = (row_sign * s) * jnp.log(num * inv) * h[None, :, :]

        ext_ref[c] = ext_new                               # write chunk immediately
        return acc + jnp.sum(ext_new, axis=1)              # gather accumulation

    # Chunked over checks with an unrolled fori_loop to bound live ranges
    # (one (TB, 8, Np) working set at a time instead of ~10 full-size temporaries).
    acc = lax.fori_loop(0, NC, chunk_body, jnp.zeros_like(llr), unroll=True)

    colsum_ref[...] = acc      # == sum_m ext_new[m]; feeds next iteration's VN update
    out_ref[0] = acc + llr     # gather(extrinsic) + llr


def _vmem_budget():
    """Generation-aware VMEM budget (~48 MiB on v7x, ~96 MiB on v5e/v6e)."""
    try:
        cap = int(pltpu.get_tpu_info().vmem_capacity_bytes)
    except Exception:
        cap = 64 * 1024 * 1024        # conservative (v7x-sized) default
    return max(32 * 1024 * 1024, min((cap * 3) // 4, 100 * 1024 * 1024))


def _choose_batch_tile(B, M_pad, Np, vmem_budget):
    """Pick the per-grid-step batch tile TB.

    Goals (perf review): ext scratch (TB*M_pad*Np*4 B) <= ~half the VMEM budget;
    >= 2 batch tiles when the batch allows it (v7x dual TC / megacore); block
    second-to-last dim a multiple of 8 (or the full batch dim for tiny batches).
    """
    tb_vmem = max(1, (vmem_budget // 2) // (M_pad * Np * 4))
    tb = min(B, tb_vmem)
    if tb == B and B >= 16:           # enough rows for two >=8 tiles -> use 2+ cores
        tb = B // 2
    if tb >= 8:
        tb = (tb // 8) * 8            # sublane-aligned batch tile
    else:
        tb = min(B, 8)                # tiny batch: one tile equal to the full batch
    return tb


def neural_sum_product(llr, H, num_iters, *, batch_tile=None):
    """Runs `num_iters` SPA iterations; returns a list of per-iteration (B, N) outputs."""
    llr = jnp.asarray(llr, jnp.float32)
    H = jnp.asarray(H, jnp.float32)
    B, N = llr.shape
    M = H.shape[0]

    # Lane-dense padding to a power-of-two multiple of 128 (rotate-and-multiply
    # lane product requires a power-of-two lane count; >=128 keeps stores unmasked).
    Np = max(128, 1 << (int(N) - 1).bit_length())
    MC = 8                                   # check-node chunk = one sublane tile
    M_pad = ((M + MC - 1) // MC) * MC
    nchunks = M_pad // MC

    vmem_budget = _vmem_budget()
    TB = batch_tile if batch_tile is not None else _choose_batch_tile(
        B, M_pad, Np, vmem_budget)
    B_pad = ((B + TB - 1) // TB) * TB

    llr_p = jnp.zeros((B_pad, Np), jnp.float32).at[:B, :N].set(llr)
    H_p = jnp.zeros((M_pad, Np), jnp.float32).at[:M, :N].set(H)
    H_p = H_p.reshape(nchunks, MC, Np)

    # Grid: batch tiles (parallel, shardable across TensorCores) x iterations.
    # HARD REQUIREMENT: the iteration axis must stay innermost and "arbitrary";
    # the persistent ext/colsum scratch + pl.when(t==0) reset depend on t being
    # executed sequentially for each batch tile.
    grid = (B_pad // TB, num_iters)

    def build(single_buffer_h):
        h_kwargs = {}
        if single_buffer_h:
            # H is grid-invariant (constant index map); one VMEM buffer suffices.
            h_kwargs["pipeline_mode"] = pl.Buffered(1)
        return pl.pallas_call(
            _spa_step_kernel,
            out_shape=jax.ShapeDtypeStruct((num_iters, B_pad, Np), jnp.float32),
            grid_spec=pltpu.PrefetchScalarGridSpec(
                num_scalar_prefetch=0,
                grid=grid,
                in_specs=[
                    pl.BlockSpec((TB, Np), lambda b, t: (b, 0)),
                    pl.BlockSpec((nchunks, MC, Np), lambda b, t: (0, 0, 0),
                                 **h_kwargs),
                ],
                out_specs=pl.BlockSpec((1, TB, Np), lambda b, t: (t, b, 0)),
                scratch_shapes=[
                    pltpu.VMEM((nchunks, TB, MC, Np), jnp.float32),  # extrinsics
                    pltpu.VMEM((TB, Np), jnp.float32),               # column sums
                ],
            ),
            compiler_params=pltpu.CompilerParams(
                dimension_semantics=("parallel", "arbitrary"),
                vmem_limit_bytes=vmem_budget,
            ),
        )

    try:
        out = jax.block_until_ready(build(True)(llr_p, H_p))
    except Exception:
        # pipeline_mode=pl.Buffered(1) not supported by this jax version ->
        # fall back to the default double-buffered H block (identical semantics).
        out = jax.block_until_ready(build(False)(llr_p, H_p))

    out = out[:, :B, :N]
    # Match the PyTorch module, which returns a list of per-iteration tensors.
    return [out[i] for i in range(num_iters)]


def _reference(llr, H, num_iters):
    """Pure NumPy mirror of the same forward pass (for verification)."""
    llr = np.asarray(llr, np.float32)
    H = np.asarray(H, np.float32)
    Hb = H[None]
    ext = np.zeros((llr.shape[0], H.shape[0], H.shape[1]), np.float32)
    outs = []
    for _ in range(num_iters):
        col = ext.sum(axis=1, keepdims=True)
        msg = (col - ext) + llr[:, None, :]
        t = np.tanh(0.5 * msg)
        t = np.where(Hb > 0, t, 1.0).astype(np.float32)
        s = np.where(t < 0, -1.0, 1.0).astype(np.float32)
        t_abs = np.maximum(np.abs(t), _EPS)
        row_prod = np.prod(t_abs, axis=2, keepdims=True)
        row_sign = np.prod(s, axis=2, keepdims=True)
        num = t_abs + row_prod
        den = np.maximum(t_abs - row_prod, t_abs * _ONE_MINUS_CLIP)
        ext = ((row_sign * s) * np.log(num / den) * Hb).astype(np.float32)
        outs.append(ext.sum(axis=1) + llr)
    return outs


if __name__ == "__main__":
    B, N, M, T = 16, 32, 16, 4   # batch, variable nodes, check nodes, iterations

    # Deterministic parity-check "code": each variable connects to <=3 checks.
    H_np = np.zeros((M, N), np.float32)
    for n in range(N):
        for c in (n % M, (3 * n + 1) % M, (7 * n + 5) % M):
            H_np[c, n] = 1.0

    key = jax.random.PRNGKey(0)
    llr = 2.0 * jax.random.normal(key, (B, N), dtype=jnp.float32)

    outs = neural_sum_product(llr, jnp.asarray(H_np), T)
    outs = jax.block_until_ready(outs)

    ref = _reference(np.asarray(llr), H_np, T)
    for got, want in zip(outs, ref):
        np.testing.assert_allclose(np.asarray(got), want, rtol=5e-2, atol=5e-2)

    print("KERNEL_OK")
</pallas_src>

<mosaic_0001>
module attributes {stable_mosaic.version = 11 : i64} {
  func.func @_spa_step_kernel(%arg0: i32, %arg1: i32, %arg2: memref<8x128xf32, #tpu.memory_space<vmem>>, %arg3: memref<2x8x128xf32, #tpu.memory_space<vmem>>, %arg4: memref<1x8x128xf32, #tpu.memory_space<vmem>>, %arg5: memref<2x8x8x128xf32, #tpu.memory_space<vmem>>, %arg6: memref<8x128xf32, #tpu.memory_space<vmem>>) attributes {dimension_semantics = [#tpu.dimension_semantics<parallel>, #tpu.dimension_semantics<arbitrary>], iteration_bounds = array<i64: 2, 4>, scalar_prefetch = 0 : i64, scratch_operands = 2 : i64, tpu.core_type = #tpu.core_type<tc>, window_params = [{transform_indices = @transform_0, window_bounds = array<i64: 8, 128>}, {pipeline_mode = #tpu.pipeline_mode<synchronous>, transform_indices = @transform_1, window_bounds = array<i64: 2, 8, 128>}, {transform_indices = @transform_2, window_bounds = array<i64: 1, 8, 128>}]} {
    %c0_i32 = arith.constant 0 : i32
    %0 = arith.cmpi eq, %arg1, %c0_i32 : i32
    %1 = arith.extui %0 : i1 to i32
    %c0_i32_0 = arith.constant 0 : i32
    %2 = arith.cmpi ne, %1, %c0_i32_0 : i32
    scf.if %2 {
      %cst_61 = arith.constant 0.000000e+00 : f32
      %161 = vector.broadcast %cst_61 : f32 to vector<2x8x8x128xf32>
      %c0_62 = arith.constant 0 : index
      %c0_63 = arith.constant 0 : index
      %c0_64 = arith.constant 0 : index
      %c0_65 = arith.constant 0 : index
      %162 = vector.load %arg5[%c0_62, %c0_63, %c0_64, %c0_65] : memref<2x8x8x128xf32, #tpu.memory_space<vmem>>, vector<2x8x8x128xf32>
      tpu.vector_store %arg5[%c0_62, %c0_63, %c0_64, %c0_65], %161 {strides = array<i32>} : memref<2x8x8x128xf32, #tpu.memory_space<vmem>>, vector<2x8x8x128xf32>,
      %cst_66 = arith.constant 0.000000e+00 : f32
      %163 = vector.broadcast %cst_66 : f32 to vector<8x128xf32>
      %c0_67 = arith.constant 0 : index
      %c0_68 = arith.constant 0 : index
      %164 = vector.load %arg6[%c0_67, %c0_68] : memref<8x128xf32, #tpu.memory_space<vmem>>, vector<8x128xf32>
      tpu.vector_store %arg6[%c0_67, %c0_68], %163 {strides = array<i32>} : memref<8x128xf32, #tpu.memory_space<vmem>>, vector<8x128xf32>,
    } else {
    }
    %c0 = arith.constant 0 : index
    %c0_1 = arith.constant 0 : index
    %3 = vector.load %arg2[%c0, %c0_1] : memref<8x128xf32, #tpu.memory_space<vmem>>, vector<8x128xf32>
    %4 = vector.shape_cast %3 : vector<8x128xf32> to vector<8x1x128xf32>
    %c0_2 = arith.constant 0 : index
    %c0_3 = arith.constant 0 : index
    %5 = vector.load %arg6[%c0_2, %c0_3] : memref<8x128xf32, #tpu.memory_space<vmem>>, vector<8x128xf32>
    %6 = vector.shape_cast %5 : vector<8x128xf32> to vector<8x1x128xf32>
    %cst = arith.constant 0.000000e+00 : f32
    %7 = vector.broadcast %cst : f32 to vector<8x128xf32>
    %c0_i32_4 = arith.constant 0 : i32
    %8 = arith.index_cast %c0_i32_4 : i32 to index
    %c0_5 = arith.constant 0 : index
    %c0_6 = arith.constant 0 : index
    %9 = vector.load %arg3[%8, %c0_5, %c0_6] : memref<2x8x128xf32, #tpu.memory_space<vmem>>, vector<1x8x128xf32>
    %10 = vector.shape_cast %9 : vector<1x8x128xf32> to vector<8x128xf32>
    %11 = arith.index_cast %c0_i32_4 : i32 to index
    %c0_7 = arith.constant 0 : index
    %c0_8 = arith.constant 0 : index
    %c0_9 = arith.constant 0 : index
    %12 = vector.load %arg5[%11, %c0_7, %c0_8, %c0_9] : memref<2x8x8x128xf32, #tpu.memory_space<vmem>>, vector<1x8x8x128xf32>
    %13 = vector.shape_cast %12 : vector<1x8x8x128xf32> to vector<8x8x128xf32>
    %14 = vector.broadcast %6 : vector<8x1x128xf32> to vector<8x8x128xf32>
    %15 = arith.subf %14, %13 : vector<8x8x128xf32>
    %16 = vector.broadcast %4 : vector<8x1x128xf32> to vector<8x8x128xf32>
    %17 = arith.addf %15, %16 : vector<8x8x128xf32>
    %cst_10 = arith.constant 5.000000e-01 : f32
    %18 = vector.broadcast %cst_10 : f32 to vector<8x8x128xf32>
    %19 = arith.mulf %18, %17 : vector<8x8x128xf32>
    %20 = math.tanh %19 : vector<8x8x128xf32>
    %21 = vector.shape_cast %10 : vector<8x128xf32> to vector<1x8x128xf32>
    %cst_11 = arith.constant 0.000000e+00 : f32
    %22 = vector.broadcast %cst_11 : f32 to vector<1x8x128xf32>
    %23 = arith.cmpf ogt, %21, %22 : vector<1x8x128xf32>
    %cst_12 = arith.constant 1.000000e+00 : f32
    %24 = vector.shape_cast %23 : vector<1x8x128xi1> to vector<1x8x128xi1>
    %25 = vector.broadcast %24 : vector<1x8x128xi1> to vector<8x8x128xi1>
    %26 = vector.broadcast %cst_12 : f32 to vector<8x8x128xf32>
    %27 = arith.select %25, %20, %26 : vector<8x8x128xi1>, vector<8x8x128xf32>
    %cst_13 = arith.constant 0.000000e+00 : f32
    %28 = vector.broadcast %cst_13 : f32 to vector<8x8x128xf32>
    %29 = arith.cmpf olt, %27, %28 : vector<8x8x128xf32>
    %cst_14 = arith.constant -1.000000e+00 : f32
    %cst_15 = arith.constant 1.000000e+00 : f32
    %30 = vector.broadcast %cst_14 : f32 to vector<8x8x128xf32>
    %31 = vector.broadcast %cst_15 : f32 to vector<8x8x128xf32>
    %32 = arith.select %29, %30, %31 : vector<8x8x128xi1>, vector<8x8x128xf32>
    %33 = math.absf %27 : vector<8x8x128xf32>
    %cst_16 = arith.constant 9.99999971E-10 : f32
    %34 = vector.broadcast %cst_16 : f32 to vector<8x8x128xf32>
    %35 = arith.maximumf %33, %34 : vector<8x8x128xf32>
    %36 = arith.mulf %32, %35 : vector<8x8x128xf32>
    %37 = vector.shape_cast %36 : vector<8x8x128xf32> to vector<64x128xf32>
    %c1_i32 = arith.constant 1 : i32
    %38 = tpu.dynamic_rotate %37 by %c1_i32 dim 1 : vector<64x128xf32>, i32 -> vector<64x128xf32>
    %39 = arith.mulf %37, %38 : vector<64x128xf32>
    %c2_i32 = arith.constant 2 : i32
    %40 = tpu.dynamic_rotate %39 by %c2_i32 dim 1 : vector<64x128xf32>, i32 -> vector<64x128xf32>
    %41 = arith.mulf %39, %40 : vector<64x128xf32>
    %c4_i32 = arith.constant 4 : i32
    %42 = tpu.dynamic_rotate %41 by %c4_i32 dim 1 : vector<64x128xf32>, i32 -> vector<64x128xf32>
    %43 = arith.mulf %41, %42 : vector<64x128xf32>
    %c8_i32 = arith.constant 8 : i32
    %44 = tpu.dynamic_rotate %43 by %c8_i32 dim 1 : vector<64x128xf32>, i32 -> vector<64x128xf32>
    %45 = arith.mulf %43, %44 : vector<64x128xf32>
    %c16_i32 = arith.constant 16 : i32
    %46 = tpu.dynamic_rotate %45 by %c16_i32 dim 1 : vector<64x128xf32>, i32 -> vector<64x128xf32>
    %47 = arith.mulf %45, %46 : vector<64x128xf32>
    %c32_i32 = arith.constant 32 : i32
    %48 = tpu.dynamic_rotate %47 by %c32_i32 dim 1 : vector<64x128xf32>, i32 -> vector<64x128xf32>
    %49 = arith.mulf %47, %48 : vector<64x128xf32>
    %c64_i32 = arith.constant 64 : i32
    %50 = tpu.dynamic_rotate %49 by %c64_i32 dim 1 : vector<64x128xf32>, i32 -> vector<64x128xf32>
    %51 = arith.mulf %49, %50 : vector<64x128xf32>
    %52 = vector.shape_cast %51 : vector<64x128xf32> to vector<8x8x128xf32>
    %cst_17 = arith.constant 0.000000e+00 : f32
    %53 = vector.broadcast %cst_17 : f32 to vector<8x8x128xf32>
    %54 = arith.cmpf olt, %52, %53 : vector<8x8x128xf32>
    %cst_18 = arith.constant -1.000000e+00 : f32
    %cst_19 = arith.constant 1.000000e+00 : f32
    %55 = vector.broadcast %cst_18 : f32 to vector<8x8x128xf32>
    %56 = vector.broadcast %cst_19 : f32 to vector<8x8x128xf32>
    %57 = arith.select %54, %55, %56 : vector<8x8x128xi1>, vector<8x8x128xf32>
    %58 = math.absf %52 : vector<8x8x128xf32>
    %59 = arith.addf %35, %58 : vector<8x8x128xf32>
    %60 = arith.subf %35, %58 : vector<8x8x128xf32>
    %cst_20 = arith.constant 9.99999997E-7 : f32
    %61 = vector.broadcast %cst_20 : f32 to vector<8x8x128xf32>
    %62 = arith.mulf %35, %61 : vector<8x8x128xf32>
    %63 = arith.maximumf %60, %62 : vector<8x8x128xf32>
    %64 = tpu.reciprocal %63 {approx = true} : vector<8x8x128xf32> -> vector<8x8x128xf32>
    %65 = arith.mulf %63, %64 : vector<8x8x128xf32>
    %cst_21 = arith.constant 2.000000e+00 : f32
    %66 = vector.broadcast %cst_21 : f32 to vector<8x8x128xf32>
    %67 = arith.subf %66, %65 : vector<8x8x128xf32>
    %68 = arith.mulf %64, %67 : vector<8x8x128xf32>
    %69 = arith.mulf %57, %32 : vector<8x8x128xf32>
    %70 = arith.mulf %59, %68 : vector<8x8x128xf32>
    %71 = math.log %70 : vector<8x8x128xf32>
    %72 = arith.mulf %69, %71 : vector<8x8x128xf32>
    %73 = vector.shape_cast %10 : vector<8x128xf32> to vector<1x8x128xf32>
    %74 = vector.broadcast %73 : vector<1x8x128xf32> to vector<8x8x128xf32>
    %75 = arith.mulf %72, %74 : vector<8x8x128xf32>
    %76 = arith.index_cast %c0_i32_4 : i32 to index
    %c0_22 = arith.constant 0 : index
    %c0_23 = arith.constant 0 : index
    %c0_24 = arith.constant 0 : index
    %77 = vector.load %arg5[%76, %c0_22, %c0_23, %c0_24] : memref<2x8x8x128xf32, #tpu.memory_space<vmem>>, vector<1x8x8x128xf32>
    %78 = vector.shape_cast %77 : vector<1x8x8x128xf32> to vector<8x8x128xf32>
    %79 = vector.shape_cast %75 : vector<8x8x128xf32> to vector<1x8x8x128xf32>
    tpu.vector_store %arg5[%76, %c0_22, %c0_23, %c0_24], %79 {strides = array<i32>} : memref<2x8x8x128xf32, #tpu.memory_space<vmem>>, vector<1x8x8x128xf32>,
    %cst_25 = arith.constant dense<0.000000e+00> : vector<8x128xf32>
    %80 = vector.multi_reduction <add>, %75, %cst_25 [1] : vector<8x8x128xf32> to vector<8x128xf32>
    %81 = arith.addf %7, %80 : vector<8x128xf32>
    %c1_i32_26 = arith.constant 1 : i32
    %82 = arith.index_cast %c1_i32_26 : i32 to index
    %c0_27 = arith.constant 0 : index
    %c0_28 = arith.constant 0 : index
    %83 = vector.load %arg3[%82, %c0_27, %c0_28] : memref<2x8x128xf32, #tpu.memory_space<vmem>>, vector<1x8x128xf32>
    %84 = vector.shape_cast %83 : vector<1x8x128xf32> to vector<8x128xf32>
    %85 = arith.index_cast %c1_i32_26 : i32 to index
    %c0_29 = arith.constant 0 : index
    %c0_30 = arith.constant 0 : index
    %c0_31 = arith.constant 0 : index
    %86 = vector.load %arg5[%85, %c0_29, %c0_30, %c0_31] : memref<2x8x8x128xf32, #tpu.memory_space<vmem>>, vector<1x8x8x128xf32>
    %87 = vector.shape_cast %86 : vector<1x8x8x128xf32> to vector<8x8x128xf32>
    %88 = vector.broadcast %6 : vector<8x1x128xf32> to vector<8x8x128xf32>
    %89 = arith.subf %88, %87 : vector<8x8x128xf32>
    %90 = vector.broadcast %4 : vector<8x1x128xf32> to vector<8x8x128xf32>
    %91 = arith.addf %89, %90 : vector<8x8x128xf32>
    %cst_32 = arith.constant 5.000000e-01 : f32
    %92 = vector.broadcast %cst_32 : f32 to vector<8x8x128xf32>
    %93 = arith.mulf %92, %91 : vector<8x8x128xf32>
    %94 = math.tanh %93 : vector<8x8x128xf32>
    %95 = vector.shape_cast %84 : vector<8x128xf32> to vector<1x8x128xf32>
    %cst_33 = arith.constant 0.000000e+00 : f32
    %96 = vector.broadcast %cst_33 : f32 to vector<1x8x128xf32>
    %97 = arith.cmpf ogt, %95, %96 : vector<1x8x128xf32>
    %cst_34 = arith.constant 1.000000e+00 : f32
    %98 = vector.shape_cast %97 : vector<1x8x128xi1> to vector<1x8x128xi1>
    %99 = vector.broadcast %98 : vector<1x8x128xi1> to vector<8x8x128xi1>
    %100 = vector.broadcast %cst_34 : f32 to vector<8x8x128xf32>
    %101 = arith.select %99, %94, %100 : vector<8x8x128xi1>, vector<8x8x128xf32>
    %cst_35 = arith.constant 0.000000e+00 : f32
    %102 = vector.broadcast %cst_35 : f32 to vector<8x8x128xf32>
    %103 = arith.cmpf olt, %101, %102 : vector<8x8x128xf32>
    %cst_36 = arith.constant -1.000000e+00 : f32
    %cst_37 = arith.constant 1.000000e+00 : f32
    %104 = vector.broadcast %cst_36 : f32 to vector<8x8x128xf32>
    %105 = vector.broadcast %cst_37 : f32 to vector<8x8x128xf32>
    %106 = arith.select %103, %104, %105 : vector<8x8x128xi1>, vector<8x8x128xf32>
    %107 = math.absf %101 : vector<8x8x128xf32>
    %cst_38 = arith.constant 9.99999971E-10 : f32
    %108 = vector.broadcast %cst_38 : f32 to vector<8x8x128xf32>
    %109 = arith.maximumf %107, %108 : vector<8x8x128xf32>
    %110 = arith.mulf %106, %109 : vector<8x8x128xf32>
    %111 = vector.shape_cast %110 : vector<8x8x128xf32> to vector<64x128xf32>
    %c1_i32_39 = arith.constant 1 : i32
    %112 = tpu.dynamic_rotate %111 by %c1_i32_39 dim 1 : vector<64x128xf32>, i32 -> vector<64x128xf32>
    %113 = arith.mulf %111, %112 : vector<64x128xf32>
    %c2_i32_40 = arith.constant 2 : i32
    %114 = tpu.dynamic_rotate %113 by %c2_i32_40 dim 1 : vector<64x128xf32>, i32 -> vector<64x128xf32>
    %115 = arith.mulf %113, %114 : vector<64x128xf32>
    %c4_i32_41 = arith.constant 4 : i32
    %116 = tpu.dynamic_rotate %115 by %c4_i32_41 dim 1 : vector<64x128xf32>, i32 -> vector<64x128xf32>
    %117 = arith.mulf %115, %116 : vector<64x128xf32>
    %c8_i32_42 = arith.constant 8 : i32
    %118 = tpu.dynamic_rotate %117 by %c8_i32_42 dim 1 : vector<64x128xf32>, i32 -> vector<64x128xf32>
    %119 = arith.mulf %117, %118 : vector<64x128xf32>
    %c16_i32_43 = arith.constant 16 : i32
    %120 = tpu.dynamic_rotate %119 by %c16_i32_43 dim 1 : vector<64x128xf32>, i32 -> vector<64x128xf32>
    %121 = arith.mulf %119, %120 : vector<64x128xf32>
    %c32_i32_44 = arith.constant 32 : i32
    %122 = tpu.dynamic_rotate %121 by %c32_i32_44 dim 1 : vector<64x128xf32>, i32 -> vector<64x128xf32>
    %123 = arith.mulf %121, %122 : vector<64x128xf32>
    %c64_i32_45 = arith.constant 64 : i32
    %124 = tpu.dynamic_rotate %123 by %c64_i32_45 dim 1 : vector<64x128xf32>, i32 -> vector<64x128xf32>
    %125 = arith.mulf %123, %124 : vector<64x128xf32>
    %126 = vector.shape_cast %125 : vector<64x128xf32> to vector<8x8x128xf32>
    %cst_46 = arith.constant 0.000000e+00 : f32
    %127 = vector.broadcast %cst_46 : f32 to vector<8x8x128xf32>
    %128 = arith.cmpf olt, %126, %127 : vector<8x8x128xf32>
    %cst_47 = arith.constant -1.000000e+00 : f32
    %cst_48 = arith.constant 1.000000e+00 : f32
    %129 = vector.broadcast %cst_47 : f32 to vector<8x8x128xf32>
    %130 = vector.broadcast %cst_48 : f32 to vector<8x8x128xf32>
    %131 = arith.select %128, %129, %130 : vector<8x8x128xi1>, vector<8x8x128xf32>
    %132 = math.absf %126 : vector<8x8x128xf32>
    %133 = arith.addf %109, %132 : vector<8x8x128xf32>
    %134 = arith.subf %109, %132 : vector<8x8x128xf32>
    %cst_49 = arith.constant 9.99999997E-7 : f32
    %135 = vector.broadcast %cst_49 : f32 to vector<8x8x128xf32>
    %136 = arith.mulf %109, %135 : vector<8x8x128xf32>
    %137 = arith.maximumf %134, %136 : vector<8x8x128xf32>
    %138 = tpu.reciprocal %137 {approx = true} : vector<8x8x128xf32> -> vector<8x8x128xf32>
    %139 = arith.mulf %137, %138 : vector<8x8x128xf32>
    %cst_50 = arith.constant 2.000000e+00 : f32
    %140 = vector.broadcast %cst_50 : f32 to vector<8x8x128xf32>
    %141 = arith.subf %140, %139 : vector<8x8x128xf32>
    %142 = arith.mulf %138, %141 : vector<8x8x128xf32>
    %143 = arith.mulf %131, %106 : vector<8x8x128xf32>
    %144 = arith.mulf %133, %142 : vector<8x8x128xf32>
    %145 = math.log %144 : vector<8x8x128xf32>
    %146 = arith.mulf %143, %145 : vector<8x8x128xf32>
    %147 = vector.shape_cast %84 : vector<8x128xf32> to vector<1x8x128xf32>
    %148 = vector.broadcast %147 : vector<1x8x128xf32> to vector<8x8x128xf32>
    %149 = arith.mulf %146, %148 : vector<8x8x128xf32>
    %150 = arith.index_cast %c1_i32_26 : i32 to index
    %c0_51 = arith.constant 0 : index
    %c0_52 = arith.constant 0 : index
    %c0_53 = arith.constant 0 : index
    %151 = vector.load %arg5[%150, %c0_51, %c0_52, %c0_53] : memref<2x8x8x128xf32, #tpu.memory_space<vmem>>, vector<1x8x8x128xf32>
    %152 = vector.shape_cast %151 : vector<1x8x8x128xf32> to vector<8x8x128xf32>
    %153 = vector.shape_cast %149 : vector<8x8x128xf32> to vector<1x8x8x128xf32>
    tpu.vector_store %arg5[%150, %c0_51, %c0_52, %c0_53], %153 {strides = array<i32>} : memref<2x8x8x128xf32, #tpu.memory_space<vmem>>, vector<1x8x8x128xf32>,
    %cst_54 = arith.constant dense<0.000000e+00> : vector<8x128xf32>
    %154 = vector.multi_reduction <add>, %149, %cst_54 [1] : vector<8x8x128xf32> to vector<8x128xf32>
    %155 = arith.addf %81, %154 : vector<8x128xf32>
    %c2_i32_55 = arith.constant 2 : i32
    %c0_56 = arith.constant 0 : index
    %c0_57 = arith.constant 0 : index
    %156 = vector.load %arg6[%c0_56, %c0_57] : memref<8x128xf32, #tpu.memory_space<vmem>>, vector<8x128xf32>
    tpu.vector_store %arg6[%c0_56, %c0_57], %155 {strides = array<i32>} : memref<8x128xf32, #tpu.memory_space<vmem>>, vector<8x128xf32>,
    %157 = arith.addf %155, %3 : vector<8x128xf32>
    %c0_58 = arith.constant 0 : index
    %c0_59 = arith.constant 0 : index
    %c0_60 = arith.constant 0 : index
    %158 = vector.load %arg4[%c0_58, %c0_59, %c0_60] : memref<1x8x128xf32, #tpu.memory_space<vmem>>, vector<1x8x128xf32>
    %159 = vector.shape_cast %158 : vector<1x8x128xf32> to vector<8x128xf32>
    %160 = vector.shape_cast %157 : vector<8x128xf32> to vector<1x8x128xf32>
    tpu.vector_store %arg4[%c0_58, %c0_59, %c0_60], %160 {strides = array<i32>} : memref<1x8x128xf32, #tpu.memory_space<vmem>>, vector<1x8x128xf32>,
    return
  }
  func.func @transform_0(%arg0: i32, %arg1: i32) -> (i32, i32) {
    %c0_i32 = arith.constant 0 : i32
    %c0_i32_0 = arith.constant 0 : i32
    return %arg0, %c0_i32 : i32, i32
  }
  func.func @transform_1(%arg0: i32, %arg1: i32) -> (i32, i32, i32) {
    %c0_i32 = arith.constant 0 : i32
    %c0_i32_0 = arith.constant 0 : i32
    %c0_i32_1 = arith.constant 0 : i32
    %c0_i32_2 = arith.constant 0 : i32
    return %c0_i32, %c0_i32_0, %c0_i32_1 : i32, i32, i32
  }
  func.func @transform_2(%arg0: i32, %arg1: i32) -> (i32, i32, i32) {
    %c0_i32 = arith.constant 0 : i32
    %c0_i32_0 = arith.constant 0 : i32
    return %arg1, %arg0, %c0_i32 : i32, i32, i32
  }
}

module attributes {stable_mosaic.version = 11 : i64} {
  func.func @_spa_step_kernel(%arg0: i32, %arg1: i32, %arg2: memref<8x128xf32, #tpu.memory_space<vmem>>, %arg3: memref<2x8x128xf32, #tpu.memory_space<vmem>>, %arg4: memref<1x8x128xf32, #tpu.memory_space<vmem>>, %arg5: memref<2x8x8x128xf32, #tpu.memory_space<vmem>>, %arg6: memref<8x128xf32, #tpu.memory_space<vmem>>) attributes {dimension_semantics = [#tpu.dimension_semantics<parallel>, #tpu.dimension_semantics<arbitrary>], iteration_bounds = array<i64: 2, 4>, scalar_prefetch = 0 : i64, scratch_operands = 2 : i64, tpu.core_type = #tpu.core_type<tc>, window_params = [{transform_indices = @transform_0, window_bounds = array<i64: 8, 128>}, {pipeline_mode = #tpu.pipeline_mode<synchronous>, transform_indices = @transform_1, window_bounds = array<i64: 2, 8, 128>}, {transform_indices = @transform_2, window_bounds = array<i64: 1, 8, 128>}]} {
    %c0_i32 = arith.constant 0 : i32
    %0 = arith.cmpi eq, %arg1, %c0_i32 : i32
    %1 = arith.extui %0 : i1 to i32
    %c0_i32_0 = arith.constant 0 : i32
    %2 = arith.cmpi ne, %1, %c0_i32_0 : i32
    scf.if %2 {
      %cst_61 = arith.constant 0.000000e+00 : f32
      %161 = vector.broadcast %cst_61 : f32 to vector<2x8x8x128xf32>
      %c0_62 = arith.constant 0 : index
      %c0_63 = arith.constant 0 : index
      %c0_64 = arith.constant 0 : index
      %c0_65 = arith.constant 0 : index
      %162 = vector.load %arg5[%c0_62, %c0_63, %c0_64, %c0_65] : memref<2x8x8x128xf32, #tpu.memory_space<vmem>>, vector<2x8x8x128xf32>
      tpu.vector_store %arg5[%c0_62, %c0_63, %c0_64, %c0_65], %161 {strides = array<i32>} : memref<2x8x8x128xf32, #tpu.memory_space<vmem>>, vector<2x8x8x128xf32>,
      %cst_66 = arith.constant 0.000000e+00 : f32
      %163 = vector.broadcast %cst_66 : f32 to vector<8x128xf32>
      %c0_67 = arith.constant 0 : index
      %c0_68 = arith.constant 0 : index
      %164 = vector.load %arg6[%c0_67, %c0_68] : memref<8x128xf32, #tpu.memory_space<vmem>>, vector<8x128xf32>
      tpu.vector_store %arg6[%c0_67, %c0_68], %163 {strides = array<i32>} : memref<8x128xf32, #tpu.memory_space<vmem>>, vector<8x128xf32>,
    } else {
    }
    %c0 = arith.constant 0 : index
    %c0_1 = arith.constant 0 : index
    %3 = vector.load %arg2[%c0, %c0_1] : memref<8x128xf32, #tpu.memory_space<vmem>>, vector<8x128xf32>
    %4 = vector.shape_cast %3 : vector<8x128xf32> to vector<8x1x128xf32>
    %c0_2 = arith.constant 0 : index
    %c0_3 = arith.constant 0 : index
    %5 = vector.load %arg6[%c0_2, %c0_3] : memref<8x128xf32, #tpu.memory_space<vmem>>, vector<8x128xf32>
    %6 = vector.shape_cast %5 : vector<8x128xf32> to vector<8x1x128xf32>
    %cst = arith.constant 0.000000e+00 : f32
    %7 = vector.broadcast %cst : f32 to vector<8x128xf32>
    %c0_i32_4 = arith.constant 0 : i32
    %8 = arith.index_cast %c0_i32_4 : i32 to index
    %c0_5 = arith.constant 0 : index
    %c0_6 = arith.constant 0 : index
    %9 = vector.load %arg3[%8, %c0_5, %c0_6] : memref<2x8x128xf32, #tpu.memory_space<vmem>>, vector<1x8x128xf32>
    %10 = vector.shape_cast %9 : vector<1x8x128xf32> to vector<8x128xf32>
    %11 = arith.index_cast %c0_i32_4 : i32 to index
    %c0_7 = arith.constant 0 : index
    %c0_8 = arith.constant 0 : index
    %c0_9 = arith.constant 0 : index
    %12 = vector.load %arg5[%11, %c0_7, %c0_8, %c0_9] : memref<2x8x8x128xf32, #tpu.memory_space<vmem>>, vector<1x8x8x128xf32>
    %13 = vector.shape_cast %12 : vector<1x8x8x128xf32> to vector<8x8x128xf32>
    %14 = vector.broadcast %6 : vector<8x1x128xf32> to vector<8x8x128xf32>
    %15 = arith.subf %14, %13 : vector<8x8x128xf32>
    %16 = vector.broadcast %4 : vector<8x1x128xf32> to vector<8x8x128xf32>
    %17 = arith.addf %15, %16 : vector<8x8x128xf32>
    %cst_10 = arith.constant 5.000000e-01 : f32
    %18 = vector.broadcast %cst_10 : f32 to vector<8x8x128xf32>
    %19 = arith.mulf %18, %17 : vector<8x8x128xf32>
    %20 = math.tanh %19 : vector<8x8x128xf32>
    %21 = vector.shape_cast %10 : vector<8x128xf32> to vector<1x8x128xf32>
    %cst_11 = arith.constant 0.000000e+00 : f32
    %22 = vector.broadcast %cst_11 : f32 to vector<1x8x128xf32>
    %23 = arith.cmpf ogt, %21, %22 : vector<1x8x128xf32>
    %cst_12 = arith.constant 1.000000e+00 : f32
    %24 = vector.shape_cast %23 : vector<1x8x128xi1> to vector<1x8x128xi1>
    %25 = vector.broadcast %24 : vector<1x8x128xi1> to vector<8x8x128xi1>
    %26 = vector.broadcast %cst_12 : f32 to vector<8x8x128xf32>
    %27 = arith.select %25, %20, %26 : vector<8x8x128xi1>, vector<8x8x128xf32>
    %cst_13 = arith.constant 0.000000e+00 : f32
    %28 = vector.broadcast %cst_13 : f32 to vector<8x8x128xf32>
    %29 = arith.cmpf olt, %27, %28 : vector<8x8x128xf32>
    %cst_14 = arith.constant -1.000000e+00 : f32
    %cst_15 = arith.constant 1.000000e+00 : f32
    %30 = vector.broadcast %cst_14 : f32 to vector<8x8x128xf32>
    %31 = vector.broadcast %cst_15 : f32 to vector<8x8x128xf32>
    %32 = arith.select %29, %30, %31 : vector<8x8x128xi1>, vector<8x8x128xf32>
    %33 = math.absf %27 : vector<8x8x128xf32>
    %cst_16 = arith.constant 9.99999971E-10 : f32
    %34 = vector.broadcast %cst_16 : f32 to vector<8x8x128xf32>
    %35 = arith.maximumf %33, %34 : vector<8x8x128xf32>
    %36 = arith.mulf %32, %35 : vector<8x8x128xf32>
    %37 = vector.shape_cast %36 : vector<8x8x128xf32> to vector<64x128xf32>
    %c1_i32 = arith.constant 1 : i32
    %38 = tpu.dynamic_rotate %37 by %c1_i32 dim 1 : vector<64x128xf32>, i32 -> vector<64x128xf32>
    %39 = arith.mulf %37, %38 : vector<64x128xf32>
    %c2_i32 = arith.constant 2 : i32
    %40 = tpu.dynamic_rotate %39 by %c2_i32 dim 1 : vector<64x128xf32>, i32 -> vector<64x128xf32>
    %41 = arith.mulf %39, %40 : vector<64x128xf32>
    %c4_i32 = arith.constant 4 : i32
    %42 = tpu.dynamic_rotate %41 by %c4_i32 dim 1 : vector<64x128xf32>, i32 -> vector<64x128xf32>
    %43 = arith.mulf %41, %42 : vector<64x128xf32>
    %c8_i32 = arith.constant 8 : i32
    %44 = tpu.dynamic_rotate %43 by %c8_i32 dim 1 : vector<64x128xf32>, i32 -> vector<64x128xf32>
    %45 = arith.mulf %43, %44 : vector<64x128xf32>
    %c16_i32 = arith.constant 16 : i32
    %46 = tpu.dynamic_rotate %45 by %c16_i32 dim 1 : vector<64x128xf32>, i32 -> vector<64x128xf32>
    %47 = arith.mulf %45, %46 : vector<64x128xf32>
    %c32_i32 = arith.constant 32 : i32
    %48 = tpu.dynamic_rotate %47 by %c32_i32 dim 1 : vector<64x128xf32>, i32 -> vector<64x128xf32>
    %49 = arith.mulf %47, %48 : vector<64x128xf32>
    %c64_i32 = arith.constant 64 : i32
    %50 = tpu.dynamic_rotate %49 by %c64_i32 dim 1 : vector<64x128xf32>, i32 -> vector<64x128xf32>
    %51 = arith.mulf %49, %50 : vector<64x128xf32>
    %52 = vector.shape_cast %51 : vector<64x128xf32> to vector<8x8x128xf32>
    %cst_17 = arith.constant 0.000000e+00 : f32
    %53 = vector.broadcast %cst_17 : f32 to vector<8x8x128xf32>
    %54 = arith.cmpf olt, %52, %53 : vector<8x8x128xf32>
    %cst_18 = arith.constant -1.000000e+00 : f32
    %cst_19 = arith.constant 1.000000e+00 : f32
    %55 = vector.broadcast %cst_18 : f32 to vector<8x8x128xf32>
    %56 = vector.broadcast %cst_19 : f32 to vector<8x8x128xf32>
    %57 = arith.select %54, %55, %56 : vector<8x8x128xi1>, vector<8x8x128xf32>
    %58 = math.absf %52 : vector<8x8x128xf32>
    %59 = arith.addf %35, %58 : vector<8x8x128xf32>
    %60 = arith.subf %35, %58 : vector<8x8x128xf32>
    %cst_20 = arith.constant 9.99999997E-7 : f32
    %61 = vector.broadcast %cst_20 : f32 to vector<8x8x128xf32>
    %62 = arith.mulf %35, %61 : vector<8x8x128xf32>
    %63 = arith.maximumf %60, %62 : vector<8x8x128xf32>
    %64 = tpu.reciprocal %63 {approx = true} : vector<8x8x128xf32> -> vector<8x8x128xf32>
    %65 = arith.mulf %63, %64 : vector<8x8x128xf32>
    %cst_21 = arith.constant 2.000000e+00 : f32
    %66 = vector.broadcast %cst_21 : f32 to vector<8x8x128xf32>
    %67 = arith.subf %66, %65 : vector<8x8x128xf32>
    %68 = arith.mulf %64, %67 : vector<8x8x128xf32>
    %69 = arith.mulf %57, %32 : vector<8x8x128xf32>
    %70 = arith.mulf %59, %68 : vector<8x8x128xf32>
    %71 = math.log %70 : vector<8x8x128xf32>
    %72 = arith.mulf %69, %71 : vector<8x8x128xf32>
    %73 = vector.shape_cast %10 : vector<8x128xf32> to vector<1x8x128xf32>
    %74 = vector.broadcast %73 : vector<1x8x128xf32> to vector<8x8x128xf32>
    %75 = arith.mulf %72, %74 : vector<8x8x128xf32>
    %76 = arith.index_cast %c0_i32_4 : i32 to index
    %c0_22 = arith.constant 0 : index
    %c0_23 = arith.constant 0 : index
    %c0_24 = arith.constant 0 : index
    %77 = vector.load %arg5[%76, %c0_22, %c0_23, %c0_24] : memref<2x8x8x128xf32, #tpu.memory_space<vmem>>, vector<1x8x8x128xf32>
    %78 = vector.shape_cast %77 : vector<1x8x8x128xf32> to vector<8x8x128xf32>
    %79 = vector.shape_cast %75 : vector<8x8x128xf32> to vector<1x8x8x128xf32>
    tpu.vector_store %arg5[%76, %c0_22, %c0_23, %c0_24], %79 {strides = array<i32>} : memref<2x8x8x128xf32, #tpu.memory_space<vmem>>, vector<1x8x8x128xf32>,
    %cst_25 = arith.constant dense<0.000000e+00> : vector<8x128xf32>
    %80 = vector.multi_reduction <add>, %75, %cst_25 [1] : vector<8x8x128xf32> to vector<8x128xf32>
    %81 = arith.addf %7, %80 : vector<8x128xf32>
    %c1_i32_26 = arith.constant 1 : i32
    %82 = arith.index_cast %c1_i32_26 : i32 to index
    %c0_27 = arith.constant 0 : index
    %c0_28 = arith.constant 0 : index
    %83 = vector.load %arg3[%82, %c0_27, %c0_28] : memref<2x8x128xf32, #tpu.memory_space<vmem>>, vector<1x8x128xf32>
    %84 = vector.shape_cast %83 : vector<1x8x128xf32> to vector<8x128xf32>
    %85 = arith.index_cast %c1_i32_26 : i32 to index
    %c0_29 = arith.constant 0 : index
    %c0_30 = arith.constant 0 : index
    %c0_31 = arith.constant 0 : index
    %86 = vector.load %arg5[%85, %c0_29, %c0_30, %c0_31] : memref<2x8x8x128xf32, #tpu.memory_space<vmem>>, vector<1x8x8x128xf32>
    %87 = vector.shape_cast %86 : vector<1x8x8x128xf32> to vector<8x8x128xf32>
    %88 = vector.broadcast %6 : vector<8x1x128xf32> to vector<8x8x128xf32>
    %89 = arith.subf %88, %87 : vector<8x8x128xf32>
    %90 = vector.broadcast %4 : vector<8x1x128xf32> to vector<8x8x128xf32>
    %91 = arith.addf %89, %90 : vector<8x8x128xf32>
    %cst_32 = arith.constant 5.000000e-01 : f32
    %92 = vector.broadcast %cst_32 : f32 to vector<8x8x128xf32>
    %93 = arith.mulf %92, %91 : vector<8x8x128xf32>
    %94 = math.tanh %93 : vector<8x8x128xf32>
    %95 = vector.shape_cast %84 : vector<8x128xf32> to vector<1x8x128xf32>
    %cst_33 = arith.constant 0.000000e+00 : f32
    %96 = vector.broadcast %cst_33 : f32 to vector<1x8x128xf32>
    %97 = arith.cmpf ogt, %95, %96 : vector<1x8x128xf32>
    %cst_34 = arith.constant 1.000000e+00 : f32
    %98 = vector.shape_cast %97 : vector<1x8x128xi1> to vector<1x8x128xi1>
    %99 = vector.broadcast %98 : vector<1x8x128xi1> to vector<8x8x128xi1>
    %100 = vector.broadcast %cst_34 : f32 to vector<8x8x128xf32>
    %101 = arith.select %99, %94, %100 : vector<8x8x128xi1>, vector<8x8x128xf32>
    %cst_35 = arith.constant 0.000000e+00 : f32
    %102 = vector.broadcast %cst_35 : f32 to vector<8x8x128xf32>
    %103 = arith.cmpf olt, %101, %102 : vector<8x8x128xf32>
    %cst_36 = arith.constant -1.000000e+00 : f32
    %cst_37 = arith.constant 1.000000e+00 : f32
    %104 = vector.broadcast %cst_36 : f32 to vector<8x8x128xf32>
    %105 = vector.broadcast %cst_37 : f32 to vector<8x8x128xf32>
    %106 = arith.select %103, %104, %105 : vector<8x8x128xi1>, vector<8x8x128xf32>
    %107 = math.absf %101 : vector<8x8x128xf32>
    %cst_38 = arith.constant 9.99999971E-10 : f32
    %108 = vector.broadcast %cst_38 : f32 to vector<8x8x128xf32>
    %109 = arith.maximumf %107, %108 : vector<8x8x128xf32>
    %110 = arith.mulf %106, %109 : vector<8x8x128xf32>
    %111 = vector.shape_cast %110 : vector<8x8x128xf32> to vector<64x128xf32>
    %c1_i32_39 = arith.constant 1 : i32
    %112 = tpu.dynamic_rotate %111 by %c1_i32_39 dim 1 : vector<64x128xf32>, i32 -> vector<64x128xf32>
    %113 = arith.mulf %111, %112 : vector<64x128xf32>
    %c2_i32_40 = arith.constant 2 : i32
    %114 = tpu.dynamic_rotate %113 by %c2_i32_40 dim 1 : vector<64x128xf32>, i32 -> vector<64x128xf32>
    %115 = arith.mulf %113, %114 : vector<64x128xf32>
    %c4_i32_41 = arith.constant 4 : i32
    %116 = tpu.dynamic_rotate %115 by %c4_i32_41 dim 1 : vector<64x128xf32>, i32 -> vector<64x128xf32>
    %117 = arith.mulf %115, %116 : vector<64x128xf32>
    %c8_i32_42 = arith.constant 8 : i32
    %118 = tpu.dynamic_rotate %117 by %c8_i32_42 dim 1 : vector<64x128xf32>, i32 -> vector<64x128xf32>
    %119 = arith.mulf %117, %118 : vector<64x128xf32>
    %c16_i32_43 = arith.constant 16 : i32
    %120 = tpu.dynamic_rotate %119 by %c16_i32_43 dim 1 : vector<64x128xf32>, i32 -> vector<64x128xf32>
    %121 = arith.mulf %119, %120 : vector<64x128xf32>
    %c32_i32_44 = arith.constant 32 : i32
    %122 = tpu.dynamic_rotate %121 by %c32_i32_44 dim 1 : vector<64x128xf32>, i32 -> vector<64x128xf32>
    %123 = arith.mulf %121, %122 : vector<64x128xf32>
    %c64_i32_45 = arith.constant 64 : i32
    %124 = tpu.dynamic_rotate %123 by %c64_i32_45 dim 1 : vector<64x128xf32>, i32 -> vector<64x128xf32>
    %125 = arith.mulf %123, %124 : vector<64x128xf32>
    %126 = vector.shape_cast %125 : vector<64x128xf32> to vector<8x8x128xf32>
    %cst_46 = arith.constant 0.000000e+00 : f32
    %127 = vector.broadcast %cst_46 : f32 to vector<8x8x128xf32>
    %128 = arith.cmpf olt, %126, %127 : vector<8x8x128xf32>
    %cst_47 = arith.constant -1.000000e+00 : f32
    %cst_48 = arith.constant 1.000000e+00 : f32
    %129 = vector.broadcast %cst_47 : f32 to vector<8x8x128xf32>
    %130 = vector.broadcast %cst_48 : f32 to vector<8x8x128xf32>
    %131 = arith.select %128, %129, %130 : vector<8x8x128xi1>, vector<8x8x128xf32>
    %132 = math.absf %126 : vector<8x8x128xf32>
    %133 = arith.addf %109, %132 : vector<8x8x128xf32>
    %134 = arith.subf %109, %132 : vector<8x8x128xf32>
    %cst_49 = arith.constant 9.99999997E-7 : f32
    %135 = vector.broadcast %cst_49 : f32 to vector<8x8x128xf32>
    %136 = arith.mulf %109, %135 : vector<8x8x128xf32>
    %137 = arith.maximumf %134, %136 : vector<8x8x128xf32>
    %138 = tpu.reciprocal %137 {approx = true} : vector<8x8x128xf32> -> vector<8x8x128xf32>
    %139 = arith.mulf %137, %138 : vector<8x8x128xf32>
    %cst_50 = arith.constant 2.000000e+00 : f32
    %140 = vector.broadcast %cst_50 : f32 to vector<8x8x128xf32>
    %141 = arith.subf %140, %139 : vector<8x8x128xf32>
    %142 = arith.mulf %138, %141 : vector<8x8x128xf32>
    %143 = arith.mulf %131, %106 : vector<8x8x128xf32>
    %144 = arith.mulf %133, %142 : vector<8x8x128xf32>
    %145 = math.log %144 : vector<8x8x128xf32>
    %146 = arith.mulf %143, %145 : vector<8x8x128xf32>
    %147 = vector.shape_cast %84 : vector<8x128xf32> to vector<1x8x128xf32>
    %148 = vector.broadcast %147 : vector<1x8x128xf32> to vector<8x8x128xf32>
    %149 = arith.mulf %146, %148 : vector<8x8x128xf32>
    %150 = arith.index_cast %c1_i32_26 : i32 to index
    %c0_51 = arith.constant 0 : index
    %c0_52 = arith.constant 0 : index
    %c0_53 = arith.constant 0 : index
    %151 = vector.load %arg5[%150, %c0_51, %c0_52, %c0_53] : memref<2x8x8x128xf32, #tpu.memory_space<vmem>>, vector<1x8x8x128xf32>
    %152 = vector.shape_cast %151 : vector<1x8x8x128xf32> to vector<8x8x128xf32>
    %153 = vector.shape_cast %149 : vector<8x8x128xf32> to vector<1x8x8x128xf32>
    tpu.vector_store %arg5[%150, %c0_51, %c0_52, %c0_53], %153 {strides = array<i32>} : memref<2x8x8x128xf32, #tpu.memory_space<vmem>>, vector<1x8x8x128xf32>,
    %cst_54 = arith.constant dense<0.000000e+00> : vector<8x128xf32>
    %154 = vector.multi_reduction <add>, %149, %cst_54 [1] : vector<8x8x128xf32> to vector<8x128xf32>
    %155 = arith.addf %81, %154 : vector<8x128xf32>
    %c2_i32_55 = arith.constant 2 : i32
    %c0_56 = arith.constant 0 : index
    %c0_57 = arith.constant 0 : index
    %156 = vector.load %arg6[%c0_56, %c0_57] : memref<8x128xf32, #tpu.memory_space<vmem>>, vector<8x128xf32>
    tpu.vector_store %arg6[%c0_56, %c0_57], %155 {strides = array<i32>} : memref<8x128xf32, #tpu.memory_space<vmem>>, vector<8x128xf32>,
    %157 = arith.addf %155, %3 : vector<8x128xf32>
    %c0_58 = arith.constant 0 : index
    %c0_59 = arith.constant 0 : index
    %c0_60 = arith.constant 0 : index
    %158 = vector.load %arg4[%c0_58, %c0_59, %c0_60] : memref<1x8x128xf32, #tpu.memory_space<vmem>>, vector<1x8x128xf32>
    %159 = vector.shape_cast %158 : vector<1x8x128xf32> to vector<8x128xf32>
    %160 = vector.shape_cast %157 : vector<8x128xf32> to vector<1x8x128xf32>
    tpu.vector_store %arg4[%c0_58, %c0_59, %c0_60], %160 {strides = array<i32>} : memref<1x8x128xf32, #tpu.memory_space<vmem>>, vector<1x8x128xf32>,
    return
  }
  func.func @transform_0(%arg0: i32, %arg1: i32) -> (i32, i32) {
    %c0_i32 = arith.constant 0 : i32
    %c0_i32_0 = arith.constant 0 : i32
    return %arg0, %c0_i32 : i32, i32
  }
  func.func @transform_1(%arg0: i32, %arg1: i32) -> (i32, i32, i32) {
    %c0_i32 = arith.constant 0 : i32
    %c0_i32_0 = arith.constant 0 : i32
    %c0_i32_1 = arith.constant 0 : i32
    %c0_i32_2 = arith.constant 0 : i32
    return %c0_i32, %c0_i32_0, %c0_i32_1 : i32, i32, i32
  }
  func.func @transform_2(%arg0: i32, %arg1: i32) -> (i32, i32, i32) {
    %c0_i32 = arith.constant 0 : i32
    %c0_i32_0 = arith.constant 0 : i32
    return %arg1, %arg0, %c0_i32 : i32, i32, i32
  }
}

</mosaic_0001>

<llo_original>
// kernel: tpu_custom_call.1
$region0: #{tpu_custom_call.1}
  #allocation0 [shape = 'u32[]', space=smem, size = 0x4, offset = 0x4, fixed_abs, tag = 'smem constant byte address 0x4 - core index']
  #allocation1 [shape = 'u32[144,128]{1,0:T(1,128)}', space=vmem, size = 0x12000, scoped, tag = 'internal scratch']
  #allocation2 [shape = 'f32[2,8,8,128]{3,2,1,0:T(8,128)}', space=vmem, size = 0x10000, scoped, tag = 'scratch operand']
  #allocation3 [shape = 'f32[8,128]{1,0:T(8,128)}', space=vmem, size = 0x1000, scoped, tag = 'scratch operand']
  %s0 = inlined_call_operand.hbm [shape: f32[16,128], index: 0, kind: input, shape index: {}]
  %s1 = inlined_call_operand.hbm [shape: f32[2,8,128], index: 1, kind: input, shape index: {}]
  %s2 = inlined_call_operand.hbm [shape: f32[4,16,128], index: 2, kind: output, shape index: {}]
  %s3 = sld [smem:[#allocation0]]
  $region53: #{tpu_custom_call.1} parent=0
    _
  %s5 = ssub.s32 1, %s3
  %s6 = scalar_select 0, %s5, %s3
  $region1: #{tpu_custom_call.1} parent=0
    #allocation4 [shape = 'u8[8192]{0}', space=vmem, size = 0x2000, scoped, tag = 'input window, operand 0']
    #allocation5 [shape = 's32[2]{0}', space=sflag, size = 0x8, scoped, tag = 'scoped memory for tpu_custom_call.1']
    #allocation6 [shape = 's32[2]{0}', space=sflag, size = 0x8, scoped, tag = 'scoped memory for tpu_custom_call.1']
    #allocation7 [shape = 'u8[8192]{0}', space=vmem, size = 0x2000, scoped, tag = 'input window, operand 1, single buffered']
    #allocation8 [shape = 's32[1]{0}', space=sflag, size = 0x4, scoped, tag = 'scoped memory for tpu_custom_call.1']
    #allocation9 [shape = 'u8[8192]{0}', space=vmem, size = 0x2000, scoped, tag = 'output window, operand 0']
    %7 = vsyncpa [#allocation5], 0
    %s8 = scalar_lea.sflag [#allocation5], 1
    %9 = vsyncpa %s8, 0
    %10 = vsyncpa [#allocation8], 0
    %11 = vsyncpa [#allocation6], 0
    %s12 = scalar_lea.sflag [#allocation6], 1
    %13 = vsyncpa %s12, 0
    loop: start=0, step=1, limit=10
    $region2: #{tpu_custom_call.1} parent=1 // loop_pre_header
      _
    $region3: #{tpu_custom_call.1} parent=1 // loop_header
      %s15 = sphi 0, %s19
      %p16 = scmp.ge.s32.totalorder %s15, 10
      %s22 = sphi 0, %s34
      %s23 = sphi 0, %s30
      %s24 = sphi 0, %s22
      %s25 = sphi 0, %s23
      %s26 = sphi 0, %s24
      %s27 = sphi 0, %s25
      %s37 = sphi 0, %s39
      %s40 = sphi 0, %s37
      %s41 = sphi 0, %s40
      %s57 = sphi 0, %s41
      %s61 = sphi 0, %s61
      %s63 = sphi 0, %s61
      %s64 = sphi 0, %s63
      %s78 = sphi 0, %s64
      %s86 = sphi 0, %s88
      %s89 = sphi 0, %s86
      %s90 = sphi 0, %s89
      %s106 = sphi 0, %s90
    $region4: #{tpu_custom_call.1} parent=1 // loop_header_branch
      %18 = sbr.rel (%p16) target = $region8
    $region5: #{tpu_custom_call.1} parent=1 // loop_body
      %s20 = ssub.s32 %s15, 1
      %s21 = ssub.s32 %s15, 2
      %s28 = sadd.s32 1, %s23
      %p29 = scmp.ge.s32.totalorder %s28, 4
      %s30 = scalar_select %p29, 0, %s28
      %s31 = sadd.s32 1, %s22
      %s32 = scalar_select %p29, %s31, %s22
      %p33 = scmp.ge.s32.totalorder %s32, 2
      %s34 = scalar_select %p33, 0, %s32
      %s35 = ssub.s32 %s22, %s34
      %p36 = scmp.eq.s32.totalorder %s35, 0
      %s38 = sadd.s32 %s37, 1
      %s39 = scalar_select %p36, %s37, %s38
      %p42 = pneg %p36
      %p43 = scmp.eq.s32.totalorder %s15, 7
      %p44 = por %p42, %p43
      %p45 = scmp.ne.s32.totalorder %s37, %s40
      %p46 = scmp.eq.s32.totalorder %s15, 0
      %p47 = por %p45, %p46
      %p48 = scmp.ne.s32.totalorder %s37, %s40
      %p49 = scmp.eq.s32.totalorder %s20, 7
      %p50 = por %p48, %p49
      %p51 = scmp.ne.s32.totalorder %s40, %s41
      %p52 = scmp.eq.s32.totalorder %s20, 0
      %p53 = por %p51, %p52
      %p54 = scmp.ne.s32.totalorder %s40, %s41
      %p55 = scmp.eq.s32.totalorder %s21, 7
      %p56 = por %p54, %p55
      %p58 = scmp.ne.s32.totalorder %s41, %s57
      %p59 = scmp.eq.s32.totalorder %s21, 0
      %p60 = por %p58, %p59
      %s62 = sadd.s32 %s61, 1
      %p65 = scmp.eq.s32.totalorder %s15, 7
      %p66 = scmp.ne.s32.totalorder %s61, %s63
      %p67 = scmp.eq.s32.totalorder %s15, 0
      %p68 = por %p66, %p67
      %p69 = scmp.ne.s32.totalorder %s61, %s63
      %p70 = scmp.eq.s32.totalorder %s20, 7
      %p71 = por %p69, %p70
      %p72 = scmp.ne.s32.totalorder %s63, %s64
      %p73 = scmp.eq.s32.totalorder %s20, 0
      %p74 = por %p72, %p73
      %p75 = scmp.ne.s32.totalorder %s63, %s64
      %p76 = scmp.eq.s32.totalorder %s21, 7
      %p77 = por %p75, %p76
      %p79 = scmp.ne.s32.totalorder %s64, %s78
      %p80 = scmp.eq.s32.totalorder %s21, 0
      %p81 = por %p79, %p80
      %s82 = ssub.s32 %s23, %s30
      %s83 = ssub.s32 %s22, %s34
      %s84 = sor.u32 %s82, %s83
      %p85 = scmp.eq.s32.totalorder %s84, 0
      %s87 = sadd.s32 %s86, 1
      %s88 = scalar_select %p85, %s86, %s87
      %p91 = pneg %p85
      %p92 = scmp.eq.s32.totalorder %s15, 7
      %p93 = por %p91, %p92
      %p94 = scmp.ne.s32.totalorder %s86, %s89
      %p95 = scmp.eq.s32.totalorder %s15, 0
      %p96 = por %p94, %p95
      %p97 = scmp.ne.s32.totalorder %s86, %s89
      %p98 = scmp.eq.s32.totalorder %s20, 7
      %p99 = por %p97, %p98
      %p100 = scmp.ne.s32.totalorder %s89, %s90
      %p101 = scmp.eq.s32.totalorder %s20, 0
      %p102 = por %p100, %p101
      %p103 = scmp.ne.s32.totalorder %s89, %s90
      %p104 = scmp.eq.s32.totalorder %s21, 7
      %p105 = por %p103, %p104
      %p107 = scmp.ne.s32.totalorder %s90, %s106
      %p108 = scmp.eq.s32.totalorder %s21, 0
      %p109 = por %p107, %p108
      %p110 = scmp.le.s32.totalorder 1, %s15
      %p111 = scmp.lt.s32.totalorder %s15, 9
      %p112 = pnand %p110, %p111
      %p113 = pneg %p112
      // Predicated region
      $region9: #{tpu_custom_call.1} parent=5 // pred_check
        _
      $region10: #{tpu_custom_call.1} parent=5 // pred_check_branch
        %115 = sbr.rel (%p112) target = $region12
      $region11: #{tpu_custom_call.1} parent=5 // pred_region
        %s116 = ssub.s32 %s15, 1
        // Predicated region
        $region13: #{tpu_custom_call.1} parent=11 // pred_check
          %p117 = pneg %p74
        $region14: #{tpu_custom_call.1} parent=11 // pred_check_branch
          %119 = sbr.rel (%p117) target = $region16
        $region15: #{tpu_custom_call.1} parent=11 // pred_region
          %s121 = ssub.s32 256, 256
          %122 = vsyncadd [#allocation8], %s121
          %s123 = sshll.u32 [#allocation7], 4
          %s124 = int_to_ptr.vmem [resolvable:$true] %s123
          %129 = dma.hbm_to_vmem [thread:$0]  %s1, 256, %s124, [#allocation8], 128, 128, 8
        $region16: #{tpu_custom_call.1} parent=11 // pred_fallthru
          _
      $region12: #{tpu_custom_call.1} parent=5 // pred_fallthru
        _
      %p130 = scmp.lt.s32.totalorder %s15, 8
      // Predicated region
      $region17: #{tpu_custom_call.1} parent=5 // pred_check
        %p131 = pneg %p130
      $region18: #{tpu_custom_call.1} parent=5 // pred_check_branch
        %133 = sbr.rel (%p131) target = $region20
      $region19: #{tpu_custom_call.1} parent=5 // pred_region
        // Predicated region
        $region21: #{tpu_custom_call.1} parent=19 // pred_check
          %p134 = pneg %p47
        $region22: #{tpu_custom_call.1} parent=19 // pred_check_branch
          %136 = sbr.rel (%p134) target = $region24
        $region23: #{tpu_custom_call.1} parent=19 // pred_region
          %s137 = sand.u32 %s37, 1
          %s138 = scalar_lea.sflag [#allocation5], %s137
          %s139 = sand.u32 %s37, 1
          %s140 = smul.addr %s139, 8
          %s141 = scalar_lea.vmem [#allocation4], %s140
          %s143 = ssub.s32 128, 128
          %144 = vsyncadd %s138, %s143
          %s145 = smul.addr %s22, 128
          %s146 = scalar_lea.hbm %s0, %s145
          %s148 = sshll.u32 %s141, 4
          %s149 = int_to_ptr.vmem [resolvable:$true] %s148
          %151 = dma.hbm_to_vmem [thread:$0]  %s146, 128, %s149, %s138
        $region24: #{tpu_custom_call.1} parent=19 // pred_fallthru
          _
      $region20: #{tpu_custom_call.1} parent=5 // pred_fallthru
        _
      %p152 = scmp.le.s32.totalorder 1, %s15
      %p153 = scmp.lt.s32.totalorder %s15, 9
      %p154 = pnand %p152, %p153
      %p155 = pneg %p154
      // Predicated region
      $region25: #{tpu_custom_call.1} parent=5 // pred_check
        _
      $region26: #{tpu_custom_call.1} parent=5 // pred_check_branch
        %157 = sbr.rel (%p154) target = $region28
      $region27: #{tpu_custom_call.1} parent=5 // pred_region
        %s158 = ssub.s32 %s15, 1
        %s159 = sand.u32 %s40, 1
        %s160 = scalar_lea.sflag [#allocation5], %s159
        %s161 = sand.u32 %s40, 1
        %s162 = smul.addr %s161, 8
        %s163 = scalar_lea.vmem [#allocation4], %s162
        // Predicated region
        $region29: #{tpu_custom_call.1} parent=27 // pred_check
          %p164 = pneg %p53
        $region30: #{tpu_custom_call.1} parent=27 // pred_check_branch
          %166 = sbr.rel (%p164) target = $region32
        $region31: #{tpu_custom_call.1} parent=27 // pred_region
          %167 = dma.done %s160, 128
        $region32: #{tpu_custom_call.1} parent=27 // pred_fallthru
          _
        // Predicated region
        $region33: #{tpu_custom_call.1} parent=27 // pred_check
          %p168 = pneg %p74
        $region34: #{tpu_custom_call.1} parent=27 // pred_check_branch
          %170 = sbr.rel (%p168) target = $region36
        $region35: #{tpu_custom_call.1} parent=27 // pred_region
          %171 = dma.done [#allocation8], 256
        $region36: #{tpu_custom_call.1} parent=27 // pred_fallthru
          _
        %s172 = sand.u32 %s40, 1
        %s173 = scalar_lea.sflag [#allocation5], %s172
        %s174 = sand.u32 %s40, 1
        %s175 = smul.addr %s174, 8
        %s176 = scalar_lea.vmem [#allocation4], %s175
        %p177 = pneg %p53
        %p178 = pneg %p50
        %p179 = pneg %p74
        %p180 = pneg %p71
        %p181 = pneg %p102
        %p182 = pneg %p99
        %s183 = sand.u32 %s89, 1
        %s184 = scalar_lea.sflag [#allocation6], %s183
        %s185 = sand.u32 %s89, 1
        %s186 = smul.addr %s185, 8
        %s187 = scalar_lea.vmem [#allocation9], %s186
        %p188 = scmp.eq.s32.totalorder %s25, 0
        // Predicated region
        $region37: #{tpu_custom_call.1} parent=27 // pred_check
          %p189 = pneg %p188
        $region38: #{tpu_custom_call.1} parent=27 // pred_check_branch
          %191 = sbr.rel (%p189) target = $region40
        $region39: #{tpu_custom_call.1} parent=27 // pred_region
          %192 = vst [vmem:[#allocation2] sm:$0xff] 0.0
          %193 = vst [vmem:[#allocation2 + $0x8] sm:$0xff] 0.0
          %194 = vst [vmem:[#allocation2 + $0x10] sm:$0xff] 0.0
          %195 = vst [vmem:[#allocation2 + $0x18] sm:$0xff] 0.0
          %196 = vst [vmem:[#allocation2 + $0x20] sm:$0xff] 0.0
          %197 = vst [vmem:[#allocation2 + $0x28] sm:$0xff] 0.0
          %198 = vst [vmem:[#allocation2 + $0x30] sm:$0xff] 0.0
          %199 = vst [vmem:[#allocation2 + $0x38] sm:$0xff] 0.0
          %200 = vst [vmem:[#allocation2 + $0x40] sm:$0xff] 0.0
          %201 = vst [vmem:[#allocation2 + $0x48] sm:$0xff] 0.0
          %202 = vst [vmem:[#allocation2 + $0x50] sm:$0xff] 0.0
          %203 = vst [vmem:[#allocation2 + $0x58] sm:$0xff] 0.0
          %204 = vst [vmem:[#allocation2 + $0x60] sm:$0xff] 0.0
          %205 = vst [vmem:[#allocation2 + $0x68] sm:$0xff] 0.0
          %206 = vst [vmem:[#allocation2 + $0x70] sm:$0xff] 0.0
          %207 = vst [vmem:[#allocation2 + $0x78] sm:$0xff] 0.0
          %208 = vst [vmem:[#allocation3] sm:$0xff] 0.0
        $region40: #{tpu_custom_call.1} parent=27 // pred_fallthru
          _
        %v209 = vld [vmem:[%s163] sm:$0xff]
        %v211 = vcombine.high %v209, %v209
        %v213 = vunpack.c.l.s4 1966171168
        %v214 = vunpack.c.0.s8 %v213
        %v215 = vlaneseq
        %v216 = vshrl.u32 %v215, 7
        %v217 = vsub.s32 %v214, %v216
        %v218 = vrot.slane %v209, %v217
        %v220 = vunpack.c.l.s4 1966171168
        %v221 = vunpack.c.0.s8 %v220
        %v222 = vlaneseq
        %v223 = vshrl.u32 %v222, 7
        %v224 = vsub.s32 %v221, %v223
        %v225 = vrot.slane %v211, %v224
        %v226 = vcombine.high %v218, %v218
        %v227 = vcombine.high %v225, %v225
        %v229 = vunpack.c.l.s4 1966171168
        %v230 = vunpack.c.0.s8 %v229
        %v231 = vlaneseq
        %v232 = vshrl.u32 %v231, 7
        %v233 = vsub.s32 %v230, %v232
        %v234 = vrot.slane %v218, %v233
        %v236 = vunpack.c.l.s4 1966171168
        %v237 = vunpack.c.0.s8 %v236
        %v238 = vlaneseq
        %v239 = vshrl.u32 %v238, 7
        %v240 = vsub.s32 %v237, %v239
        %v241 = vrot.slane %v225, %v240
        %v243 = vunpack.c.l.s4 1966171168
        %v244 = vunpack.c.0.s8 %v243
        %v245 = vlaneseq
        %v246 = vshrl.u32 %v245, 7
        %v247 = vsub.s32 %v244, %v246
        %v248 = vrot.slane %v226, %v247
        %v250 = vunpack.c.l.s4 1966171168
        %v251 = vunpack.c.0.s8 %v250
        %v252 = vlaneseq
        %v253 = vshrl.u32 %v252, 7
        %v254 = vsub.s32 %v251, %v253
        %v255 = vrot.slane %v227, %v254
        %v256 = vcombine.high %v234, %v234
        %v257 = vcombine.high %v241, %v241
        %v258 = vcombine.high %v248, %v248
        %v259 = vcombine.high %v255, %v255
        %v260 = vld [vmem:[#allocation3] sm:$0xff]
        %v262 = vcombine.high %v260, %v260
        %v264 = vunpack.c.l.s4 1966171168
        %v265 = vunpack.c.0.s8 %v264
        %v266 = vlaneseq
        %v267 = vshrl.u32 %v266, 7
        %v268 = vsub.s32 %v265, %v267
        %v269 = vrot.slane %v260, %v268
        %v271 = vunpack.c.l.s4 1966171168
        %v272 = vunpack.c.0.s8 %v271
        %v273 = vlaneseq
        %v274 = vshrl.u32 %v273, 7
        %v275 = vsub.s32 %v272, %v274
        %v276 = vrot.slane %v262, %v275
        %v277 = vcombine.high %v269, %v269
        %v278 = vcombine.high %v276, %v276
        %v280 = vunpack.c.l.s4 1966171168
        %v281 = vunpack.c.0.s8 %v280
        %v282 = vlaneseq
        %v283 = vshrl.u32 %v282, 7
        %v284 = vsub.s32 %v281, %v283
        %v285 = vrot.slane %v269, %v284
        %v287 = vunpack.c.l.s4 1966171168
        %v288 = vunpack.c.0.s8 %v287
        %v289 = vlaneseq
        %v290 = vshrl.u32 %v289, 7
        %v291 = vsub.s32 %v288, %v290
        %v292 = vrot.slane %v276, %v291
        %v294 = vunpack.c.l.s4 1966171168
        %v295 = vunpack.c.0.s8 %v294
        %v296 = vlaneseq
        %v297 = vshrl.u32 %v296, 7
        %v298 = vsub.s32 %v295, %v297
        %v299 = vrot.slane %v277, %v298
        %v301 = vunpack.c.l.s4 1966171168
        %v302 = vunpack.c.0.s8 %v301
        %v303 = vlaneseq
        %v304 = vshrl.u32 %v303, 7
        %v305 = vsub.s32 %v302, %v304
        %v306 = vrot.slane %v278, %v305
        %v307 = vcombine.high %v285, %v285
        %v308 = vcombine.high %v292, %v292
        %v309 = vcombine.high %v299, %v299
        %v310 = vcombine.high %v306, %v306
        %v311 = vld [vmem:[#allocation7] sm:$0xff]
        %v312 = vld [vmem:[#allocation2] sm:$0xff]
        %v313 = vld [vmem:[#allocation2 + $0x8] sm:$0xff]
        %v314 = vld [vmem:[#allocation2 + $0x10] sm:$0xff]
        %v315 = vld [vmem:[#allocation2 + $0x18] sm:$0xff]
        %v316 = vld [vmem:[#allocation2 + $0x20] sm:$0xff]
        %v317 = vld [vmem:[#allocation2 + $0x28] sm:$0xff]
        %v318 = vld [vmem:[#allocation2 + $0x30] sm:$0xff]
        %v319 = vld [vmem:[#allocation2 + $0x38] sm:$0xff]
        %v320 = vlaneseq
        %v321 = vshrl.u32 %v320, 7
        %v322 = vsub.s32 0, %v321
        %v323 = vrot.slane %v285, %v322
        %v324 = vlaneseq
        %v325 = vshrl.u32 %v324, 7
        %v326 = vsub.s32 0, %v325
        %v327 = vrot.slane %v299, %v326
        %v328 = vlaneseq
        %v329 = vshrl.u32 %v328, 7
        %v330 = vsub.s32 0, %v329
        %v331 = vrot.slane %v307, %v330
        %v332 = vlaneseq
        %v333 = vshrl.u32 %v332, 7
        %v334 = vsub.s32 0, %v333
        %v335 = vrot.slane %v309, %v334
        %v336 = vlaneseq
        %v337 = vshrl.u32 %v336, 7
        %v338 = vsub.s32 0, %v337
        %v339 = vrot.slane %v292, %v338
        %v340 = vlaneseq
        %v341 = vshrl.u32 %v340, 7
        %v342 = vsub.s32 0, %v341
        %v343 = vrot.slane %v306, %v342
        %v344 = vlaneseq
        %v345 = vshrl.u32 %v344, 7
        %v346 = vsub.s32 0, %v345
        %v347 = vrot.slane %v308, %v346
        %v348 = vlaneseq
        %v349 = vshrl.u32 %v348, 7
        %v350 = vsub.s32 0, %v349
        %v351 = vrot.slane %v310, %v350
        %v360 = vsub.f32 %v323, %v312
        %v361 = vsub.f32 %v327, %v313
        %v362 = vsub.f32 %v331, %v314
        %v363 = vsub.f32 %v335, %v315
        %v364 = vsub.f32 %v339, %v316
        %v365 = vsub.f32 %v343, %v317
        %v366 = vsub.f32 %v347, %v318
        %v367 = vsub.f32 %v351, %v319
        %v368 = vlaneseq
        %v369 = vshrl.u32 %v368, 7
        %v370 = vsub.s32 0, %v369
        %v371 = vrot.slane %v234, %v370
        %v372 = vlaneseq
        %v373 = vshrl.u32 %v372, 7
        %v374 = vsub.s32 0, %v373
        %v375 = vrot.slane %v248, %v374
        %v376 = vlaneseq
        %v377 = vshrl.u32 %v376, 7
        %v378 = vsub.s32 0, %v377
        %v379 = vrot.slane %v256, %v378
        %v380 = vlaneseq
        %v381 = vshrl.u32 %v380, 7
        %v382 = vsub.s32 0, %v381
        %v383 = vrot.slane %v258, %v382
        %v384 = vlaneseq
        %v385 = vshrl.u32 %v384, 7
        %v386 = vsub.s32 0, %v385
        %v387 = vrot.slane %v241, %v386
        %v388 = vlaneseq
        %v389 = vshrl.u32 %v388, 7
        %v390 = vsub.s32 0, %v389
        %v391 = vrot.slane %v255, %v390
        %v392 = vlaneseq
        %v393 = vshrl.u32 %v392, 7
        %v394 = vsub.s32 0, %v393
        %v395 = vrot.slane %v257, %v394
        %v396 = vlaneseq
        %v397 = vshrl.u32 %v396, 7
        %v398 = vsub.s32 0, %v397
        %v399 = vrot.slane %v259, %v398
        %v408 = vadd.f32 %v360, %v371
        %v409 = vadd.f32 %v361, %v375
        %v410 = vadd.f32 %v362, %v379
        %v411 = vadd.f32 %v363, %v383
        %v412 = vadd.f32 %v364, %v387
        %v413 = vadd.f32 %v365, %v391
        %v414 = vadd.f32 %v366, %v395
        %v415 = vadd.f32 %v367, %v399
        %v416 = vmul.f32 %v408, 0.5
        %v417 = vmul.f32 %v409, 0.5
        %v418 = vmul.f32 %v410, 0.5
        %v419 = vmul.f32 %v411, 0.5
        %v420 = vmul.f32 %v412, 0.5
        %v421 = vmul.f32 %v413, 0.5
        %v422 = vmul.f32 %v414, 0.5
        %v423 = vmul.f32 %v415, 0.5
        %v424 = vtanh.pop %v416
        %v425 = vtanh.pop %v417
        %v426 = vtanh.pop %v418
        %v427 = vtanh.pop %v419
        %v428 = vtanh.pop %v420
        %v429 = vtanh.pop %v421
        %v430 = vtanh.pop %v422
        %v431 = vtanh.pop %v423
        %vm432 = vcmp.gt.f32.partialorder %v311, 0.0
        %v433 = vsel %vm432, 1, 0
        %vm434 = vcmp.eq.s32.totalorder %v433, 1
        %v435 = vsel %vm434, %v424, 1.0
        %v436 = vsel %vm434, %v425, 1.0
        %v437 = vsel %vm434, %v426, 1.0
        %v438 = vsel %vm434, %v427, 1.0
        %v439 = vsel %vm434, %v428, 1.0
        %v440 = vsel %vm434, %v429, 1.0
        %v441 = vsel %vm434, %v430, 1.0
        %v442 = vsel %vm434, %v431, 1.0
        %vm443 = vcmp.lt.f32.partialorder %v435, 0.0
        %vm444 = vcmp.lt.f32.partialorder %v436, 0.0
        %vm445 = vcmp.lt.f32.partialorder %v437, 0.0
        %vm446 = vcmp.lt.f32.partialorder %v438, 0.0
        %vm447 = vcmp.lt.f32.partialorder %v439, 0.0
        %vm448 = vcmp.lt.f32.partialorder %v440, 0.0
        %vm449 = vcmp.lt.f32.partialorder %v441, 0.0
        %vm450 = vcmp.lt.f32.partialorder %v442, 0.0
        %v451 = vsel %vm443, -1.0, 1.0
        %v452 = vsel %vm444, -1.0, 1.0
        %v453 = vsel %vm445, -1.0, 1.0
        %v454 = vsel %vm446, -1.0, 1.0
        %v455 = vsel %vm447, -1.0, 1.0
        %v456 = vsel %vm448, -1.0, 1.0
        %v457 = vsel %vm449, -1.0, 1.0
        %v458 = vsel %vm450, -1.0, 1.0
        %v459 = vand.u32 2147483647, %v435
        %v460 = vand.u32 2147483647, %v436
        %v461 = vand.u32 2147483647, %v437
        %v462 = vand.u32 2147483647, %v438
        %v463 = vand.u32 2147483647, %v439
        %v464 = vand.u32 2147483647, %v440
        %v465 = vand.u32 2147483647, %v441
        %v466 = vand.u32 2147483647, %v442
        %v467 = vmax.f32 %v459, 1e-09
        %v468 = vmax.f32 %v460, 1e-09
        %v469 = vmax.f32 %v461, 1e-09
        %v470 = vmax.f32 %v462, 1e-09
        %v471 = vmax.f32 %v463, 1e-09
        %v472 = vmax.f32 %v464, 1e-09
        %v473 = vmax.f32 %v465, 1e-09
        %v474 = vmax.f32 %v466, 1e-09
        %v475 = vmul.f32 %v451, %v467
        %v476 = vmul.f32 %v452, %v468
        %v477 = vmul.f32 %v453, %v469
        %v478 = vmul.f32 %v454, %v470
        %v479 = vmul.f32 %v455, %v471
        %v480 = vmul.f32 %v456, %v472
        %v481 = vmul.f32 %v457, %v473
        %v482 = vmul.f32 %v458, %v474
        %483 = vrot.lane.b32.xlu0 %v475, 1
        %v484 = vpop.permute.xlu0 %483
        %485 = vrot.lane.b32.xlu0 %v476, 1
        %v486 = vpop.permute.xlu0 %485
        %487 = vrot.lane.b32.xlu0 %v477, 1
        %v488 = vpop.permute.xlu0 %487
        %489 = vrot.lane.b32.xlu0 %v478, 1
        %v490 = vpop.permute.xlu0 %489
        %491 = vrot.lane.b32.xlu0 %v479, 1
        %v492 = vpop.permute.xlu0 %491
        %493 = vrot.lane.b32.xlu0 %v480, 1
        %v494 = vpop.permute.xlu0 %493
        %495 = vrot.lane.b32.xlu0 %v481, 1
        %v496 = vpop.permute.xlu0 %495
        %497 = vrot.lane.b32.xlu0 %v482, 1
        %v498 = vpop.permute.xlu0 %497
        %v499 = vmul.f32 %v475, %v484
        %v500 = vmul.f32 %v476, %v486
        %v501 = vmul.f32 %v477, %v488
        %v502 = vmul.f32 %v478, %v490
        %v503 = vmul.f32 %v479, %v492
        %v504 = vmul.f32 %v480, %v494
        %v505 = vmul.f32 %v481, %v496
        %v506 = vmul.f32 %v482, %v498
        %507 = vrot.lane.b32.xlu0 %v499, 2
        %v508 = vpop.permute.xlu0 %507
        %509 = vrot.lane.b32.xlu0 %v500, 2
        %v510 = vpop.permute.xlu0 %509
        %511 = vrot.lane.b32.xlu0 %v501, 2
        %v512 = vpop.permute.xlu0 %511
        %513 = vrot.lane.b32.xlu0 %v502, 2
        %v514 = vpop.permute.xlu0 %513
        %515 = vrot.lane.b32.xlu0 %v503, 2
        %v516 = vpop.permute.xlu0 %515
        %517 = vrot.lane.b32.xlu0 %v504, 2
        %v518 = vpop.permute.xlu0 %517
        %519 = vrot.lane.b32.xlu0 %v505, 2
        %v520 = vpop.permute.xlu0 %519
        %521 = vrot.lane.b32.xlu0 %v506, 2
        %v522 = vpop.permute.xlu0 %521
        %v523 = vmul.f32 %v499, %v508
        %v524 = vmul.f32 %v500, %v510
        %v525 = vmul.f32 %v501, %v512
        %v526 = vmul.f32 %v502, %v514
        %v527 = vmul.f32 %v503, %v516
        %v528 = vmul.f32 %v504, %v518
        %v529 = vmul.f32 %v505, %v520
        %v530 = vmul.f32 %v506, %v522
        %531 = vrot.lane.b32.xlu0 %v523, 4
        %v532 = vpop.permute.xlu0 %531
        %533 = vrot.lane.b32.xlu0 %v524, 4
        %v534 = vpop.permute.xlu0 %533
        %535 = vrot.lane.b32.xlu0 %v525, 4
        %v536 = vpop.permute.xlu0 %535
        %537 = vrot.lane.b32.xlu0 %v526, 4
        %v538 = vpop.permute.xlu0 %537
        %539 = vrot.lane.b32.xlu0 %v527, 4
        %v540 = vpop.permute.xlu0 %539
        %541 = vrot.lane.b32.xlu0 %v528, 4
        %v542 = vpop.permute.xlu0 %541
        %543 = vrot.lane.b32.xlu0 %v529, 4
        %v544 = vpop.permute.xlu0 %543
        %545 = vrot.lane.b32.xlu0 %v530, 4
        %v546 = vpop.permute.xlu0 %545
        %v547 = vmul.f32 %v523, %v532
        %v548 = vmul.f32 %v524, %v534
        %v549 = vmul.f32 %v525, %v536
        %v550 = vmul.f32 %v526, %v538
        %v551 = vmul.f32 %v527, %v540
        %v552 = vmul.f32 %v528, %v542
        %v553 = vmul.f32 %v529, %v544
        %v554 = vmul.f32 %v530, %v546
        %555 = vrot.lane.b32.xlu0 %v547, 8
        %v556 = vpop.permute.xlu0 %555
        %557 = vrot.lane.b32.xlu0 %v548, 8
        %v558 = vpop.permute.xlu0 %557
        %559 = vrot.lane.b32.xlu0 %v549, 8
        %v560 = vpop.permute.xlu0 %559
        %561 = vrot.lane.b32.xlu0 %v550, 8
        %v562 = vpop.permute.xlu0 %561
        %563 = vrot.lane.b32.xlu0 %v551, 8
        %v564 = vpop.permute.xlu0 %563
        %565 = vrot.lane.b32.xlu0 %v552, 8
        %v566 = vpop.permute.xlu0 %565
        %567 = vrot.lane.b32.xlu0 %v553, 8
        %v568 = vpop.permute.xlu0 %567
        %569 = vrot.lane.b32.xlu0 %v554, 8
        %v570 = vpop.permute.xlu0 %569
        %v571 = vmul.f32 %v547, %v556
        %v572 = vmul.f32 %v548, %v558
        %v573 = vmul.f32 %v549, %v560
        %v574 = vmul.f32 %v550, %v562
        %v575 = vmul.f32 %v551, %v564
        %v576 = vmul.f32 %v552, %v566
        %v577 = vmul.f32 %v553, %v568
        %v578 = vmul.f32 %v554, %v570
        %579 = vrot.lane.b32.xlu0 %v571, 16
        %v580 = vpop.permute.xlu0 %579
        %581 = vrot.lane.b32.xlu0 %v572, 16
        %v582 = vpop.permute.xlu0 %581
        %583 = vrot.lane.b32.xlu0 %v573, 16
        %v584 = vpop.permute.xlu0 %583
        %585 = vrot.lane.b32.xlu0 %v574, 16
        %v586 = vpop.permute.xlu0 %585
        %587 = vrot.lane.b32.xlu0 %v575, 16
        %v588 = vpop.permute.xlu0 %587
        %589 = vrot.lane.b32.xlu0 %v576, 16
        %v590 = vpop.permute.xlu0 %589
        %591 = vrot.lane.b32.xlu0 %v577, 16
        %v592 = vpop.permute.xlu0 %591
        %593 = vrot.lane.b32.xlu0 %v578, 16
        %v594 = vpop.permute.xlu0 %593
        %v595 = vmul.f32 %v571, %v580
        %v596 = vmul.f32 %v572, %v582
        %v597 = vmul.f32 %v573, %v584
        %v598 = vmul.f32 %v574, %v586
        %v599 = vmul.f32 %v575, %v588
        %v600 = vmul.f32 %v576, %v590
        %v601 = vmul.f32 %v577, %v592
        %v602 = vmul.f32 %v578, %v594
        %603 = vrot.lane.b32.xlu0 %v595, 32
        %v604 = vpop.permute.xlu0 %603
        %605 = vrot.lane.b32.xlu0 %v596, 32
        %v606 = vpop.permute.xlu0 %605
        %607 = vrot.lane.b32.xlu0 %v597, 32
        %v608 = vpop.permute.xlu0 %607
        %609 = vrot.lane.b32.xlu0 %v598, 32
        %v610 = vpop.permute.xlu0 %609
        %611 = vrot.lane.b32.xlu0 %v599, 32
        %v612 = vpop.permute.xlu0 %611
        %613 = vrot.lane.b32.xlu0 %v600, 32
        %v614 = vpop.permute.xlu0 %613
        %615 = vrot.lane.b32.xlu0 %v601, 32
        %v616 = vpop.permute.xlu0 %615
        %617 = vrot.lane.b32.xlu0 %v602, 32
        %v618 = vpop.permute.xlu0 %617
        %v619 = vmul.f32 %v595, %v604
        %v620 = vmul.f32 %v596, %v606
        %v621 = vmul.f32 %v597, %v608
        %v622 = vmul.f32 %v598, %v610
        %v623 = vmul.f32 %v599, %v612
        %v624 = vmul.f32 %v600, %v614
        %v625 = vmul.f32 %v601, %v616
        %v626 = vmul.f32 %v602, %v618
        %627 = vrot.lane.b32.xlu0 %v619, 64
        %v628 = vpop.permute.xlu0 %627
        %629 = vrot.lane.b32.xlu0 %v620, 64
        %v630 = vpop.permute.xlu0 %629
        %631 = vrot.lane.b32.xlu0 %v621, 64
        %v632 = vpop.permute.xlu0 %631
        %633 = vrot.lane.b32.xlu0 %v622, 64
        %v634 = vpop.permute.xlu0 %633
        %635 = vrot.lane.b32.xlu0 %v623, 64
        %v636 = vpop.permute.xlu0 %635
        %637 = vrot.lane.b32.xlu0 %v624, 64
        %v638 = vpop.permute.xlu0 %637
        %639 = vrot.lane.b32.xlu0 %v625, 64
        %v640 = vpop.permute.xlu0 %639
        %641 = vrot.lane.b32.xlu0 %v626, 64
        %v642 = vpop.permute.xlu0 %641
        %v643 = vmul.f32 %v619, %v628
        %v644 = vmul.f32 %v620, %v630
        %v645 = vmul.f32 %v621, %v632
        %v646 = vmul.f32 %v622, %v634
        %v647 = vmul.f32 %v623, %v636
        %v648 = vmul.f32 %v624, %v638
        %v649 = vmul.f32 %v625, %v640
        %v650 = vmul.f32 %v626, %v642
        %vm651 = vcmp.lt.f32.partialorder %v643, 0.0
        %vm652 = vcmp.lt.f32.partialorder %v644, 0.0
        %vm653 = vcmp.lt.f32.partialorder %v645, 0.0
        %vm654 = vcmp.lt.f32.partialorder %v646, 0.0
        %vm655 = vcmp.lt.f32.partialorder %v647, 0.0
        %vm656 = vcmp.lt.f32.partialorder %v648, 0.0
        %vm657 = vcmp.lt.f32.partialorder %v649, 0.0
        %vm658 = vcmp.lt.f32.partialorder %v650, 0.0
        %v659 = vsel %vm651, -1.0, 1.0
        %v660 = vsel %vm652, -1.0, 1.0
        %v661 = vsel %vm653, -1.0, 1.0
        %v662 = vsel %vm654, -1.0, 1.0
        %v663 = vsel %vm655, -1.0, 1.0
        %v664 = vsel %vm656, -1.0, 1.0
        %v665 = vsel %vm657, -1.0, 1.0
        %v666 = vsel %vm658, -1.0, 1.0
        %v667 = vand.u32 2147483647, %v643
        %v668 = vand.u32 2147483647, %v644
        %v669 = vand.u32 2147483647, %v645
        %v670 = vand.u32 2147483647, %v646
        %v671 = vand.u32 2147483647, %v647
        %v672 = vand.u32 2147483647, %v648
        %v673 = vand.u32 2147483647, %v649
        %v674 = vand.u32 2147483647, %v650
        %v675 = vadd.f32 %v467, %v667
        %v676 = vadd.f32 %v468, %v668
        %v677 = vadd.f32 %v469, %v669
        %v678 = vadd.f32 %v470, %v670
        %v679 = vadd.f32 %v471, %v671
        %v680 = vadd.f32 %v472, %v672
        %v681 = vadd.f32 %v473, %v673
        %v682 = vadd.f32 %v474, %v674
        %v683 = vsub.f32 %v467, %v667
        %v684 = vsub.f32 %v468, %v668
        %v685 = vsub.f32 %v469, %v669
        %v686 = vsub.f32 %v470, %v670
        %v687 = vsub.f32 %v471, %v671
        %v688 = vsub.f32 %v472, %v672
        %v689 = vsub.f32 %v473, %v673
        %v690 = vsub.f32 %v474, %v674
        %v691 = vmul.f32 %v467, 1e-06
        %v692 = vmul.f32 %v468, 1e-06
        %v693 = vmul.f32 %v469, 1e-06
        %v694 = vmul.f32 %v470, 1e-06
        %v695 = vmul.f32 %v471, 1e-06
        %v696 = vmul.f32 %v472, 1e-06
        %v697 = vmul.f32 %v473, 1e-06
        %v698 = vmul.f32 %v474, 1e-06
        %v699 = vmax.f32 %v683, %v691
        %v700 = vmax.f32 %v684, %v692
        %v701 = vmax.f32 %v685, %v693
        %v702 = vmax.f32 %v686, %v694
        %v703 = vmax.f32 %v687, %v695
        %v704 = vmax.f32 %v688, %v696
        %v705 = vmax.f32 %v689, %v697
        %v706 = vmax.f32 %v690, %v698
        %v707 = vrcp.pop %v699
        %v708 = vrcp.pop %v700
        %v709 = vrcp.pop %v701
        %v710 = vrcp.pop %v702
        %v711 = vrcp.pop %v703
        %v712 = vrcp.pop %v704
        %v713 = vrcp.pop %v705
        %v714 = vrcp.pop %v706
        %v715 = vmul.f32 %v699, %v707
        %v716 = vmul.f32 %v700, %v708
        %v717 = vmul.f32 %v701, %v709
        %v718 = vmul.f32 %v702, %v710
        %v719 = vmul.f32 %v703, %v711
        %v720 = vmul.f32 %v704, %v712
        %v721 = vmul.f32 %v705, %v713
        %v722 = vmul.f32 %v706, %v714
        %v723 = vsub.f32 2.0, %v715
        %v724 = vsub.f32 2.0, %v716
        %v725 = vsub.f32 2.0, %v717
        %v726 = vsub.f32 2.0, %v718
        %v727 = vsub.f32 2.0, %v719
        %v728 = vsub.f32 2.0, %v720
        %v729 = vsub.f32 2.0, %v721
        %v730 = vsub.f32 2.0, %v722
        %v731 = vmul.f32 %v707, %v723
        %v732 = vmul.f32 %v708, %v724
        %v733 = vmul.f32 %v709, %v725
        %v734 = vmul.f32 %v710, %v726
        %v735 = vmul.f32 %v711, %v727
        %v736 = vmul.f32 %v712, %v728
        %v737 = vmul.f32 %v713, %v729
        %v738 = vmul.f32 %v714, %v730
        %v739 = vmul.f32 %v659, %v451
        %v740 = vmul.f32 %v660, %v452
        %v741 = vmul.f32 %v661, %v453
        %v742 = vmul.f32 %v662, %v454
        %v743 = vmul.f32 %v663, %v455
        %v744 = vmul.f32 %v664, %v456
        %v745 = vmul.f32 %v665, %v457
        %v746 = vmul.f32 %v666, %v458
        %v747 = vmul.f32 %v675, %v731
        %v748 = vmul.f32 %v676, %v732
        %v749 = vmul.f32 %v677, %v733
        %v750 = vmul.f32 %v678, %v734
        %v751 = vmul.f32 %v679, %v735
        %v752 = vmul.f32 %v680, %v736
        %v753 = vmul.f32 %v681, %v737
        %v754 = vmul.f32 %v682, %v738
        %v755 = vlog2.pop %v747
        %v756 = vmul.f32 %v755, 0.6931472
        %v757 = vlog2.pop %v748
        %v758 = vmul.f32 %v757, 0.6931472
        %v759 = vlog2.pop %v749
        %v760 = vmul.f32 %v759, 0.6931472
        %v761 = vlog2.pop %v750
        %v762 = vmul.f32 %v761, 0.6931472
        %v763 = vlog2.pop %v751
        %v764 = vmul.f32 %v763, 0.6931472
        %v765 = vlog2.pop %v752
        %v766 = vmul.f32 %v765, 0.6931472
        %v767 = vlog2.pop %v753
        %v768 = vmul.f32 %v767, 0.6931472
        %v769 = vlog2.pop %v754
        %v770 = vmul.f32 %v769, 0.6931472
        %v771 = vmul.f32 %v739, %v756
        %v772 = vmul.f32 %v740, %v758
        %v773 = vmul.f32 %v741, %v760
        %v774 = vmul.f32 %v742, %v762
        %v775 = vmul.f32 %v743, %v764
        %v776 = vmul.f32 %v744, %v766
        %v777 = vmul.f32 %v745, %v768
        %v778 = vmul.f32 %v746, %v770
        %v779 = vmul.f32 %v771, %v311
        %v780 = vmul.f32 %v772, %v311
        %v781 = vmul.f32 %v773, %v311
        %v782 = vmul.f32 %v774, %v311
        %v783 = vmul.f32 %v775, %v311
        %v784 = vmul.f32 %v776, %v311
        %v785 = vmul.f32 %v777, %v311
        %v786 = vmul.f32 %v778, %v311
        %787 = vst [vmem:[#allocation2] sm:$0xff] %v779
        %788 = vst [vmem:[#allocation2 + $0x8] sm:$0xff] %v780
        %789 = vst [vmem:[#allocation2 + $0x10] sm:$0xff] %v781
        %790 = vst [vmem:[#allocation2 + $0x18] sm:$0xff] %v782
        %791 = vst [vmem:[#allocation2 + $0x20] sm:$0xff] %v783
        %792 = vst [vmem:[#allocation2 + $0x28] sm:$0xff] %v784
        %793 = vst [vmem:[#allocation2 + $0x30] sm:$0xff] %v785
        %794 = vst [vmem:[#allocation2 + $0x38] sm:$0xff] %v786
        %v795 = vrot.slane %v779, 4
        %v796 = vadd.f32 %v779, %v795
        %v797 = vrot.slane %v796, 2
        %v798 = vadd.f32 %v796, %v797
        %v799 = vrot.slane %v798, 1
        %v800 = vadd.f32 %v798, %v799
        %v801 = vrot.slane %v780, 4
        %v802 = vadd.f32 %v780, %v801
        %v803 = vrot.slane %v802, 2
        %v804 = vadd.f32 %v802, %v803
        %v805 = vrot.slane %v804, 1
        %v806 = vadd.f32 %v804, %v805
        %v807 = vrot.slane %v781, 4
        %v808 = vadd.f32 %v781, %v807
        %v809 = vrot.slane %v808, 2
        %v810 = vadd.f32 %v808, %v809
        %v811 = vrot.slane %v810, 1
        %v812 = vadd.f32 %v810, %v811
        %v813 = vrot.slane %v782, 4
        %v814 = vadd.f32 %v782, %v813
        %v815 = vrot.slane %v814, 2
        %v816 = vadd.f32 %v814, %v815
        %v817 = vrot.slane %v816, 1
        %v818 = vadd.f32 %v816, %v817
        %v819 = vrot.slane %v783, 4
        %v820 = vadd.f32 %v783, %v819
        %v821 = vrot.slane %v820, 2
        %v822 = vadd.f32 %v820, %v821
        %v823 = vrot.slane %v822, 1
        %v824 = vadd.f32 %v822, %v823
        %v825 = vrot.slane %v784, 4
        %v826 = vadd.f32 %v784, %v825
        %v827 = vrot.slane %v826, 2
        %v828 = vadd.f32 %v826, %v827
        %v829 = vrot.slane %v828, 1
        %v830 = vadd.f32 %v828, %v829
        %v831 = vrot.slane %v785, 4
        %v832 = vadd.f32 %v785, %v831
        %v833 = vrot.slane %v832, 2
        %v834 = vadd.f32 %v832, %v833
        %v835 = vrot.slane %v834, 1
        %v836 = vadd.f32 %v834, %v835
        %v837 = vrot.slane %v786, 4
        %v838 = vadd.f32 %v786, %v837
        %v839 = vrot.slane %v838, 2
        %v840 = vadd.f32 %v838, %v839
        %v841 = vrot.slane %v840, 1
        %v842 = vadd.f32 %v840, %v841
        %v843 = vadd.f32 %v800, 0.0
        %v844 = vadd.f32 %v806, 0.0
        %v845 = vadd.f32 %v812, 0.0
        %v846 = vadd.f32 %v818, 0.0
        %v847 = vadd.f32 %v824, 0.0
        %v848 = vadd.f32 %v830, 0.0
        %v849 = vadd.f32 %v836, 0.0
        %v850 = vadd.f32 %v842, 0.0
        %s851 = scalar_lea.vmem [#allocation7], 8
        %v852 = vld [vmem:[%s851] sm:$0xff]
        %s853 = scalar_lea.vmem [#allocation2], 64
        %v854 = vld [vmem:[%s853] sm:$0xff]
        %v855 = vld [vmem:[%s853 + $0x8] sm:$0xff]
        %v856 = vld [vmem:[%s853 + $0x10] sm:$0xff]
        %v857 = vld [vmem:[%s853 + $0x18] sm:$0xff]
        %v858 = vld [vmem:[%s853 + $0x20] sm:$0xff]
        %v859 = vld [vmem:[%s853 + $0x28] sm:$0xff]
        %v860 = vld [vmem:[%s853 + $0x30] sm:$0xff]
        %v861 = vld [vmem:[%s853 + $0x38] sm:$0xff]
        %v862 = vsub.f32 %v323, %v854
        %v863 = vsub.f32 %v327, %v855
        %v864 = vsub.f32 %v331, %v856
        %v865 = vsub.f32 %v335, %v857
        %v866 = vsub.f32 %v339, %v858
        %v867 = vsub.f32 %v343, %v859
        %v868 = vsub.f32 %v347, %v860
        %v869 = vsub.f32 %v351, %v861
        %v870 = vadd.f32 %v862, %v371
        %v871 = vadd.f32 %v863, %v375
        %v872 = vadd.f32 %v864, %v379
        %v873 = vadd.f32 %v865, %v383
        %v874 = vadd.f32 %v866, %v387
        %v875 = vadd.f32 %v867, %v391
        %v876 = vadd.f32 %v868, %v395
        %v877 = vadd.f32 %v869, %v399
        %v878 = vmul.f32 %v870, 0.5
        %v879 = vmul.f32 %v871, 0.5
        %v880 = vmul.f32 %v872, 0.5
        %v881 = vmul.f32 %v873, 0.5
        %v882 = vmul.f32 %v874, 0.5
        %v883 = vmul.f32 %v875, 0.5
        %v884 = vmul.f32 %v876, 0.5
        %v885 = vmul.f32 %v877, 0.5
        %v886 = vtanh.pop %v878
        %v887 = vtanh.pop %v879
        %v888 = vtanh.pop %v880
        %v889 = vtanh.pop %v881
        %v890 = vtanh.pop %v882
        %v891 = vtanh.pop %v883
        %v892 = vtanh.pop %v884
        %v893 = vtanh.pop %v885
        %vm894 = vcmp.gt.f32.partialorder %v852, 0.0
        %v895 = vsel %vm894, 1, 0
        %vm896 = vcmp.eq.s32.totalorder %v895, 1
        %v897 = vsel %vm896, %v886, 1.0
        %v898 = vsel %vm896, %v887, 1.0
        %v899 = vsel %vm896, %v888, 1.0
        %v900 = vsel %vm896, %v889, 1.0
        %v901 = vsel %vm896, %v890, 1.0
        %v902 = vsel %vm896, %v891, 1.0
        %v903 = vsel %vm896, %v892, 1.0
        %v904 = vsel %vm896, %v893, 1.0
        %vm905 = vcmp.lt.f32.partialorder %v897, 0.0
        %vm906 = vcmp.lt.f32.partialorder %v898, 0.0
        %vm907 = vcmp.lt.f32.partialorder %v899, 0.0
        %vm908 = vcmp.lt.f32.partialorder %v900, 0.0
        %vm909 = vcmp.lt.f32.partialorder %v901, 0.0
        %vm910 = vcmp.lt.f32.partialorder %v902, 0.0
        %vm911 = vcmp.lt.f32.partialorder %v903, 0.0
        %vm912 = vcmp.lt.f32.partialorder %v904, 0.0
        %v913 = vsel %vm905, -1.0, 1.0
        %v914 = vsel %vm906, -1.0, 1.0
        %v915 = vsel %vm907, -1.0, 1.0
        %v916 = vsel %vm908, -1.0, 1.0
        %v917 = vsel %vm909, -1.0, 1.0
        %v918 = vsel %vm910, -1.0, 1.0
        %v919 = vsel %vm911, -1.0, 1.0
        %v920 = vsel %vm912, -1.0, 1.0
        %v921 = vand.u32 2147483647, %v897
        %v922 = vand.u32 2147483647, %v898
        %v923 = vand.u32 2147483647, %v899
        %v924 = vand.u32 2147483647, %v900
        %v925 = vand.u32 2147483647, %v901
        %v926 = vand.u32 2147483647, %v902
        %v927 = vand.u32 2147483647, %v903
        %v928 = vand.u32 2147483647, %v904
        %v929 = vmax.f32 %v921, 1e-09
        %v930 = vmax.f32 %v922, 1e-09
        %v931 = vmax.f32 %v923, 1e-09
        %v932 = vmax.f32 %v924, 1e-09
        %v933 = vmax.f32 %v925, 1e-09
        %v934 = vmax.f32 %v926, 1e-09
        %v935 = vmax.f32 %v927, 1e-09
        %v936 = vmax.f32 %v928, 1e-09
        %v937 = vmul.f32 %v913, %v929
        %v938 = vmul.f32 %v914, %v930
        %v939 = vmul.f32 %v915, %v931
        %v940 = vmul.f32 %v916, %v932
        %v941 = vmul.f32 %v917, %v933
        %v942 = vmul.f32 %v918, %v934
        %v943 = vmul.f32 %v919, %v935
        %v944 = vmul.f32 %v920, %v936
        %945 = vrot.lane.b32.xlu0 %v937, 1
        %v946 = vpop.permute.xlu0 %945
        %947 = vrot.lane.b32.xlu0 %v938, 1
        %v948 = vpop.permute.xlu0 %947
        %949 = vrot.lane.b32.xlu0 %v939, 1
        %v950 = vpop.permute.xlu0 %949
        %951 = vrot.lane.b32.xlu0 %v940, 1
        %v952 = vpop.permute.xlu0 %951
        %953 = vrot.lane.b32.xlu0 %v941, 1
        %v954 = vpop.permute.xlu0 %953
        %955 = vrot.lane.b32.xlu0 %v942, 1
        %v956 = vpop.permute.xlu0 %955
        %957 = vrot.lane.b32.xlu0 %v943, 1
        %v958 = vpop.permute.xlu0 %957
        %959 = vrot.lane.b32.xlu0 %v944, 1
        %v960 = vpop.permute.xlu0 %959
        %v961 = vmul.f32 %v937, %v946
        %v962 = vmul.f32 %v938, %v948
        %v963 = vmul.f32 %v939, %v950
        %v964 = vmul.f32 %v940, %v952
        %v965 = vmul.f32 %v941, %v954
        %v966 = vmul.f32 %v942, %v956
        %v967 = vmul.f32 %v943, %v958
        %v968 = vmul.f32 %v944, %v960
        %969 = vrot.lane.b32.xlu0 %v961, 2
        %v970 = vpop.permute.xlu0 %969
        %971 = vrot.lane.b32.xlu0 %v962, 2
        %v972 = vpop.permute.xlu0 %971
        %973 = vrot.lane.b32.xlu0 %v963, 2
        %v974 = vpop.permute.xlu0 %973
        %975 = vrot.lane.b32.xlu0 %v964, 2
        %v976 = vpop.permute.xlu0 %975
        %977 = vrot.lane.b32.xlu0 %v965, 2
        %v978 = vpop.permute.xlu0 %977
        %979 = vrot.lane.b32.xlu0 %v966, 2
        %v980 = vpop.permute.xlu0 %979
        %981 = vrot.lane.b32.xlu0 %v967, 2
        %v982 = vpop.permute.xlu0 %981
        %983 = vrot.lane.b32.xlu0 %v968, 2
        %v984 = vpop.permute.xlu0 %983
        %v985 = vmul.f32 %v961, %v970
        %v986 = vmul.f32 %v962, %v972
        %v987 = vmul.f32 %v963, %v974
        %v988 = vmul.f32 %v964, %v976
        %v989 = vmul.f32 %v965, %v978
        %v990 = vmul.f32 %v966, %v980
        %v991 = vmul.f32 %v967, %v982
        %v992 = vmul.f32 %v968, %v984
        %993 = vrot.lane.b32.xlu0 %v985, 4
        %v994 = vpop.permute.xlu0 %993
        %995 = vrot.lane.b32.xlu0 %v986, 4
        %v996 = vpop.permute.xlu0 %995
        %997 = vrot.lane.b32.xlu0 %v987, 4
        %v998 = vpop.permute.xlu0 %997
        %999 = vrot.lane.b32.xlu0 %v988, 4
        %v1000 = vpop.permute.xlu0 %999
        %1001 = vrot.lane.b32.xlu0 %v989, 4
        %v1002 = vpop.permute.xlu0 %1001
        %1003 = vrot.lane.b32.xlu0 %v990, 4
        %v1004 = vpop.permute.xlu0 %1003
        %1005 = vrot.lane.b32.xlu0 %v991, 4
        %v1006 = vpop.permute.xlu0 %1005
        %1007 = vrot.lane.b32.xlu0 %v992, 4
        %v1008 = vpop.permute.xlu0 %1007
        %v1009 = vmul.f32 %v985, %v994
        %v1010 = vmul.f32 %v986, %v996
        %v1011 = vmul.f32 %v987, %v998
        %v1012 = vmul.f32 %v988, %v1000
        %v1013 = vmul.f32 %v989, %v1002
        %v1014 = vmul.f32 %v990, %v1004
        %v1015 = vmul.f32 %v991, %v1006
        %v1016 = vmul.f32 %v992, %v1008
        %1017 = vrot.lane.b32.xlu0 %v1009, 8
        %v1018 = vpop.permute.xlu0 %1017
        %1019 = vrot.lane.b32.xlu0 %v1010, 8
        %v1020 = vpop.permute.xlu0 %1019
        %1021 = vrot.lane.b32.xlu0 %v1011, 8
        %v1022 = vpop.permute.xlu0 %1021
        %1023 = vrot.lane.b32.xlu0 %v1012, 8
        %v1024 = vpop.permute.xlu0 %1023
        %1025 = vrot.lane.b32.xlu0 %v1013, 8
        %v1026 = vpop.permute.xlu0 %1025
        %1027 = vrot.lane.b32.xlu0 %v1014, 8
        %v1028 = vpop.permute.xlu0 %1027
        %1029 = vrot.lane.b32.xlu0 %v1015, 8
        %v1030 = vpop.permute.xlu0 %1029
        %1031 = vrot.lane.b32.xlu0 %v1016, 8
        %v1032 = vpop.permute.xlu0 %1031
        %v1033 = vmul.f32 %v1009, %v1018
        %v1034 = vmul.f32 %v1010, %v1020
        %v1035 = vmul.f32 %v1011, %v1022
        %v1036 = vmul.f32 %v1012, %v1024
        %v1037 = vmul.f32 %v1013, %v1026
        %v1038 = vmul.f32 %v1014, %v1028
        %v1039 = vmul.f32 %v1015, %v1030
        %v1040 = vmul.f32 %v1016, %v1032
        %1041 = vrot.lane.b32.xlu0 %v1033, 16
        %v1042 = vpop.permute.xlu0 %1041
        %1043 = vrot.lane.b32.xlu0 %v1034, 16
        %v1044 = vpop.permute.xlu0 %1043
        %1045 = vrot.lane.b32.xlu0 %v1035, 16
        %v1046 = vpop.permute.xlu0 %1045
        %1047 = vrot.lane.b32.xlu0 %v1036, 16
        %v1048 = vpop.permute.xlu0 %1047
        %1049 = vrot.lane.b32.xlu0 %v1037, 16
        %v1050 = vpop.permute.xlu0 %1049
        %1051 = vrot.lane.b32.xlu0 %v1038, 16
        %v1052 = vpop.permute.xlu0 %1051
        %1053 = vrot.lane.b32.xlu0 %v1039, 16
        %v1054 = vpop.permute.xlu0 %1053
        %1055 = vrot.lane.b32.xlu0 %v1040, 16
        %v1056 = vpop.permute.xlu0 %1055
        %v1057 = vmul.f32 %v1033, %v1042
        %v1058 = vmul.f32 %v1034, %v1044
        %v1059 = vmul.f32 %v1035, %v1046
        %v1060 = vmul.f32 %v1036, %v1048
        %v1061 = vmul.f32 %v1037, %v1050
        %v1062 = vmul.f32 %v1038, %v1052
        %v1063 = vmul.f32 %v1039, %v1054
        %v1064 = vmul.f32 %v1040, %v1056
        %1065 = vrot.lane.b32.xlu0 %v1057, 32
        %v1066 = vpop.permute.xlu0 %1065
        %1067 = vrot.lane.b32.xlu0 %v1058, 32
        %v1068 = vpop.permute.xlu0 %1067
        %1069 = vrot.lane.b32.xlu0 %v1059, 32
        %v1070 = vpop.permute.xlu0 %1069
        %1071 = vrot.lane.b32.xlu0 %v1060, 32
        %v1072 = vpop.permute.xlu0 %1071
        %1073 = vrot.lane.b32.xlu0 %v1061, 32
        %v1074 = vpop.permute.xlu0 %1073
        %1075 = vrot.lane.b32.xlu0 %v1062, 32
        %v1076 = vpop.permute.xlu0 %1075
        %1077 = vrot.lane.b32.xlu0 %v1063, 32
        %v1078 = vpop.permute.xlu0 %1077
        %1079 = vrot.lane.b32.xlu0 %v1064, 32
        %v1080 = vpop.permute.xlu0 %1079
        %v1081 = vmul.f32 %v1057, %v1066
        %v1082 = vmul.f32 %v1058, %v1068
        %v1083 = vmul.f32 %v1059, %v1070
        %v1084 = vmul.f32 %v1060, %v1072
        %v1085 = vmul.f32 %v1061, %v1074
        %v1086 = vmul.f32 %v1062, %v1076
        %v1087 = vmul.f32 %v1063, %v1078
        %v1088 = vmul.f32 %v1064, %v1080
        %1089 = vrot.lane.b32.xlu0 %v1081, 64
        %v1090 = vpop.permute.xlu0 %1089
        %1091 = vrot.lane.b32.xlu0 %v1082, 64
        %v1092 = vpop.permute.xlu0 %1091
        %1093 = vrot.lane.b32.xlu0 %v1083, 64
        %v1094 = vpop.permute.xlu0 %1093
        %1095 = vrot.lane.b32.xlu0 %v1084, 64
        %v1096 = vpop.permute.xlu0 %1095
        %1097 = vrot.lane.b32.xlu0 %v1085, 64
        %v1098 = vpop.permute.xlu0 %1097
        %1099 = vrot.lane.b32.xlu0 %v1086, 64
        %v1100 = vpop.permute.xlu0 %1099
        %1101 = vrot.lane.b32.xlu0 %v1087, 64
        %v1102 = vpop.permute.xlu0 %1101
        %1103 = vrot.lane.b32.xlu0 %v1088, 64
        %v1104 = vpop.permute.xlu0 %1103
        %v1105 = vmul.f32 %v1081, %v1090
        %v1106 = vmul.f32 %v1082, %v1092
        %v1107 = vmul.f32 %v1083, %v1094
        %v1108 = vmul.f32 %v1084, %v1096
        %v1109 = vmul.f32 %v1085, %v1098
        %v1110 = vmul.f32 %v1086, %v1100
        %v1111 = vmul.f32 %v1087, %v1102
        %v1112 = vmul.f32 %v1088, %v1104
        %vm1113 = vcmp.lt.f32.partialorder %v1105, 0.0
        %vm1114 = vcmp.lt.f32.partialorder %v1106, 0.0
        %vm1115 = vcmp.lt.f32.partialorder %v1107, 0.0
        %vm1116 = vcmp.lt.f32.partialorder %v1108, 0.0
        %vm1117 = vcmp.lt.f32.partialorder %v1109, 0.0
        %vm1118 = vcmp.lt.f32.partialorder %v1110, 0.0
        %vm1119 = vcmp.lt.f32.partialorder %v1111, 0.0
        %vm1120 = vcmp.lt.f32.partialorder %v1112, 0.0
        %v1121 = vsel %vm1113, -1.0, 1.0
        %v1122 = vsel %vm1114, -1.0, 1.0
        %v1123 = vsel %vm1115, -1.0, 1.0
        %v1124 = vsel %vm1116, -1.0, 1.0
        %v1125 = vsel %vm1117, -1.0, 1.0
        %v1126 = vsel %vm1118, -1.0, 1.0
        %v1127 = vsel %vm1119, -1.0, 1.0
        %v1128 = vsel %vm1120, -1.0, 1.0
        %v1129 = vand.u32 2147483647, %v1105
        %v1130 = vand.u32 2147483647, %v1106
        %v1131 = vand.u32 2147483647, %v1107
        %v1132 = vand.u32 2147483647, %v1108
        %v1133 = vand.u32 2147483647, %v1109
        %v1134 = vand.u32 2147483647, %v1110
        %v1135 = vand.u32 2147483647, %v1111
        %v1136 = vand.u32 2147483647, %v1112
        %v1137 = vadd.f32 %v929, %v1129
        %v1138 = vadd.f32 %v930, %v1130
        %v1139 = vadd.f32 %v931, %v1131
        %v1140 = vadd.f32 %v932, %v1132
        %v1141 = vadd.f32 %v933, %v1133
        %v1142 = vadd.f32 %v934, %v1134
        %v1143 = vadd.f32 %v935, %v1135
        %v1144 = vadd.f32 %v936, %v1136
        %v1145 = vsub.f32 %v929, %v1129
        %v1146 = vsub.f32 %v930, %v1130
        %v1147 = vsub.f32 %v931, %v1131
        %v1148 = vsub.f32 %v932, %v1132
        %v1149 = vsub.f32 %v933, %v1133
        %v1150 = vsub.f32 %v934, %v1134
        %v1151 = vsub.f32 %v935, %v1135
        %v1152 = vsub.f32 %v936, %v1136
        %v1153 = vmul.f32 %v929, 1e-06
        %v1154 = vmul.f32 %v930, 1e-06
        %v1155 = vmul.f32 %v931, 1e-06
        %v1156 = vmul.f32 %v932, 1e-06
        %v1157 = vmul.f32 %v933, 1e-06
        %v1158 = vmul.f32 %v934, 1e-06
        %v1159 = vmul.f32 %v935, 1e-06
        %v1160 = vmul.f32 %v936, 1e-06
        %v1161 = vmax.f32 %v1145, %v1153
        %v1162 = vmax.f32 %v1146, %v1154
        %v1163 = vmax.f32 %v1147, %v1155
        %v1164 = vmax.f32 %v1148, %v1156
        %v1165 = vmax.f32 %v1149, %v1157
        %v1166 = vmax.f32 %v1150, %v1158
        %v1167 = vmax.f32 %v1151, %v1159
        %v1168 = vmax.f32 %v1152, %v1160
        %v1169 = vrcp.pop %v1161
        %v1170 = vrcp.pop %v1162
        %v1171 = vrcp.pop %v1163
        %v1172 = vrcp.pop %v1164
        %v1173 = vrcp.pop %v1165
        %v1174 = vrcp.pop %v1166
        %v1175 = vrcp.pop %v1167
        %v1176 = vrcp.pop %v1168
        %v1177 = vmul.f32 %v1161, %v1169
        %v1178 = vmul.f32 %v1162, %v1170
        %v1179 = vmul.f32 %v1163, %v1171
        %v1180 = vmul.f32 %v1164, %v1172
        %v1181 = vmul.f32 %v1165, %v1173
        %v1182 = vmul.f32 %v1166, %v1174
        %v1183 = vmul.f32 %v1167, %v1175
        %v1184 = vmul.f32 %v1168, %v1176
        %v1185 = vsub.f32 2.0, %v1177
        %v1186 = vsub.f32 2.0, %v1178
        %v1187 = vsub.f32 2.0, %v1179
        %v1188 = vsub.f32 2.0, %v1180
        %v1189 = vsub.f32 2.0, %v1181
        %v1190 = vsub.f32 2.0, %v1182
        %v1191 = vsub.f32 2.0, %v1183
        %v1192 = vsub.f32 2.0, %v1184
        %v1193 = vmul.f32 %v1169, %v1185
        %v1194 = vmul.f32 %v1170, %v1186
        %v1195 = vmul.f32 %v1171, %v1187
        %v1196 = vmul.f32 %v1172, %v1188
        %v1197 = vmul.f32 %v1173, %v1189
        %v1198 = vmul.f32 %v1174, %v1190
        %v1199 = vmul.f32 %v1175, %v1191
        %v1200 = vmul.f32 %v1176, %v1192
        %v1201 = vmul.f32 %v1121, %v913
        %v1202 = vmul.f32 %v1122, %v914
        %v1203 = vmul.f32 %v1123, %v915
        %v1204 = vmul.f32 %v1124, %v916
        %v1205 = vmul.f32 %v1125, %v917
        %v1206 = vmul.f32 %v1126, %v918
        %v1207 = vmul.f32 %v1127, %v919
        %v1208 = vmul.f32 %v1128, %v920
        %v1209 = vmul.f32 %v1137, %v1193
        %v1210 = vmul.f32 %v1138, %v1194
        %v1211 = vmul.f32 %v1139, %v1195
        %v1212 = vmul.f32 %v1140, %v1196
        %v1213 = vmul.f32 %v1141, %v1197
        %v1214 = vmul.f32 %v1142, %v1198
        %v1215 = vmul.f32 %v1143, %v1199
        %v1216 = vmul.f32 %v1144, %v1200
        %v1217 = vlog2.pop %v1209
        %v1218 = vmul.f32 %v1217, 0.6931472
        %v1219 = vlog2.pop %v1210
        %v1220 = vmul.f32 %v1219, 0.6931472
        %v1221 = vlog2.pop %v1211
        %v1222 = vmul.f32 %v1221, 0.6931472
        %v1223 = vlog2.pop %v1212
        %v1224 = vmul.f32 %v1223, 0.6931472
        %v1225 = vlog2.pop %v1213
        %v1226 = vmul.f32 %v1225, 0.6931472
        %v1227 = vlog2.pop %v1214
        %v1228 = vmul.f32 %v1227, 0.6931472
        %v1229 = vlog2.pop %v1215
        %v1230 = vmul.f32 %v1229, 0.6931472
        %v1231 = vlog2.pop %v1216
        %v1232 = vmul.f32 %v1231, 0.6931472
        %v1233 = vmul.f32 %v1201, %v1218
        %v1234 = vmul.f32 %v1202, %v1220
        %v1235 = vmul.f32 %v1203, %v1222
        %v1236 = vmul.f32 %v1204, %v1224
        %v1237 = vmul.f32 %v1205, %v1226
        %v1238 = vmul.f32 %v1206, %v1228
        %v1239 = vmul.f32 %v1207, %v1230
        %v1240 = vmul.f32 %v1208, %v1232
        %v1241 = vmul.f32 %v1233, %v852
        %v1242 = vmul.f32 %v1234, %v852
        %v1243 = vmul.f32 %v1235, %v852
        %v1244 = vmul.f32 %v1236, %v852
        %v1245 = vmul.f32 %v1237, %v852
        %v1246 = vmul.f32 %v1238, %v852
        %v1247 = vmul.f32 %v1239, %v852
        %v1248 = vmul.f32 %v1240, %v852
        %1249 = vst [vmem:[%s853] sm:$0xff] %v1241
        %1250 = vst [vmem:[%s853 + $0x8] sm:$0xff] %v1242
        %1251 = vst [vmem:[%s853 + $0x10] sm:$0xff] %v1243
        %1252 = vst [vmem:[%s853 + $0x18] sm:$0xff] %v1244
        %1253 = vst [vmem:[%s853 + $0x20] sm:$0xff] %v1245
        %1254 = vst [vmem:[%s853 + $0x28] sm:$0xff] %v1246
        %1255 = vst [vmem:[%s853 + $0x30] sm:$0xff] %v1247
        %1256 = vst [vmem:[%s853 + $0x38] sm:$0xff] %v1248
        %v1257 = vrot.slane %v1241, 4
        %v1258 = vadd.f32 %v1241, %v1257
        %v1259 = vrot.slane %v1258, 2
        %v1260 = vadd.f32 %v1258, %v1259
        %v1261 = vrot.slane %v1260, 1
        %v1262 = vadd.f32 %v1260, %v1261
        %v1263 = vrot.slane %v1242, 4
        %v1264 = vadd.f32 %v1242, %v1263
        %v1265 = vrot.slane %v1264, 2
        %v1266 = vadd.f32 %v1264, %v1265
        %v1267 = vrot.slane %v1266, 1
        %v1268 = vadd.f32 %v1266, %v1267
        %v1269 = vrot.slane %v1243, 4
        %v1270 = vadd.f32 %v1243, %v1269
        %v1271 = vrot.slane %v1270, 2
        %v1272 = vadd.f32 %v1270, %v1271
        %v1273 = vrot.slane %v1272, 1
        %v1274 = vadd.f32 %v1272, %v1273
        %v1275 = vrot.slane %v1244, 4
        %v1276 = vadd.f32 %v1244, %v1275
        %v1277 = vrot.slane %v1276, 2
        %v1278 = vadd.f32 %v1276, %v1277
        %v1279 = vrot.slane %v1278, 1
        %v1280 = vadd.f32 %v1278, %v1279
        %v1281 = vrot.slane %v1245, 4
        %v1282 = vadd.f32 %v1245, %v1281
        %v1283 = vrot.slane %v1282, 2
        %v1284 = vadd.f32 %v1282, %v1283
        %v1285 = vrot.slane %v1284, 1
        %v1286 = vadd.f32 %v1284, %v1285
        %v1287 = vrot.slane %v1246, 4
        %v1288 = vadd.f32 %v1246, %v1287
        %v1289 = vrot.slane %v1288, 2
        %v1290 = vadd.f32 %v1288, %v1289
        %v1291 = vrot.slane %v1290, 1
        %v1292 = vadd.f32 %v1290, %v1291
        %v1293 = vrot.slane %v1247, 4
        %v1294 = vadd.f32 %v1247, %v1293
        %v1295 = vrot.slane %v1294, 2
        %v1296 = vadd.f32 %v1294, %v1295
        %v1297 = vrot.slane %v1296, 1
        %v1298 = vadd.f32 %v1296, %v1297
        %v1299 = vrot.slane %v1248, 4
        %v1300 = vadd.f32 %v1248, %v1299
        %v1301 = vrot.slane %v1300, 2
        %v1302 = vadd.f32 %v1300, %v1301
        %v1303 = vrot.slane %v1302, 1
        %v1304 = vadd.f32 %v1302, %v1303
        %v1305 = vadd.f32 %v843, %v1262
        %v1306 = vadd.f32 %v844, %v1268
        %v1307 = vadd.f32 %v845, %v1274
        %v1308 = vadd.f32 %v846, %v1280
        %v1309 = vadd.f32 %v847, %v1286
        %v1310 = vadd.f32 %v848, %v1292
        %v1311 = vadd.f32 %v849, %v1298
        %v1312 = vadd.f32 %v850, %v1304
        %vm1321 = vcmask 1041409
        %v1322 = vsel %vm1321, %v1306, %v1305
        %vm1323 = vcmask 1042434
        %v1324 = vsel %vm1323, %v1307, %v1322
        %vm1325 = vcmask 1043459
        %v1326 = vsel %vm1325, %v1308, %v1324
        %vm1327 = vcmask 1044484
        %v1328 = vsel %vm1327, %v1309, %v1326
        %vm1329 = vcmask 1045509
        %v1330 = vsel %vm1329, %v1310, %v1328
        %vm1331 = vcmask 1046534
        %v1332 = vsel %vm1331, %v1311, %v1330
        %vm1333 = vcmask 1047559
        %v1334 = vsel %vm1333, %v1312, %v1332
        %1336 = vst [vmem:[#allocation3] sm:$0xff] %v1334
        %v1337 = vrot.slane %v209, 1
        %v1338 = vrot.slane %v209, 2
        %v1339 = vrot.slane %v209, 3
        %v1340 = vrot.slane %v209, 4
        %v1341 = vrot.slane %v209, 5
        %v1342 = vrot.slane %v209, 6
        %v1343 = vrot.slane %v209, 7
        %v1352 = vadd.f32 %v1305, %v209
        %v1353 = vadd.f32 %v1306, %v1337
        %v1354 = vadd.f32 %v1307, %v1338
        %v1355 = vadd.f32 %v1308, %v1339
        %v1356 = vadd.f32 %v1309, %v1340
        %v1357 = vadd.f32 %v1310, %v1341
        %v1358 = vadd.f32 %v1311, %v1342
        %v1359 = vadd.f32 %v1312, %v1343
        %v1368 = vrot.slane %v1353, 7
        %v1369 = vsel %vm1321, %v1368, %v1352
        %v1370 = vrot.slane %v1354, 6
        %v1371 = vsel %vm1323, %v1370, %v1369
        %v1372 = vrot.slane %v1355, 5
        %v1373 = vsel %vm1325, %v1372, %v1371
        %v1374 = vrot.slane %v1356, 4
        %v1375 = vsel %vm1327, %v1374, %v1373
        %v1376 = vrot.slane %v1357, 3
        %v1377 = vsel %vm1329, %v1376, %v1375
        %v1378 = vrot.slane %v1358, 2
        %v1379 = vsel %vm1331, %v1378, %v1377
        %v1380 = vrot.slane %v1359, 1
        %v1381 = vsel %vm1333, %v1380, %v1379
        %1383 = vst [vmem:[%s187] sm:$0xff] %v1381
        %s1384 = sand.u32 %s89, 1
        %s1385 = scalar_lea.sflag [#allocation6], %s1384
        %s1386 = sand.u32 %s89, 1
        %s1387 = smul.addr %s1386, 8
        %s1388 = scalar_lea.vmem [#allocation9], %s1387
        // Predicated region
        $region41: #{tpu_custom_call.1} parent=27 // pred_check
          %p1389 = pneg %p99
        $region42: #{tpu_custom_call.1} parent=27 // pred_check_branch
          %1391 = sbr.rel (%p1389) target = $region44
        $region43: #{tpu_custom_call.1} parent=27 // pred_region
          %s1393 = ssub.s32 128, 128
          %1394 = vsyncadd %s1385, %s1393
          %s1395 = smul.addr %s25, 2
          %s1396 = sadd.s32 %s24, %s1395
          %s1397 = smul.addr %s1396, 128
          %s1398 = scalar_lea.hbm %s2, %s1397
          %s1400 = sshll.u32 %s1388, 4
          %s1401 = int_to_ptr.vmem [resolvable:$true] %s1400
          %1403 = dma.vmem_to_hbm [thread:$0]  %s1401, 128, %s1398, %s1385
        $region44: #{tpu_custom_call.1} parent=27 // pred_fallthru
          _
      $region28: #{tpu_custom_call.1} parent=5 // pred_fallthru
        _
      %p1404 = scmp.le.s32.totalorder 2, %s15
      // Predicated region
      $region45: #{tpu_custom_call.1} parent=5 // pred_check
        %p1405 = pneg %p1404
      $region46: #{tpu_custom_call.1} parent=5 // pred_check_branch
        %1407 = sbr.rel (%p1405) target = $region48
      $region47: #{tpu_custom_call.1} parent=5 // pred_region
        %s1408 = ssub.s32 %s15, 2
        // Predicated region
        $region49: #{tpu_custom_call.1} parent=47 // pred_check
          %p1409 = pneg %p105
        $region50: #{tpu_custom_call.1} parent=47 // pred_check_branch
          %1411 = sbr.rel (%p1409) target = $region52
        $region51: #{tpu_custom_call.1} parent=47 // pred_region
          %s1412 = sand.u32 %s90, 1
          %s1413 = scalar_lea.sflag [#allocation6], %s1412
          %s1414 = sand.u32 %s90, 1
          %s1415 = smul.addr %s1414, 8
          %s1416 = scalar_lea.vmem [#allocation9], %s1415
          %1417 = dma.done %s1413, 128
        $region52: #{tpu_custom_call.1} parent=47 // pred_fallthru
          _
      $region48: #{tpu_custom_call.1} parent=5 // pred_fallthru
        _
    $region6: #{tpu_custom_call.1} parent=1 // loop_footer
      %s19 = sadd.s32 1, %s15
    $region7: #{tpu_custom_call.1} parent=1 // loop_footer_branch
      %14 = sbr.rel target = $region3
    $region8: #{tpu_custom_call.1} parent=1 // loop_exit
      _
    %1418 = vsyncpa [#allocation5], 1
    %s1419 = scalar_lea.sflag [#allocation5], 1
    %1420 = vsyncpa %s1419, 1
    %1421 = vsyncpa [#allocation8], 1
    %1422 = vsyncpa [#allocation6], 1
    %s1423 = scalar_lea.sflag [#allocation6], 1
    %1424 = vsyncpa %s1423, 1

// kernel: tpu_custom_call.1
$region0: #{tpu_custom_call.1}
  #allocation0 [shape = 'u32[]', space=smem, size = 0x4, offset = 0x4, fixed_abs, tag = 'smem constant byte address 0x4 - core index']
  #allocation1 [shape = 'u32[144,128]{1,0:T(1,128)}', space=vmem, size = 0x12000, scoped, tag = 'internal scratch']
  #allocation2 [shape = 'f32[2,8,8,128]{3,2,1,0:T(8,128)}', space=vmem, size = 0x10000, scoped, tag = 'scratch operand']
  #allocation3 [shape = 'f32[8,128]{1,0:T(8,128)}', space=vmem, size = 0x1000, scoped, tag = 'scratch operand']
  %s0 = inlined_call_operand.hbm [shape: f32[16,128], index: 0, kind: input, shape index: {}]
  %s1 = inlined_call_operand.hbm [shape: f32[2,8,128], index: 1, kind: input, shape index: {}]
  %s2 = inlined_call_operand.hbm [shape: f32[4,16,128], index: 2, kind: output, shape index: {}]
  %s3 = sld [smem:[#allocation0]]
  $region53: #{tpu_custom_call.1} parent=0
    _
  %s5 = ssub.s32 1, %s3
  %s6 = scalar_select 0, %s5, %s3
  $region1: #{tpu_custom_call.1} parent=0
    #allocation4 [shape = 'u8[8192]{0}', space=vmem, size = 0x2000, scoped, tag = 'input window, operand 0']
    #allocation5 [shape = 's32[2]{0}', space=sflag, size = 0x8, scoped, tag = 'scoped memory for tpu_custom_call.1']
    #allocation6 [shape = 's32[2]{0}', space=sflag, size = 0x8, scoped, tag = 'scoped memory for tpu_custom_call.1']
    #allocation7 [shape = 'u8[8192]{0}', space=vmem, size = 0x2000, scoped, tag = 'input window, operand 1, single buffered']
    #allocation8 [shape = 's32[1]{0}', space=sflag, size = 0x4, scoped, tag = 'scoped memory for tpu_custom_call.1']
    #allocation9 [shape = 'u8[8192]{0}', space=vmem, size = 0x2000, scoped, tag = 'output window, operand 0']
    %7 = vsyncpa [#allocation5], 0
    %s8 = scalar_lea.sflag [#allocation5], 1
    %9 = vsyncpa %s8, 0
    %10 = vsyncpa [#allocation8], 0
    %11 = vsyncpa [#allocation6], 0
    %s12 = scalar_lea.sflag [#allocation6], 1
    %13 = vsyncpa %s12, 0
    loop: start=0, step=1, limit=10
    $region2: #{tpu_custom_call.1} parent=1 // loop_pre_header
      _
    $region3: #{tpu_custom_call.1} parent=1 // loop_header
      %s15 = sphi 0, %s19
      %p16 = scmp.ge.s32.totalorder %s15, 10
      %s22 = sphi 0, %s34
      %s23 = sphi 0, %s30
      %s24 = sphi 0, %s22
      %s25 = sphi 0, %s23
      %s26 = sphi 0, %s24
      %s27 = sphi 0, %s25
      %s37 = sphi 0, %s39
      %s40 = sphi 0, %s37
      %s41 = sphi 0, %s40
      %s57 = sphi 0, %s41
      %s61 = sphi 0, %s61
      %s63 = sphi 0, %s61
      %s64 = sphi 0, %s63
      %s78 = sphi 0, %s64
      %s86 = sphi 0, %s88
      %s89 = sphi 0, %s86
      %s90 = sphi 0, %s89
      %s106 = sphi 0, %s90
    $region4: #{tpu_custom_call.1} parent=1 // loop_header_branch
      %18 = sbr.rel (%p16) target = $region8
    $region5: #{tpu_custom_call.1} parent=1 // loop_body
      %s20 = ssub.s32 %s15, 1
      %s21 = ssub.s32 %s15, 2
      %s28 = sadd.s32 1, %s23
      %p29 = scmp.ge.s32.totalorder %s28, 4
      %s30 = scalar_select %p29, 0, %s28
      %s31 = sadd.s32 1, %s22
      %s32 = scalar_select %p29, %s31, %s22
      %p33 = scmp.ge.s32.totalorder %s32, 2
      %s34 = scalar_select %p33, 0, %s32
      %s35 = ssub.s32 %s22, %s34
      %p36 = scmp.eq.s32.totalorder %s35, 0
      %s38 = sadd.s32 %s37, 1
      %s39 = scalar_select %p36, %s37, %s38
      %p42 = pneg %p36
      %p43 = scmp.eq.s32.totalorder %s15, 7
      %p44 = por %p42, %p43
      %p45 = scmp.ne.s32.totalorder %s37, %s40
      %p46 = scmp.eq.s32.totalorder %s15, 0
      %p47 = por %p45, %p46
      %p48 = scmp.ne.s32.totalorder %s37, %s40
      %p49 = scmp.eq.s32.totalorder %s20, 7
      %p50 = por %p48, %p49
      %p51 = scmp.ne.s32.totalorder %s40, %s41
      %p52 = scmp.eq.s32.totalorder %s20, 0
      %p53 = por %p51, %p52
      %p54 = scmp.ne.s32.totalorder %s40, %s41
      %p55 = scmp.eq.s32.totalorder %s21, 7
      %p56 = por %p54, %p55
      %p58 = scmp.ne.s32.totalorder %s41, %s57
      %p59 = scmp.eq.s32.totalorder %s21, 0
      %p60 = por %p58, %p59
      %s62 = sadd.s32 %s61, 1
      %p65 = scmp.eq.s32.totalorder %s15, 7
      %p66 = scmp.ne.s32.totalorder %s61, %s63
      %p67 = scmp.eq.s32.totalorder %s15, 0
      %p68 = por %p66, %p67
      %p69 = scmp.ne.s32.totalorder %s61, %s63
      %p70 = scmp.eq.s32.totalorder %s20, 7
      %p71 = por %p69, %p70
      %p72 = scmp.ne.s32.totalorder %s63, %s64
      %p73 = scmp.eq.s32.totalorder %s20, 0
      %p74 = por %p72, %p73
      %p75 = scmp.ne.s32.totalorder %s63, %s64
      %p76 = scmp.eq.s32.totalorder %s21, 7
      %p77 = por %p75, %p76
      %p79 = scmp.ne.s32.totalorder %s64, %s78
      %p80 = scmp.eq.s32.totalorder %s21, 0
      %p81 = por %p79, %p80
      %s82 = ssub.s32 %s23, %s30
      %s83 = ssub.s32 %s22, %s34
      %s84 = sor.u32 %s82, %s83
      %p85 = scmp.eq.s32.totalorder %s84, 0
      %s87 = sadd.s32 %s86, 1
      %s88 = scalar_select %p85, %s86, %s87
      %p91 = pneg %p85
      %p92 = scmp.eq.s32.totalorder %s15, 7
      %p93 = por %p91, %p92
      %p94 = scmp.ne.s32.totalorder %s86, %s89
      %p95 = scmp.eq.s32.totalorder %s15, 0
      %p96 = por %p94, %p95
      %p97 = scmp.ne.s32.totalorder %s86, %s89
      %p98 = scmp.eq.s32.totalorder %s20, 7
      %p99 = por %p97, %p98
      %p100 = scmp.ne.s32.totalorder %s89, %s90
      %p101 = scmp.eq.s32.totalorder %s20, 0
      %p102 = por %p100, %p101
      %p103 = scmp.ne.s32.totalorder %s89, %s90
      %p104 = scmp.eq.s32.totalorder %s21, 7
      %p105 = por %p103, %p104
      %p107 = scmp.ne.s32.totalorder %s90, %s106
      %p108 = scmp.eq.s32.totalorder %s21, 0
      %p109 = por %p107, %p108
      %p110 = scmp.le.s32.totalorder 1, %s15
      %p111 = scmp.lt.s32.totalorder %s15, 9
      %p112 = pnand %p110, %p111
      %p113 = pneg %p112
      // Predicated region
      $region9: #{tpu_custom_call.1} parent=5 // pred_check
        _
      $region10: #{tpu_custom_call.1} parent=5 // pred_check_branch
        %115 = sbr.rel (%p112) target = $region12
      $region11: #{tpu_custom_call.1} parent=5 // pred_region
        %s116 = ssub.s32 %s15, 1
        // Predicated region
        $region13: #{tpu_custom_call.1} parent=11 // pred_check
          %p117 = pneg %p74
        $region14: #{tpu_custom_call.1} parent=11 // pred_check_branch
          %119 = sbr.rel (%p117) target = $region16
        $region15: #{tpu_custom_call.1} parent=11 // pred_region
          %s121 = ssub.s32 256, 256
          %122 = vsyncadd [#allocation8], %s121
          %s123 = sshll.u32 [#allocation7], 4
          %s124 = int_to_ptr.vmem [resolvable:$true] %s123
          %129 = dma.hbm_to_vmem [thread:$0]  %s1, 256, %s124, [#allocation8], 128, 128, 8
        $region16: #{tpu_custom_call.1} parent=11 // pred_fallthru
          _
      $region12: #{tpu_custom_call.1} parent=5 // pred_fallthru
        _
      %p130 = scmp.lt.s32.totalorder %s15, 8
      // Predicated region
      $region17: #{tpu_custom_call.1} parent=5 // pred_check
        %p131 = pneg %p130
      $region18: #{tpu_custom_call.1} parent=5 // pred_check_branch
        %133 = sbr.rel (%p131) target = $region20
      $region19: #{tpu_custom_call.1} parent=5 // pred_region
        // Predicated region
        $region21: #{tpu_custom_call.1} parent=19 // pred_check
          %p134 = pneg %p47
        $region22: #{tpu_custom_call.1} parent=19 // pred_check_branch
          %136 = sbr.rel (%p134) target = $region24
        $region23: #{tpu_custom_call.1} parent=19 // pred_region
          %s137 = sand.u32 %s37, 1
          %s138 = scalar_lea.sflag [#allocation5], %s137
          %s139 = sand.u32 %s37, 1
          %s140 = smul.addr %s139, 8
          %s141 = scalar_lea.vmem [#allocation4], %s140
          %s143 = ssub.s32 128, 128
          %144 = vsyncadd %s138, %s143
          %s145 = smul.addr %s22, 128
          %s146 = scalar_lea.hbm %s0, %s145
          %s148 = sshll.u32 %s141, 4
          %s149 = int_to_ptr.vmem [resolvable:$true] %s148
          %151 = dma.hbm_to_vmem [thread:$0]  %s146, 128, %s149, %s138
        $region24: #{tpu_custom_call.1} parent=19 // pred_fallthru
          _
      $region20: #{tpu_custom_call.1} parent=5 // pred_fallthru
        _
      %p152 = scmp.le.s32.totalorder 1, %s15
      %p153 = scmp.lt.s32.totalorder %s15, 9
      %p154 = pnand %p152, %p153
      %p155 = pneg %p154
      // Predicated region
      $region25: #{tpu_custom_call.1} parent=5 // pred_check
        _
      $region26: #{tpu_custom_call.1} parent=5 // pred_check_branch
        %157 = sbr.rel (%p154) target = $region28
      $region27: #{tpu_custom_call.1} parent=5 // pred_region
        %s158 = ssub.s32 %s15, 1
        %s159 = sand.u32 %s40, 1
        %s160 = scalar_lea.sflag [#allocation5], %s159
        %s161 = sand.u32 %s40, 1
        %s162 = smul.addr %s161, 8
        %s163 = scalar_lea.vmem [#allocation4], %s162
        // Predicated region
        $region29: #{tpu_custom_call.1} parent=27 // pred_check
          %p164 = pneg %p53
        $region30: #{tpu_custom_call.1} parent=27 // pred_check_branch
          %166 = sbr.rel (%p164) target = $region32
        $region31: #{tpu_custom_call.1} parent=27 // pred_region
          %167 = dma.done %s160, 128
        $region32: #{tpu_custom_call.1} parent=27 // pred_fallthru
          _
        // Predicated region
        $region33: #{tpu_custom_call.1} parent=27 // pred_check
          %p168 = pneg %p74
        $region34: #{tpu_custom_call.1} parent=27 // pred_check_branch
          %170 = sbr.rel (%p168) target = $region36
        $region35: #{tpu_custom_call.1} parent=27 // pred_region
          %171 = dma.done [#allocation8], 256
        $region36: #{tpu_custom_call.1} parent=27 // pred_fallthru
          _
        %s172 = sand.u32 %s40, 1
        %s173 = scalar_lea.sflag [#allocation5], %s172
        %s174 = sand.u32 %s40, 1
        %s175 = smul.addr %s174, 8
        %s176 = scalar_lea.vmem [#allocation4], %s175
        %p177 = pneg %p53
        %p178 = pneg %p50
        %p179 = pneg %p74
        %p180 = pneg %p71
        %p181 = pneg %p102
        %p182 = pneg %p99
        %s183 = sand.u32 %s89, 1
        %s184 = scalar_lea.sflag [#allocation6], %s183
        %s185 = sand.u32 %s89, 1
        %s186 = smul.addr %s185, 8
        %s187 = scalar_lea.vmem [#allocation9], %s186
        %p188 = scmp.eq.s32.totalorder %s25, 0
        // Predicated region
        $region37: #{tpu_custom_call.1} parent=27 // pred_check
          %p189 = pneg %p188
        $region38: #{tpu_custom_call.1} parent=27 // pred_check_branch
          %191 = sbr.rel (%p189) target = $region40
        $region39: #{tpu_custom_call.1} parent=27 // pred_region
          %192 = vst [vmem:[#allocation2] sm:$0xff] 0.0
          %193 = vst [vmem:[#allocation2 + $0x8] sm:$0xff] 0.0
          %194 = vst [vmem:[#allocation2 + $0x10] sm:$0xff] 0.0
          %195 = vst [vmem:[#allocation2 + $0x18] sm:$0xff] 0.0
          %196 = vst [vmem:[#allocation2 + $0x20] sm:$0xff] 0.0
          %197 = vst [vmem:[#allocation2 + $0x28] sm:$0xff] 0.0
          %198 = vst [vmem:[#allocation2 + $0x30] sm:$0xff] 0.0
          %199 = vst [vmem:[#allocation2 + $0x38] sm:$0xff] 0.0
          %200 = vst [vmem:[#allocation2 + $0x40] sm:$0xff] 0.0
          %201 = vst [vmem:[#allocation2 + $0x48] sm:$0xff] 0.0
          %202 = vst [vmem:[#allocation2 + $0x50] sm:$0xff] 0.0
          %203 = vst [vmem:[#allocation2 + $0x58] sm:$0xff] 0.0
          %204 = vst [vmem:[#allocation2 + $0x60] sm:$0xff] 0.0
          %205 = vst [vmem:[#allocation2 + $0x68] sm:$0xff] 0.0
          %206 = vst [vmem:[#allocation2 + $0x70] sm:$0xff] 0.0
          %207 = vst [vmem:[#allocation2 + $0x78] sm:$0xff] 0.0
          %208 = vst [vmem:[#allocation3] sm:$0xff] 0.0
        $region40: #{tpu_custom_call.1} parent=27 // pred_fallthru
          _
        %v209 = vld [vmem:[%s163] sm:$0xff]
        %v211 = vcombine.high %v209, %v209
        %v213 = vunpack.c.l.s4 1966171168
        %v214 = vunpack.c.0.s8 %v213
        %v215 = vlaneseq
        %v216 = vshrl.u32 %v215, 7
        %v217 = vsub.s32 %v214, %v216
        %v218 = vrot.slane %v209, %v217
        %v220 = vunpack.c.l.s4 1966171168
        %v221 = vunpack.c.0.s8 %v220
        %v222 = vlaneseq
        %v223 = vshrl.u32 %v222, 7
        %v224 = vsub.s32 %v221, %v223
        %v225 = vrot.slane %v211, %v224
        %v226 = vcombine.high %v218, %v218
        %v227 = vcombine.high %v225, %v225
        %v229 = vunpack.c.l.s4 1966171168
        %v230 = vunpack.c.0.s8 %v229
        %v231 = vlaneseq
        %v232 = vshrl.u32 %v231, 7
        %v233 = vsub.s32 %v230, %v232
        %v234 = vrot.slane %v218, %v233
        %v236 = vunpack.c.l.s4 1966171168
        %v237 = vunpack.c.0.s8 %v236
        %v238 = vlaneseq
        %v239 = vshrl.u32 %v238, 7
        %v240 = vsub.s32 %v237, %v239
        %v241 = vrot.slane %v225, %v240
        %v243 = vunpack.c.l.s4 1966171168
        %v244 = vunpack.c.0.s8 %v243
        %v245 = vlaneseq
        %v246 = vshrl.u32 %v245, 7
        %v247 = vsub.s32 %v244, %v246
        %v248 = vrot.slane %v226, %v247
        %v250 = vunpack.c.l.s4 1966171168
        %v251 = vunpack.c.0.s8 %v250
        %v252 = vlaneseq
        %v253 = vshrl.u32 %v252, 7
        %v254 = vsub.s32 %v251, %v253
        %v255 = vrot.slane %v227, %v254
        %v256 = vcombine.high %v234, %v234
        %v257 = vcombine.high %v241, %v241
        %v258 = vcombine.high %v248, %v248
        %v259 = vcombine.high %v255, %v255
        %v260 = vld [vmem:[#allocation3] sm:$0xff]
        %v262 = vcombine.high %v260, %v260
        %v264 = vunpack.c.l.s4 1966171168
        %v265 = vunpack.c.0.s8 %v264
        %v266 = vlaneseq
        %v267 = vshrl.u32 %v266, 7
        %v268 = vsub.s32 %v265, %v267
        %v269 = vrot.slane %v260, %v268
        %v271 = vunpack.c.l.s4 1966171168
        %v272 = vunpack.c.0.s8 %v271
        %v273 = vlaneseq
        %v274 = vshrl.u32 %v273, 7
        %v275 = vsub.s32 %v272, %v274
        %v276 = vrot.slane %v262, %v275
        %v277 = vcombine.high %v269, %v269
        %v278 = vcombine.high %v276, %v276
        %v280 = vunpack.c.l.s4 1966171168
        %v281 = vunpack.c.0.s8 %v280
        %v282 = vlaneseq
        %v283 = vshrl.u32 %v282, 7
        %v284 = vsub.s32 %v281, %v283
        %v285 = vrot.slane %v269, %v284
        %v287 = vunpack.c.l.s4 1966171168
        %v288 = vunpack.c.0.s8 %v287
        %v289 = vlaneseq
        %v290 = vshrl.u32 %v289, 7
        %v291 = vsub.s32 %v288, %v290
        %v292 = vrot.slane %v276, %v291
        %v294 = vunpack.c.l.s4 1966171168
        %v295 = vunpack.c.0.s8 %v294
        %v296 = vlaneseq
        %v297 = vshrl.u32 %v296, 7
        %v298 = vsub.s32 %v295, %v297
        %v299 = vrot.slane %v277, %v298
        %v301 = vunpack.c.l.s4 1966171168
        %v302 = vunpack.c.0.s8 %v301
        %v303 = vlaneseq
        %v304 = vshrl.u32 %v303, 7
        %v305 = vsub.s32 %v302, %v304
        %v306 = vrot.slane %v278, %v305
        %v307 = vcombine.high %v285, %v285
        %v308 = vcombine.high %v292, %v292
        %v309 = vcombine.high %v299, %v299
        %v310 = vcombine.high %v306, %v306
        %v311 = vld [vmem:[#allocation7] sm:$0xff]
        %v312 = vld [vmem:[#allocation2] sm:$0xff]
        %v313 = vld [vmem:[#allocation2 + $0x8] sm:$0xff]
        %v314 = vld [vmem:[#allocation2 + $0x10] sm:$0xff]
        %v315 = vld [vmem:[#allocation2 + $0x18] sm:$0xff]
        %v316 = vld [vmem:[#allocation2 + $0x20] sm:$0xff]
        %v317 = vld [vmem:[#allocation2 + $0x28] sm:$0xff]
        %v318 = vld [vmem:[#allocation2 + $0x30] sm:$0xff]
        %v319 = vld [vmem:[#allocation2 + $0x38] sm:$0xff]
        %v320 = vlaneseq
        %v321 = vshrl.u32 %v320, 7
        %v322 = vsub.s32 0, %v321
        %v323 = vrot.slane %v285, %v322
        %v324 = vlaneseq
        %v325 = vshrl.u32 %v324, 7
        %v326 = vsub.s32 0, %v325
        %v327 = vrot.slane %v299, %v326
        %v328 = vlaneseq
        %v329 = vshrl.u32 %v328, 7
        %v330 = vsub.s32 0, %v329
        %v331 = vrot.slane %v307, %v330
        %v332 = vlaneseq
        %v333 = vshrl.u32 %v332, 7
        %v334 = vsub.s32 0, %v333
        %v335 = vrot.slane %v309, %v334
        %v336 = vlaneseq
        %v337 = vshrl.u32 %v336, 7
        %v338 = vsub.s32 0, %v337
        %v339 = vrot.slane %v292, %v338
        %v340 = vlaneseq
        %v341 = vshrl.u32 %v340, 7
        %v342 = vsub.s32 0, %v341
        %v343 = vrot.slane %v306, %v342
        %v344 = vlaneseq
        %v345 = vshrl.u32 %v344, 7
        %v346 = vsub.s32 0, %v345
        %v347 = vrot.slane %v308, %v346
        %v348 = vlaneseq
        %v349 = vshrl.u32 %v348, 7
        %v350 = vsub.s32 0, %v349
        %v351 = vrot.slane %v310, %v350
        %v360 = vsub.f32 %v323, %v312
        %v361 = vsub.f32 %v327, %v313
        %v362 = vsub.f32 %v331, %v314
        %v363 = vsub.f32 %v335, %v315
        %v364 = vsub.f32 %v339, %v316
        %v365 = vsub.f32 %v343, %v317
        %v366 = vsub.f32 %v347, %v318
        %v367 = vsub.f32 %v351, %v319
        %v368 = vlaneseq
        %v369 = vshrl.u32 %v368, 7
        %v370 = vsub.s32 0, %v369
        %v371 = vrot.slane %v234, %v370
        %v372 = vlaneseq
        %v373 = vshrl.u32 %v372, 7
        %v374 = vsub.s32 0, %v373
        %v375 = vrot.slane %v248, %v374
        %v376 = vlaneseq
        %v377 = vshrl.u32 %v376, 7
        %v378 = vsub.s32 0, %v377
        %v379 = vrot.slane %v256, %v378
        %v380 = vlaneseq
        %v381 = vshrl.u32 %v380, 7
        %v382 = vsub.s32 0, %v381
        %v383 = vrot.slane %v258, %v382
        %v384 = vlaneseq
        %v385 = vshrl.u32 %v384, 7
        %v386 = vsub.s32 0, %v385
        %v387 = vrot.slane %v241, %v386
        %v388 = vlaneseq
        %v389 = vshrl.u32 %v388, 7
        %v390 = vsub.s32 0, %v389
        %v391 = vrot.slane %v255, %v390
        %v392 = vlaneseq
        %v393 = vshrl.u32 %v392, 7
        %v394 = vsub.s32 0, %v393
        %v395 = vrot.slane %v257, %v394
        %v396 = vlaneseq
        %v397 = vshrl.u32 %v396, 7
        %v398 = vsub.s32 0, %v397
        %v399 = vrot.slane %v259, %v398
        %v408 = vadd.f32 %v360, %v371
        %v409 = vadd.f32 %v361, %v375
        %v410 = vadd.f32 %v362, %v379
        %v411 = vadd.f32 %v363, %v383
        %v412 = vadd.f32 %v364, %v387
        %v413 = vadd.f32 %v365, %v391
        %v414 = vadd.f32 %v366, %v395
        %v415 = vadd.f32 %v367, %v399
        %v416 = vmul.f32 %v408, 0.5
        %v417 = vmul.f32 %v409, 0.5
        %v418 = vmul.f32 %v410, 0.5
        %v419 = vmul.f32 %v411, 0.5
        %v420 = vmul.f32 %v412, 0.5
        %v421 = vmul.f32 %v413, 0.5
        %v422 = vmul.f32 %v414, 0.5
        %v423 = vmul.f32 %v415, 0.5
        %v424 = vtanh.pop %v416
        %v425 = vtanh.pop %v417
        %v426 = vtanh.pop %v418
        %v427 = vtanh.pop %v419
        %v428 = vtanh.pop %v420
        %v429 = vtanh.pop %v421
        %v430 = vtanh.pop %v422
        %v431 = vtanh.pop %v423
        %vm432 = vcmp.gt.f32.partialorder %v311, 0.0
        %v433 = vsel %vm432, 1, 0
        %vm434 = vcmp.eq.s32.totalorder %v433, 1
        %v435 = vsel %vm434, %v424, 1.0
        %v436 = vsel %vm434, %v425, 1.0
        %v437 = vsel %vm434, %v426, 1.0
        %v438 = vsel %vm434, %v427, 1.0
        %v439 = vsel %vm434, %v428, 1.0
        %v440 = vsel %vm434, %v429, 1.0
        %v441 = vsel %vm434, %v430, 1.0
        %v442 = vsel %vm434, %v431, 1.0
        %vm443 = vcmp.lt.f32.partialorder %v435, 0.0
        %vm444 = vcmp.lt.f32.partialorder %v436, 0.0
        %vm445 = vcmp.lt.f32.partialorder %v437, 0.0
        %vm446 = vcmp.lt.f32.partialorder %v438, 0.0
        %vm447 = vcmp.lt.f32.partialorder %v439, 0.0
        %vm448 = vcmp.lt.f32.partialorder %v440, 0.0
        %vm449 = vcmp.lt.f32.partialorder %v441, 0.0
        %vm450 = vcmp.lt.f32.partialorder %v442, 0.0
        %v451 = vsel %vm443, -1.0, 1.0
        %v452 = vsel %vm444, -1.0, 1.0
        %v453 = vsel %vm445, -1.0, 1.0
        %v454 = vsel %vm446, -1.0, 1.0
        %v455 = vsel %vm447, -1.0, 1.0
        %v456 = vsel %vm448, -1.0, 1.0
        %v457 = vsel %vm449, -1.0, 1.0
        %v458 = vsel %vm450, -1.0, 1.0
        %v459 = vand.u32 2147483647, %v435
        %v460 = vand.u32 2147483647, %v436
        %v461 = vand.u32 2147483647, %v437
        %v462 = vand.u32 2147483647, %v438
        %v463 = vand.u32 2147483647, %v439
        %v464 = vand.u32 2147483647, %v440
        %v465 = vand.u32 2147483647, %v441
        %v466 = vand.u32 2147483647, %v442
        %v467 = vmax.f32 %v459, 1e-09
        %v468 = vmax.f32 %v460, 1e-09
        %v469 = vmax.f32 %v461, 1e-09
        %v470 = vmax.f32 %v462, 1e-09
        %v471 = vmax.f32 %v463, 1e-09
        %v472 = vmax.f32 %v464, 1e-09
        %v473 = vmax.f32 %v465, 1e-09
        %v474 = vmax.f32 %v466, 1e-09
        %v475 = vmul.f32 %v451, %v467
        %v476 = vmul.f32 %v452, %v468
        %v477 = vmul.f32 %v453, %v469
        %v478 = vmul.f32 %v454, %v470
        %v479 = vmul.f32 %v455, %v471
        %v480 = vmul.f32 %v456, %v472
        %v481 = vmul.f32 %v457, %v473
        %v482 = vmul.f32 %v458, %v474
        %483 = vrot.lane.b32.xlu0 %v475, 1
        %v484 = vpop.permute.xlu0 %483
        %485 = vrot.lane.b32.xlu0 %v476, 1
        %v486 = vpop.permute.xlu0 %485
        %487 = vrot.lane.b32.xlu0 %v477, 1
        %v488 = vpop.permute.xlu0 %487
        %489 = vrot.lane.b32.xlu0 %v478, 1
        %v490 = vpop.permute.xlu0 %489
        %491 = vrot.lane.b32.xlu0 %v479, 1
        %v492 = vpop.permute.xlu0 %491
        %493 = vrot.lane.b32.xlu0 %v480, 1
        %v494 = vpop.permute.xlu0 %493
        %495 = vrot.lane.b32.xlu0 %v481, 1
        %v496 = vpop.permute.xlu0 %495
        %497 = vrot.lane.b32.xlu0 %v482, 1
        %v498 = vpop.permute.xlu0 %497
        %v499 = vmul.f32 %v475, %v484
        %v500 = vmul.f32 %v476, %v486
        %v501 = vmul.f32 %v477, %v488
        %v502 = vmul.f32 %v478, %v490
        %v503 = vmul.f32 %v479, %v492
        %v504 = vmul.f32 %v480, %v494
        %v505 = vmul.f32 %v481, %v496
        %v506 = vmul.f32 %v482, %v498
        %507 = vrot.lane.b32.xlu0 %v499, 2
        %v508 = vpop.permute.xlu0 %507
        %509 = vrot.lane.b32.xlu0 %v500, 2
        %v510 = vpop.permute.xlu0 %509
        %511 = vrot.lane.b32.xlu0 %v501, 2
        %v512 = vpop.permute.xlu0 %511
        %513 = vrot.lane.b32.xlu0 %v502, 2
        %v514 = vpop.permute.xlu0 %513
        %515 = vrot.lane.b32.xlu0 %v503, 2
        %v516 = vpop.permute.xlu0 %515
        %517 = vrot.lane.b32.xlu0 %v504, 2
        %v518 = vpop.permute.xlu0 %517
        %519 = vrot.lane.b32.xlu0 %v505, 2
        %v520 = vpop.permute.xlu0 %519
        %521 = vrot.lane.b32.xlu0 %v506, 2
        %v522 = vpop.permute.xlu0 %521
        %v523 = vmul.f32 %v499, %v508
        %v524 = vmul.f32 %v500, %v510
        %v525 = vmul.f32 %v501, %v512
        %v526 = vmul.f32 %v502, %v514
        %v527 = vmul.f32 %v503, %v516
        %v528 = vmul.f32 %v504, %v518
        %v529 = vmul.f32 %v505, %v520
        %v530 = vmul.f32 %v506, %v522
        %531 = vrot.lane.b32.xlu0 %v523, 4
        %v532 = vpop.permute.xlu0 %531
        %533 = vrot.lane.b32.xlu0 %v524, 4
        %v534 = vpop.permute.xlu0 %533
        %535 = vrot.lane.b32.xlu0 %v525, 4
        %v536 = vpop.permute.xlu0 %535
        %537 = vrot.lane.b32.xlu0 %v526, 4
        %v538 = vpop.permute.xlu0 %537
        %539 = vrot.lane.b32.xlu0 %v527, 4
        %v540 = vpop.permute.xlu0 %539
        %541 = vrot.lane.b32.xlu0 %v528, 4
        %v542 = vpop.permute.xlu0 %541
        %543 = vrot.lane.b32.xlu0 %v529, 4
        %v544 = vpop.permute.xlu0 %543
        %545 = vrot.lane.b32.xlu0 %v530, 4
        %v546 = vpop.permute.xlu0 %545
        %v547 = vmul.f32 %v523, %v532
        %v548 = vmul.f32 %v524, %v534
        %v549 = vmul.f32 %v525, %v536
        %v550 = vmul.f32 %v526, %v538
        %v551 = vmul.f32 %v527, %v540
        %v552 = vmul.f32 %v528, %v542
        %v553 = vmul.f32 %v529, %v544
        %v554 = vmul.f32 %v530, %v546
        %555 = vrot.lane.b32.xlu0 %v547, 8
        %v556 = vpop.permute.xlu0 %555
        %557 = vrot.lane.b32.xlu0 %v548, 8
        %v558 = vpop.permute.xlu0 %557
        %559 = vrot.lane.b32.xlu0 %v549, 8
        %v560 = vpop.permute.xlu0 %559
        %561 = vrot.lane.b32.xlu0 %v550, 8
        %v562 = vpop.permute.xlu0 %561
        %563 = vrot.lane.b32.xlu0 %v551, 8
        %v564 = vpop.permute.xlu0 %563
        %565 = vrot.lane.b32.xlu0 %v552, 8
        %v566 = vpop.permute.xlu0 %565
        %567 = vrot.lane.b32.xlu0 %v553, 8
        %v568 = vpop.permute.xlu0 %567
        %569 = vrot.lane.b32.xlu0 %v554, 8
        %v570 = vpop.permute.xlu0 %569
        %v571 = vmul.f32 %v547, %v556
        %v572 = vmul.f32 %v548, %v558
        %v573 = vmul.f32 %v549, %v560
        %v574 = vmul.f32 %v550, %v562
        %v575 = vmul.f32 %v551, %v564
        %v576 = vmul.f32 %v552, %v566
        %v577 = vmul.f32 %v553, %v568
        %v578 = vmul.f32 %v554, %v570
        %579 = vrot.lane.b32.xlu0 %v571, 16
        %v580 = vpop.permute.xlu0 %579
        %581 = vrot.lane.b32.xlu0 %v572, 16
        %v582 = vpop.permute.xlu0 %581
        %583 = vrot.lane.b32.xlu0 %v573, 16
        %v584 = vpop.permute.xlu0 %583
        %585 = vrot.lane.b32.xlu0 %v574, 16
        %v586 = vpop.permute.xlu0 %585
        %587 = vrot.lane.b32.xlu0 %v575, 16
        %v588 = vpop.permute.xlu0 %587
        %589 = vrot.lane.b32.xlu0 %v576, 16
        %v590 = vpop.permute.xlu0 %589
        %591 = vrot.lane.b32.xlu0 %v577, 16
        %v592 = vpop.permute.xlu0 %591
        %593 = vrot.lane.b32.xlu0 %v578, 16
        %v594 = vpop.permute.xlu0 %593
        %v595 = vmul.f32 %v571, %v580
        %v596 = vmul.f32 %v572, %v582
        %v597 = vmul.f32 %v573, %v584
        %v598 = vmul.f32 %v574, %v586
        %v599 = vmul.f32 %v575, %v588
        %v600 = vmul.f32 %v576, %v590
        %v601 = vmul.f32 %v577, %v592
        %v602 = vmul.f32 %v578, %v594
        %603 = vrot.lane.b32.xlu0 %v595, 32
        %v604 = vpop.permute.xlu0 %603
        %605 = vrot.lane.b32.xlu0 %v596, 32
        %v606 = vpop.permute.xlu0 %605
        %607 = vrot.lane.b32.xlu0 %v597, 32
        %v608 = vpop.permute.xlu0 %607
        %609 = vrot.lane.b32.xlu0 %v598, 32
        %v610 = vpop.permute.xlu0 %609
        %611 = vrot.lane.b32.xlu0 %v599, 32
        %v612 = vpop.permute.xlu0 %611
        %613 = vrot.lane.b32.xlu0 %v600, 32
        %v614 = vpop.permute.xlu0 %613
        %615 = vrot.lane.b32.xlu0 %v601, 32
        %v616 = vpop.permute.xlu0 %615
        %617 = vrot.lane.b32.xlu0 %v602, 32
        %v618 = vpop.permute.xlu0 %617
        %v619 = vmul.f32 %v595, %v604
        %v620 = vmul.f32 %v596, %v606
        %v621 = vmul.f32 %v597, %v608
        %v622 = vmul.f32 %v598, %v610
        %v623 = vmul.f32 %v599, %v612
        %v624 = vmul.f32 %v600, %v614
        %v625 = vmul.f32 %v601, %v616
        %v626 = vmul.f32 %v602, %v618
        %627 = vrot.lane.b32.xlu0 %v619, 64
        %v628 = vpop.permute.xlu0 %627
        %629 = vrot.lane.b32.xlu0 %v620, 64
        %v630 = vpop.permute.xlu0 %629
        %631 = vrot.lane.b32.xlu0 %v621, 64
        %v632 = vpop.permute.xlu0 %631
        %633 = vrot.lane.b32.xlu0 %v622, 64
        %v634 = vpop.permute.xlu0 %633
        %635 = vrot.lane.b32.xlu0 %v623, 64
        %v636 = vpop.permute.xlu0 %635
        %637 = vrot.lane.b32.xlu0 %v624, 64
        %v638 = vpop.permute.xlu0 %637
        %639 = vrot.lane.b32.xlu0 %v625, 64
        %v640 = vpop.permute.xlu0 %639
        %641 = vrot.lane.b32.xlu0 %v626, 64
        %v642 = vpop.permute.xlu0 %641
        %v643 = vmul.f32 %v619, %v628
        %v644 = vmul.f32 %v620, %v630
        %v645 = vmul.f32 %v621, %v632
        %v646 = vmul.f32 %v622, %v634
        %v647 = vmul.f32 %v623, %v636
        %v648 = vmul.f32 %v624, %v638
        %v649 = vmul.f32 %v625, %v640
        %v650 = vmul.f32 %v626, %v642
        %vm651 = vcmp.lt.f32.partialorder %v643, 0.0
        %vm652 = vcmp.lt.f32.partialorder %v644, 0.0
        %vm653 = vcmp.lt.f32.partialorder %v645, 0.0
        %vm654 = vcmp.lt.f32.partialorder %v646, 0.0
        %vm655 = vcmp.lt.f32.partialorder %v647, 0.0
        %vm656 = vcmp.lt.f32.partialorder %v648, 0.0
        %vm657 = vcmp.lt.f32.partialorder %v649, 0.0
        %vm658 = vcmp.lt.f32.partialorder %v650, 0.0
        %v659 = vsel %vm651, -1.0, 1.0
        %v660 = vsel %vm652, -1.0, 1.0
        %v661 = vsel %vm653, -1.0, 1.0
        %v662 = vsel %vm654, -1.0, 1.0
        %v663 = vsel %vm655, -1.0, 1.0
        %v664 = vsel %vm656, -1.0, 1.0
        %v665 = vsel %vm657, -1.0, 1.0
        %v666 = vsel %vm658, -1.0, 1.0
        %v667 = vand.u32 2147483647, %v643
        %v668 = vand.u32 2147483647, %v644
        %v669 = vand.u32 2147483647, %v645
        %v670 = vand.u32 2147483647, %v646
        %v671 = vand.u32 2147483647, %v647
        %v672 = vand.u32 2147483647, %v648
        %v673 = vand.u32 2147483647, %v649
        %v674 = vand.u32 2147483647, %v650
        %v675 = vadd.f32 %v467, %v667
        %v676 = vadd.f32 %v468, %v668
        %v677 = vadd.f32 %v469, %v669
        %v678 = vadd.f32 %v470, %v670
        %v679 = vadd.f32 %v471, %v671
        %v680 = vadd.f32 %v472, %v672
        %v681 = vadd.f32 %v473, %v673
        %v682 = vadd.f32 %v474, %v674
        %v683 = vsub.f32 %v467, %v667
        %v684 = vsub.f32 %v468, %v668
        %v685 = vsub.f32 %v469, %v669
        %v686 = vsub.f32 %v470, %v670
        %v687 = vsub.f32 %v471, %v671
        %v688 = vsub.f32 %v472, %v672
        %v689 = vsub.f32 %v473, %v673
        %v690 = vsub.f32 %v474, %v674
        %v691 = vmul.f32 %v467, 1e-06
        %v692 = vmul.f32 %v468, 1e-06
        %v693 = vmul.f32 %v469, 1e-06
        %v694 = vmul.f32 %v470, 1e-06
        %v695 = vmul.f32 %v471, 1e-06
        %v696 = vmul.f32 %v472, 1e-06
        %v697 = vmul.f32 %v473, 1e-06
        %v698 = vmul.f32 %v474, 1e-06
        %v699 = vmax.f32 %v683, %v691
        %v700 = vmax.f32 %v684, %v692
        %v701 = vmax.f32 %v685, %v693
        %v702 = vmax.f32 %v686, %v694
        %v703 = vmax.f32 %v687, %v695
        %v704 = vmax.f32 %v688, %v696
        %v705 = vmax.f32 %v689, %v697
        %v706 = vmax.f32 %v690, %v698
        %v707 = vrcp.pop %v699
        %v708 = vrcp.pop %v700
        %v709 = vrcp.pop %v701
        %v710 = vrcp.pop %v702
        %v711 = vrcp.pop %v703
        %v712 = vrcp.pop %v704
        %v713 = vrcp.pop %v705
        %v714 = vrcp.pop %v706
        %v715 = vmul.f32 %v699, %v707
        %v716 = vmul.f32 %v700, %v708
        %v717 = vmul.f32 %v701, %v709
        %v718 = vmul.f32 %v702, %v710
        %v719 = vmul.f32 %v703, %v711
        %v720 = vmul.f32 %v704, %v712
        %v721 = vmul.f32 %v705, %v713
        %v722 = vmul.f32 %v706, %v714
        %v723 = vsub.f32 2.0, %v715
        %v724 = vsub.f32 2.0, %v716
        %v725 = vsub.f32 2.0, %v717
        %v726 = vsub.f32 2.0, %v718
        %v727 = vsub.f32 2.0, %v719
        %v728 = vsub.f32 2.0, %v720
        %v729 = vsub.f32 2.0, %v721
        %v730 = vsub.f32 2.0, %v722
        %v731 = vmul.f32 %v707, %v723
        %v732 = vmul.f32 %v708, %v724
        %v733 = vmul.f32 %v709, %v725
        %v734 = vmul.f32 %v710, %v726
        %v735 = vmul.f32 %v711, %v727
        %v736 = vmul.f32 %v712, %v728
        %v737 = vmul.f32 %v713, %v729
        %v738 = vmul.f32 %v714, %v730
        %v739 = vmul.f32 %v659, %v451
        %v740 = vmul.f32 %v660, %v452
        %v741 = vmul.f32 %v661, %v453
        %v742 = vmul.f32 %v662, %v454
        %v743 = vmul.f32 %v663, %v455
        %v744 = vmul.f32 %v664, %v456
        %v745 = vmul.f32 %v665, %v457
        %v746 = vmul.f32 %v666, %v458
        %v747 = vmul.f32 %v675, %v731
        %v748 = vmul.f32 %v676, %v732
        %v749 = vmul.f32 %v677, %v733
        %v750 = vmul.f32 %v678, %v734
        %v751 = vmul.f32 %v679, %v735
        %v752 = vmul.f32 %v680, %v736
        %v753 = vmul.f32 %v681, %v737
        %v754 = vmul.f32 %v682, %v738
        %v755 = vlog2.pop %v747
        %v756 = vmul.f32 %v755, 0.6931472
        %v757 = vlog2.pop %v748
        %v758 = vmul.f32 %v757, 0.6931472
        %v759 = vlog2.pop %v749
        %v760 = vmul.f32 %v759, 0.6931472
        %v761 = vlog2.pop %v750
        %v762 = vmul.f32 %v761, 0.6931472
        %v763 = vlog2.pop %v751
        %v764 = vmul.f32 %v763, 0.6931472
        %v765 = vlog2.pop %v752
        %v766 = vmul.f32 %v765, 0.6931472
        %v767 = vlog2.pop %v753
        %v768 = vmul.f32 %v767, 0.6931472
        %v769 = vlog2.pop %v754
        %v770 = vmul.f32 %v769, 0.6931472
        %v771 = vmul.f32 %v739, %v756
        %v772 = vmul.f32 %v740, %v758
        %v773 = vmul.f32 %v741, %v760
        %v774 = vmul.f32 %v742, %v762
        %v775 = vmul.f32 %v743, %v764
        %v776 = vmul.f32 %v744, %v766
        %v777 = vmul.f32 %v745, %v768
        %v778 = vmul.f32 %v746, %v770
        %v779 = vmul.f32 %v771, %v311
        %v780 = vmul.f32 %v772, %v311
        %v781 = vmul.f32 %v773, %v311
        %v782 = vmul.f32 %v774, %v311
        %v783 = vmul.f32 %v775, %v311
        %v784 = vmul.f32 %v776, %v311
        %v785 = vmul.f32 %v777, %v311
        %v786 = vmul.f32 %v778, %v311
        %787 = vst [vmem:[#allocation2] sm:$0xff] %v779
        %788 = vst [vmem:[#allocation2 + $0x8] sm:$0xff] %v780
        %789 = vst [vmem:[#allocation2 + $0x10] sm:$0xff] %v781
        %790 = vst [vmem:[#allocation2 + $0x18] sm:$0xff] %v782
        %791 = vst [vmem:[#allocation2 + $0x20] sm:$0xff] %v783
        %792 = vst [vmem:[#allocation2 + $0x28] sm:$0xff] %v784
        %793 = vst [vmem:[#allocation2 + $0x30] sm:$0xff] %v785
        %794 = vst [vmem:[#allocation2 + $0x38] sm:$0xff] %v786
        %v795 = vrot.slane %v779, 4
        %v796 = vadd.f32 %v779, %v795
        %v797 = vrot.slane %v796, 2
        %v798 = vadd.f32 %v796, %v797
        %v799 = vrot.slane %v798, 1
        %v800 = vadd.f32 %v798, %v799
        %v801 = vrot.slane %v780, 4
        %v802 = vadd.f32 %v780, %v801
        %v803 = vrot.slane %v802, 2
        %v804 = vadd.f32 %v802, %v803
        %v805 = vrot.slane %v804, 1
        %v806 = vadd.f32 %v804, %v805
        %v807 = vrot.slane %v781, 4
        %v808 = vadd.f32 %v781, %v807
        %v809 = vrot.slane %v808, 2
        %v810 = vadd.f32 %v808, %v809
        %v811 = vrot.slane %v810, 1
        %v812 = vadd.f32 %v810, %v811
        %v813 = vrot.slane %v782, 4
        %v814 = vadd.f32 %v782, %v813
        %v815 = vrot.slane %v814, 2
        %v816 = vadd.f32 %v814, %v815
        %v817 = vrot.slane %v816, 1
        %v818 = vadd.f32 %v816, %v817
        %v819 = vrot.slane %v783, 4
        %v820 = vadd.f32 %v783, %v819
        %v821 = vrot.slane %v820, 2
        %v822 = vadd.f32 %v820, %v821
        %v823 = vrot.slane %v822, 1
        %v824 = vadd.f32 %v822, %v823
        %v825 = vrot.slane %v784, 4
        %v826 = vadd.f32 %v784, %v825
        %v827 = vrot.slane %v826, 2
        %v828 = vadd.f32 %v826, %v827
        %v829 = vrot.slane %v828, 1
        %v830 = vadd.f32 %v828, %v829
        %v831 = vrot.slane %v785, 4
        %v832 = vadd.f32 %v785, %v831
        %v833 = vrot.slane %v832, 2
        %v834 = vadd.f32 %v832, %v833
        %v835 = vrot.slane %v834, 1
        %v836 = vadd.f32 %v834, %v835
        %v837 = vrot.slane %v786, 4
        %v838 = vadd.f32 %v786, %v837
        %v839 = vrot.slane %v838, 2
        %v840 = vadd.f32 %v838, %v839
        %v841 = vrot.slane %v840, 1
        %v842 = vadd.f32 %v840, %v841
        %v843 = vadd.f32 %v800, 0.0
        %v844 = vadd.f32 %v806, 0.0
        %v845 = vadd.f32 %v812, 0.0
        %v846 = vadd.f32 %v818, 0.0
        %v847 = vadd.f32 %v824, 0.0
        %v848 = vadd.f32 %v830, 0.0
        %v849 = vadd.f32 %v836, 0.0
        %v850 = vadd.f32 %v842, 0.0
        %s851 = scalar_lea.vmem [#allocation7], 8
        %v852 = vld [vmem:[%s851] sm:$0xff]
        %s853 = scalar_lea.vmem [#allocation2], 64
        %v854 = vld [vmem:[%s853] sm:$0xff]
        %v855 = vld [vmem:[%s853 + $0x8] sm:$0xff]
        %v856 = vld [vmem:[%s853 + $0x10] sm:$0xff]
        %v857 = vld [vmem:[%s853 + $0x18] sm:$0xff]
        %v858 = vld [vmem:[%s853 + $0x20] sm:$0xff]
        %v859 = vld [vmem:[%s853 + $0x28] sm:$0xff]
        %v860 = vld [vmem:[%s853 + $0x30] sm:$0xff]
        %v861 = vld [vmem:[%s853 + $0x38] sm:$0xff]
        %v862 = vsub.f32 %v323, %v854
        %v863 = vsub.f32 %v327, %v855
        %v864 = vsub.f32 %v331, %v856
        %v865 = vsub.f32 %v335, %v857
        %v866 = vsub.f32 %v339, %v858
        %v867 = vsub.f32 %v343, %v859
        %v868 = vsub.f32 %v347, %v860
        %v869 = vsub.f32 %v351, %v861
        %v870 = vadd.f32 %v862, %v371
        %v871 = vadd.f32 %v863, %v375
        %v872 = vadd.f32 %v864, %v379
        %v873 = vadd.f32 %v865, %v383
        %v874 = vadd.f32 %v866, %v387
        %v875 = vadd.f32 %v867, %v391
        %v876 = vadd.f32 %v868, %v395
        %v877 = vadd.f32 %v869, %v399
        %v878 = vmul.f32 %v870, 0.5
        %v879 = vmul.f32 %v871, 0.5
        %v880 = vmul.f32 %v872, 0.5
        %v881 = vmul.f32 %v873, 0.5
        %v882 = vmul.f32 %v874, 0.5
        %v883 = vmul.f32 %v875, 0.5
        %v884 = vmul.f32 %v876, 0.5
        %v885 = vmul.f32 %v877, 0.5
        %v886 = vtanh.pop %v878
        %v887 = vtanh.pop %v879
        %v888 = vtanh.pop %v880
        %v889 = vtanh.pop %v881
        %v890 = vtanh.pop %v882
        %v891 = vtanh.pop %v883
        %v892 = vtanh.pop %v884
        %v893 = vtanh.pop %v885
        %vm894 = vcmp.gt.f32.partialorder %v852, 0.0
        %v895 = vsel %vm894, 1, 0
        %vm896 = vcmp.eq.s32.totalorder %v895, 1
        %v897 = vsel %vm896, %v886, 1.0
        %v898 = vsel %vm896, %v887, 1.0
        %v899 = vsel %vm896, %v888, 1.0
        %v900 = vsel %vm896, %v889, 1.0
        %v901 = vsel %vm896, %v890, 1.0
        %v902 = vsel %vm896, %v891, 1.0
        %v903 = vsel %vm896, %v892, 1.0
        %v904 = vsel %vm896, %v893, 1.0
        %vm905 = vcmp.lt.f32.partialorder %v897, 0.0
        %vm906 = vcmp.lt.f32.partialorder %v898, 0.0
        %vm907 = vcmp.lt.f32.partialorder %v899, 0.0
        %vm908 = vcmp.lt.f32.partialorder %v900, 0.0
        %vm909 = vcmp.lt.f32.partialorder %v901, 0.0
        %vm910 = vcmp.lt.f32.partialorder %v902, 0.0
        %vm911 = vcmp.lt.f32.partialorder %v903, 0.0
        %vm912 = vcmp.lt.f32.partialorder %v904, 0.0
        %v913 = vsel %vm905, -1.0, 1.0
        %v914 = vsel %vm906, -1.0, 1.0
        %v915 = vsel %vm907, -1.0, 1.0
        %v916 = vsel %vm908, -1.0, 1.0
        %v917 = vsel %vm909, -1.0, 1.0
        %v918 = vsel %vm910, -1.0, 1.0
        %v919 = vsel %vm911, -1.0, 1.0
        %v920 = vsel %vm912, -1.0, 1.0
        %v921 = vand.u32 2147483647, %v897
        %v922 = vand.u32 2147483647, %v898
        %v923 = vand.u32 2147483647, %v899
        %v924 = vand.u32 2147483647, %v900
        %v925 = vand.u32 2147483647, %v901
        %v926 = vand.u32 2147483647, %v902
        %v927 = vand.u32 2147483647, %v903
        %v928 = vand.u32 2147483647, %v904
        %v929 = vmax.f32 %v921, 1e-09
        %v930 = vmax.f32 %v922, 1e-09
        %v931 = vmax.f32 %v923, 1e-09
        %v932 = vmax.f32 %v924, 1e-09
        %v933 = vmax.f32 %v925, 1e-09
        %v934 = vmax.f32 %v926, 1e-09
        %v935 = vmax.f32 %v927, 1e-09
        %v936 = vmax.f32 %v928, 1e-09
        %v937 = vmul.f32 %v913, %v929
        %v938 = vmul.f32 %v914, %v930
        %v939 = vmul.f32 %v915, %v931
        %v940 = vmul.f32 %v916, %v932
        %v941 = vmul.f32 %v917, %v933
        %v942 = vmul.f32 %v918, %v934
        %v943 = vmul.f32 %v919, %v935
        %v944 = vmul.f32 %v920, %v936
        %945 = vrot.lane.b32.xlu0 %v937, 1
        %v946 = vpop.permute.xlu0 %945
        %947 = vrot.lane.b32.xlu0 %v938, 1
        %v948 = vpop.permute.xlu0 %947
        %949 = vrot.lane.b32.xlu0 %v939, 1
        %v950 = vpop.permute.xlu0 %949
        %951 = vrot.lane.b32.xlu0 %v940, 1
        %v952 = vpop.permute.xlu0 %951
        %953 = vrot.lane.b32.xlu0 %v941, 1
        %v954 = vpop.permute.xlu0 %953
        %955 = vrot.lane.b32.xlu0 %v942, 1
        %v956 = vpop.permute.xlu0 %955
        %957 = vrot.lane.b32.xlu0 %v943, 1
        %v958 = vpop.permute.xlu0 %957
        %959 = vrot.lane.b32.xlu0 %v944, 1
        %v960 = vpop.permute.xlu0 %959
        %v961 = vmul.f32 %v937, %v946
        %v962 = vmul.f32 %v938, %v948
        %v963 = vmul.f32 %v939, %v950
        %v964 = vmul.f32 %v940, %v952
        %v965 = vmul.f32 %v941, %v954
        %v966 = vmul.f32 %v942, %v956
        %v967 = vmul.f32 %v943, %v958
        %v968 = vmul.f32 %v944, %v960
        %969 = vrot.lane.b32.xlu0 %v961, 2
        %v970 = vpop.permute.xlu0 %969
        %971 = vrot.lane.b32.xlu0 %v962, 2
        %v972 = vpop.permute.xlu0 %971
        %973 = vrot.lane.b32.xlu0 %v963, 2
        %v974 = vpop.permute.xlu0 %973
        %975 = vrot.lane.b32.xlu0 %v964, 2
        %v976 = vpop.permute.xlu0 %975
        %977 = vrot.lane.b32.xlu0 %v965, 2
        %v978 = vpop.permute.xlu0 %977
        %979 = vrot.lane.b32.xlu0 %v966, 2
        %v980 = vpop.permute.xlu0 %979
        %981 = vrot.lane.b32.xlu0 %v967, 2
        %v982 = vpop.permute.xlu0 %981
        %983 = vrot.lane.b32.xlu0 %v968, 2
        %v984 = vpop.permute.xlu0 %983
        %v985 = vmul.f32 %v961, %v970
        %v986 = vmul.f32 %v962, %v972
        %v987 = vmul.f32 %v963, %v974
        %v988 = vmul.f32 %v964, %v976
        %v989 = vmul.f32 %v965, %v978
        %v990 = vmul.f32 %v966, %v980
        %v991 = vmul.f32 %v967, %v982
        %v992 = vmul.f32 %v968, %v984
        %993 = vrot.lane.b32.xlu0 %v985, 4
        %v994 = vpop.permute.xlu0 %993
        %995 = vrot.lane.b32.xlu0 %v986, 4
        %v996 = vpop.permute.xlu0 %995
        %997 = vrot.lane.b32.xlu0 %v987, 4
        %v998 = vpop.permute.xlu0 %997
        %999 = vrot.lane.b32.xlu0 %v988, 4
        %v1000 = vpop.permute.xlu0 %999
        %1001 = vrot.lane.b32.xlu0 %v989, 4
        %v1002 = vpop.permute.xlu0 %1001
        %1003 = vrot.lane.b32.xlu0 %v990, 4
        %v1004 = vpop.permute.xlu0 %1003
        %1005 = vrot.lane.b32.xlu0 %v991, 4
        %v1006 = vpop.permute.xlu0 %1005
        %1007 = vrot.lane.b32.xlu0 %v992, 4
        %v1008 = vpop.permute.xlu0 %1007
        %v1009 = vmul.f32 %v985, %v994
        %v1010 = vmul.f32 %v986, %v996
        %v1011 = vmul.f32 %v987, %v998
        %v1012 = vmul.f32 %v988, %v1000
        %v1013 = vmul.f32 %v989, %v1002
        %v1014 = vmul.f32 %v990, %v1004
        %v1015 = vmul.f32 %v991, %v1006
        %v1016 = vmul.f32 %v992, %v1008
        %1017 = vrot.lane.b32.xlu0 %v1009, 8
        %v1018 = vpop.permute.xlu0 %1017
        %1019 = vrot.lane.b32.xlu0 %v1010, 8
        %v1020 = vpop.permute.xlu0 %1019
        %1021 = vrot.lane.b32.xlu0 %v1011, 8
        %v1022 = vpop.permute.xlu0 %1021
        %1023 = vrot.lane.b32.xlu0 %v1012, 8
        %v1024 = vpop.permute.xlu0 %1023
        %1025 = vrot.lane.b32.xlu0 %v1013, 8
        %v1026 = vpop.permute.xlu0 %1025
        %1027 = vrot.lane.b32.xlu0 %v1014, 8
        %v1028 = vpop.permute.xlu0 %1027
        %1029 = vrot.lane.b32.xlu0 %v1015, 8
        %v1030 = vpop.permute.xlu0 %1029
        %1031 = vrot.lane.b32.xlu0 %v1016, 8
        %v1032 = vpop.permute.xlu0 %1031
        %v1033 = vmul.f32 %v1009, %v1018
        %v1034 = vmul.f32 %v1010, %v1020
        %v1035 = vmul.f32 %v1011, %v1022
        %v1036 = vmul.f32 %v1012, %v1024
        %v1037 = vmul.f32 %v1013, %v1026
        %v1038 = vmul.f32 %v1014, %v1028
        %v1039 = vmul.f32 %v1015, %v1030
        %v1040 = vmul.f32 %v1016, %v1032
        %1041 = vrot.lane.b32.xlu0 %v1033, 16
        %v1042 = vpop.permute.xlu0 %1041
        %1043 = vrot.lane.b32.xlu0 %v1034, 16
        %v1044 = vpop.permute.xlu0 %1043
        %1045 = vrot.lane.b32.xlu0 %v1035, 16
        %v1046 = vpop.permute.xlu0 %1045
        %1047 = vrot.lane.b32.xlu0 %v1036, 16
        %v1048 = vpop.permute.xlu0 %1047
        %1049 = vrot.lane.b32.xlu0 %v1037, 16
        %v1050 = vpop.permute.xlu0 %1049
        %1051 = vrot.lane.b32.xlu0 %v1038, 16
        %v1052 = vpop.permute.xlu0 %1051
        %1053 = vrot.lane.b32.xlu0 %v1039, 16
        %v1054 = vpop.permute.xlu0 %1053
        %1055 = vrot.lane.b32.xlu0 %v1040, 16
        %v1056 = vpop.permute.xlu0 %1055
        %v1057 = vmul.f32 %v1033, %v1042
        %v1058 = vmul.f32 %v1034, %v1044
        %v1059 = vmul.f32 %v1035, %v1046
        %v1060 = vmul.f32 %v1036, %v1048
        %v1061 = vmul.f32 %v1037, %v1050
        %v1062 = vmul.f32 %v1038, %v1052
        %v1063 = vmul.f32 %v1039, %v1054
        %v1064 = vmul.f32 %v1040, %v1056
        %1065 = vrot.lane.b32.xlu0 %v1057, 32
        %v1066 = vpop.permute.xlu0 %1065
        %1067 = vrot.lane.b32.xlu0 %v1058, 32
        %v1068 = vpop.permute.xlu0 %1067
        %1069 = vrot.lane.b32.xlu0 %v1059, 32
        %v1070 = vpop.permute.xlu0 %1069
        %1071 = vrot.lane.b32.xlu0 %v1060, 32
        %v1072 = vpop.permute.xlu0 %1071
        %1073 = vrot.lane.b32.xlu0 %v1061, 32
        %v1074 = vpop.permute.xlu0 %1073
        %1075 = vrot.lane.b32.xlu0 %v1062, 32
        %v1076 = vpop.permute.xlu0 %1075
        %1077 = vrot.lane.b32.xlu0 %v1063, 32
        %v1078 = vpop.permute.xlu0 %1077
        %1079 = vrot.lane.b32.xlu0 %v1064, 32
        %v1080 = vpop.permute.xlu0 %1079
        %v1081 = vmul.f32 %v1057, %v1066
        %v1082 = vmul.f32 %v1058, %v1068
        %v1083 = vmul.f32 %v1059, %v1070
        %v1084 = vmul.f32 %v1060, %v1072
        %v1085 = vmul.f32 %v1061, %v1074
        %v1086 = vmul.f32 %v1062, %v1076
        %v1087 = vmul.f32 %v1063, %v1078
        %v1088 = vmul.f32 %v1064, %v1080
        %1089 = vrot.lane.b32.xlu0 %v1081, 64
        %v1090 = vpop.permute.xlu0 %1089
        %1091 = vrot.lane.b32.xlu0 %v1082, 64
        %v1092 = vpop.permute.xlu0 %1091
        %1093 = vrot.lane.b32.xlu0 %v1083, 64
        %v1094 = vpop.permute.xlu0 %1093
        %1095 = vrot.lane.b32.xlu0 %v1084, 64
        %v1096 = vpop.permute.xlu0 %1095
        %1097 = vrot.lane.b32.xlu0 %v1085, 64
        %v1098 = vpop.permute.xlu0 %1097
        %1099 = vrot.lane.b32.xlu0 %v1086, 64
        %v1100 = vpop.permute.xlu0 %1099
        %1101 = vrot.lane.b32.xlu0 %v1087, 64
        %v1102 = vpop.permute.xlu0 %1101
        %1103 = vrot.lane.b32.xlu0 %v1088, 64
        %v1104 = vpop.permute.xlu0 %1103
        %v1105 = vmul.f32 %v1081, %v1090
        %v1106 = vmul.f32 %v1082, %v1092
        %v1107 = vmul.f32 %v1083, %v1094
        %v1108 = vmul.f32 %v1084, %v1096
        %v1109 = vmul.f32 %v1085, %v1098
        %v1110 = vmul.f32 %v1086, %v1100
        %v1111 = vmul.f32 %v1087, %v1102
        %v1112 = vmul.f32 %v1088, %v1104
        %vm1113 = vcmp.lt.f32.partialorder %v1105, 0.0
        %vm1114 = vcmp.lt.f32.partialorder %v1106, 0.0
        %vm1115 = vcmp.lt.f32.partialorder %v1107, 0.0
        %vm1116 = vcmp.lt.f32.partialorder %v1108, 0.0
        %vm1117 = vcmp.lt.f32.partialorder %v1109, 0.0
        %vm1118 = vcmp.lt.f32.partialorder %v1110, 0.0
        %vm1119 = vcmp.lt.f32.partialorder %v1111, 0.0
        %vm1120 = vcmp.lt.f32.partialorder %v1112, 0.0
        %v1121 = vsel %vm1113, -1.0, 1.0
        %v1122 = vsel %vm1114, -1.0, 1.0
        %v1123 = vsel %vm1115, -1.0, 1.0
        %v1124 = vsel %vm1116, -1.0, 1.0
        %v1125 = vsel %vm1117, -1.0, 1.0
        %v1126 = vsel %vm1118, -1.0, 1.0
        %v1127 = vsel %vm1119, -1.0, 1.0
        %v1128 = vsel %vm1120, -1.0, 1.0
        %v1129 = vand.u32 2147483647, %v1105
        %v1130 = vand.u32 2147483647, %v1106
        %v1131 = vand.u32 2147483647, %v1107
        %v1132 = vand.u32 2147483647, %v1108
        %v1133 = vand.u32 2147483647, %v1109
        %v1134 = vand.u32 2147483647, %v1110
        %v1135 = vand.u32 2147483647, %v1111
        %v1136 = vand.u32 2147483647, %v1112
        %v1137 = vadd.f32 %v929, %v1129
        %v1138 = vadd.f32 %v930, %v1130
        %v1139 = vadd.f32 %v931, %v1131
        %v1140 = vadd.f32 %v932, %v1132
        %v1141 = vadd.f32 %v933, %v1133
        %v1142 = vadd.f32 %v934, %v1134
        %v1143 = vadd.f32 %v935, %v1135
        %v1144 = vadd.f32 %v936, %v1136
        %v1145 = vsub.f32 %v929, %v1129
        %v1146 = vsub.f32 %v930, %v1130
        %v1147 = vsub.f32 %v931, %v1131
        %v1148 = vsub.f32 %v932, %v1132
        %v1149 = vsub.f32 %v933, %v1133
        %v1150 = vsub.f32 %v934, %v1134
        %v1151 = vsub.f32 %v935, %v1135
        %v1152 = vsub.f32 %v936, %v1136
        %v1153 = vmul.f32 %v929, 1e-06
        %v1154 = vmul.f32 %v930, 1e-06
        %v1155 = vmul.f32 %v931, 1e-06
        %v1156 = vmul.f32 %v932, 1e-06
        %v1157 = vmul.f32 %v933, 1e-06
        %v1158 = vmul.f32 %v934, 1e-06
        %v1159 = vmul.f32 %v935, 1e-06
        %v1160 = vmul.f32 %v936, 1e-06
        %v1161 = vmax.f32 %v1145, %v1153
        %v1162 = vmax.f32 %v1146, %v1154
        %v1163 = vmax.f32 %v1147, %v1155
        %v1164 = vmax.f32 %v1148, %v1156
        %v1165 = vmax.f32 %v1149, %v1157
        %v1166 = vmax.f32 %v1150, %v1158
        %v1167 = vmax.f32 %v1151, %v1159
        %v1168 = vmax.f32 %v1152, %v1160
        %v1169 = vrcp.pop %v1161
        %v1170 = vrcp.pop %v1162
        %v1171 = vrcp.pop %v1163
        %v1172 = vrcp.pop %v1164
        %v1173 = vrcp.pop %v1165
        %v1174 = vrcp.pop %v1166
        %v1175 = vrcp.pop %v1167
        %v1176 = vrcp.pop %v1168
        %v1177 = vmul.f32 %v1161, %v1169
        %v1178 = vmul.f32 %v1162, %v1170
        %v1179 = vmul.f32 %v1163, %v1171
        %v1180 = vmul.f32 %v1164, %v1172
        %v1181 = vmul.f32 %v1165, %v1173
        %v1182 = vmul.f32 %v1166, %v1174
        %v1183 = vmul.f32 %v1167, %v1175
        %v1184 = vmul.f32 %v1168, %v1176
        %v1185 = vsub.f32 2.0, %v1177
        %v1186 = vsub.f32 2.0, %v1178
        %v1187 = vsub.f32 2.0, %v1179
        %v1188 = vsub.f32 2.0, %v1180
        %v1189 = vsub.f32 2.0, %v1181
        %v1190 = vsub.f32 2.0, %v1182
        %v1191 = vsub.f32 2.0, %v1183
        %v1192 = vsub.f32 2.0, %v1184
        %v1193 = vmul.f32 %v1169, %v1185
        %v1194 = vmul.f32 %v1170, %v1186
        %v1195 = vmul.f32 %v1171, %v1187
        %v1196 = vmul.f32 %v1172, %v1188
        %v1197 = vmul.f32 %v1173, %v1189
        %v1198 = vmul.f32 %v1174, %v1190
        %v1199 = vmul.f32 %v1175, %v1191
        %v1200 = vmul.f32 %v1176, %v1192
        %v1201 = vmul.f32 %v1121, %v913
        %v1202 = vmul.f32 %v1122, %v914
        %v1203 = vmul.f32 %v1123, %v915
        %v1204 = vmul.f32 %v1124, %v916
        %v1205 = vmul.f32 %v1125, %v917
        %v1206 = vmul.f32 %v1126, %v918
        %v1207 = vmul.f32 %v1127, %v919
        %v1208 = vmul.f32 %v1128, %v920
        %v1209 = vmul.f32 %v1137, %v1193
        %v1210 = vmul.f32 %v1138, %v1194
        %v1211 = vmul.f32 %v1139, %v1195
        %v1212 = vmul.f32 %v1140, %v1196
        %v1213 = vmul.f32 %v1141, %v1197
        %v1214 = vmul.f32 %v1142, %v1198
        %v1215 = vmul.f32 %v1143, %v1199
        %v1216 = vmul.f32 %v1144, %v1200
        %v1217 = vlog2.pop %v1209
        %v1218 = vmul.f32 %v1217, 0.6931472
        %v1219 = vlog2.pop %v1210
        %v1220 = vmul.f32 %v1219, 0.6931472
        %v1221 = vlog2.pop %v1211
        %v1222 = vmul.f32 %v1221, 0.6931472
        %v1223 = vlog2.pop %v1212
        %v1224 = vmul.f32 %v1223, 0.6931472
        %v1225 = vlog2.pop %v1213
        %v1226 = vmul.f32 %v1225, 0.6931472
        %v1227 = vlog2.pop %v1214
        %v1228 = vmul.f32 %v1227, 0.6931472
        %v1229 = vlog2.pop %v1215
        %v1230 = vmul.f32 %v1229, 0.6931472
        %v1231 = vlog2.pop %v1216
        %v1232 = vmul.f32 %v1231, 0.6931472
        %v1233 = vmul.f32 %v1201, %v1218
        %v1234 = vmul.f32 %v1202, %v1220
        %v1235 = vmul.f32 %v1203, %v1222
        %v1236 = vmul.f32 %v1204, %v1224
        %v1237 = vmul.f32 %v1205, %v1226
        %v1238 = vmul.f32 %v1206, %v1228
        %v1239 = vmul.f32 %v1207, %v1230
        %v1240 = vmul.f32 %v1208, %v1232
        %v1241 = vmul.f32 %v1233, %v852
        %v1242 = vmul.f32 %v1234, %v852
        %v1243 = vmul.f32 %v1235, %v852
        %v1244 = vmul.f32 %v1236, %v852
        %v1245 = vmul.f32 %v1237, %v852
        %v1246 = vmul.f32 %v1238, %v852
        %v1247 = vmul.f32 %v1239, %v852
        %v1248 = vmul.f32 %v1240, %v852
        %1249 = vst [vmem:[%s853] sm:$0xff] %v1241
        %1250 = vst [vmem:[%s853 + $0x8] sm:$0xff] %v1242
        %1251 = vst [vmem:[%s853 + $0x10] sm:$0xff] %v1243
        %1252 = vst [vmem:[%s853 + $0x18] sm:$0xff] %v1244
        %1253 = vst [vmem:[%s853 + $0x20] sm:$0xff] %v1245
        %1254 = vst [vmem:[%s853 + $0x28] sm:$0xff] %v1246
        %1255 = vst [vmem:[%s853 + $0x30] sm:$0xff] %v1247
        %1256 = vst [vmem:[%s853 + $0x38] sm:$0xff] %v1248
        %v1257 = vrot.slane %v1241, 4
        %v1258 = vadd.f32 %v1241, %v1257
        %v1259 = vrot.slane %v1258, 2
        %v1260 = vadd.f32 %v1258, %v1259
        %v1261 = vrot.slane %v1260, 1
        %v1262 = vadd.f32 %v1260, %v1261
        %v1263 = vrot.slane %v1242, 4
        %v1264 = vadd.f32 %v1242, %v1263
        %v1265 = vrot.slane %v1264, 2
        %v1266 = vadd.f32 %v1264, %v1265
        %v1267 = vrot.slane %v1266, 1
        %v1268 = vadd.f32 %v1266, %v1267
        %v1269 = vrot.slane %v1243, 4
        %v1270 = vadd.f32 %v1243, %v1269
        %v1271 = vrot.slane %v1270, 2
        %v1272 = vadd.f32 %v1270, %v1271
        %v1273 = vrot.slane %v1272, 1
        %v1274 = vadd.f32 %v1272, %v1273
        %v1275 = vrot.slane %v1244, 4
        %v1276 = vadd.f32 %v1244, %v1275
        %v1277 = vrot.slane %v1276, 2
        %v1278 = vadd.f32 %v1276, %v1277
        %v1279 = vrot.slane %v1278, 1
        %v1280 = vadd.f32 %v1278, %v1279
        %v1281 = vrot.slane %v1245, 4
        %v1282 = vadd.f32 %v1245, %v1281
        %v1283 = vrot.slane %v1282, 2
        %v1284 = vadd.f32 %v1282, %v1283
        %v1285 = vrot.slane %v1284, 1
        %v1286 = vadd.f32 %v1284, %v1285
        %v1287 = vrot.slane %v1246, 4
        %v1288 = vadd.f32 %v1246, %v1287
        %v1289 = vrot.slane %v1288, 2
        %v1290 = vadd.f32 %v1288, %v1289
        %v1291 = vrot.slane %v1290, 1
        %v1292 = vadd.f32 %v1290, %v1291
        %v1293 = vrot.slane %v1247, 4
        %v1294 = vadd.f32 %v1247, %v1293
        %v1295 = vrot.slane %v1294, 2
        %v1296 = vadd.f32 %v1294, %v1295
        %v1297 = vrot.slane %v1296, 1
        %v1298 = vadd.f32 %v1296, %v1297
        %v1299 = vrot.slane %v1248, 4
        %v1300 = vadd.f32 %v1248, %v1299
        %v1301 = vrot.slane %v1300, 2
        %v1302 = vadd.f32 %v1300, %v1301
        %v1303 = vrot.slane %v1302, 1
        %v1304 = vadd.f32 %v1302, %v1303
        %v1305 = vadd.f32 %v843, %v1262
        %v1306 = vadd.f32 %v844, %v1268
        %v1307 = vadd.f32 %v845, %v1274
        %v1308 = vadd.f32 %v846, %v1280
        %v1309 = vadd.f32 %v847, %v1286
        %v1310 = vadd.f32 %v848, %v1292
        %v1311 = vadd.f32 %v849, %v1298
        %v1312 = vadd.f32 %v850, %v1304
        %vm1321 = vcmask 1041409
        %v1322 = vsel %vm1321, %v1306, %v1305
        %vm1323 = vcmask 1042434
        %v1324 = vsel %vm1323, %v1307, %v1322
        %vm1325 = vcmask 1043459
        %v1326 = vsel %vm1325, %v1308, %v1324
        %vm1327 = vcmask 1044484
        %v1328 = vsel %vm1327, %v1309, %v1326
        %vm1329 = vcmask 1045509
        %v1330 = vsel %vm1329, %v1310, %v1328
        %vm1331 = vcmask 1046534
        %v1332 = vsel %vm1331, %v1311, %v1330
        %vm1333 = vcmask 1047559
        %v1334 = vsel %vm1333, %v1312, %v1332
        %1336 = vst [vmem:[#allocation3] sm:$0xff] %v1334
        %v1337 = vrot.slane %v209, 1
        %v1338 = vrot.slane %v209, 2
        %v1339 = vrot.slane %v209, 3
        %v1340 = vrot.slane %v209, 4
        %v1341 = vrot.slane %v209, 5
        %v1342 = vrot.slane %v209, 6
        %v1343 = vrot.slane %v209, 7
        %v1352 = vadd.f32 %v1305, %v209
        %v1353 = vadd.f32 %v1306, %v1337
        %v1354 = vadd.f32 %v1307, %v1338
        %v1355 = vadd.f32 %v1308, %v1339
        %v1356 = vadd.f32 %v1309, %v1340
        %v1357 = vadd.f32 %v1310, %v1341
        %v1358 = vadd.f32 %v1311, %v1342
        %v1359 = vadd.f32 %v1312, %v1343
        %v1368 = vrot.slane %v1353, 7
        %v1369 = vsel %vm1321, %v1368, %v1352
        %v1370 = vrot.slane %v1354, 6
        %v1371 = vsel %vm1323, %v1370, %v1369
        %v1372 = vrot.slane %v1355, 5
        %v1373 = vsel %vm1325, %v1372, %v1371
        %v1374 = vrot.slane %v1356, 4
        %v1375 = vsel %vm1327, %v1374, %v1373
        %v1376 = vrot.slane %v1357, 3
        %v1377 = vsel %vm1329, %v1376, %v1375
        %v1378 = vrot.slane %v1358, 2
        %v1379 = vsel %vm1331, %v1378, %v1377
        %v1380 = vrot.slane %v1359, 1
        %v1381 = vsel %vm1333, %v1380, %v1379
        %1383 = vst [vmem:[%s187] sm:$0xff] %v1381
        %s1384 = sand.u32 %s89, 1
        %s1385 = scalar_lea.sflag [#allocation6], %s1384
        %s1386 = sand.u32 %s89, 1
        %s1387 = smul.addr %s1386, 8
        %s1388 = scalar_lea.vmem [#allocation9], %s1387
        // Predicated region
        $region41: #{tpu_custom_call.1} parent=27 // pred_check
          %p1389 = pneg %p99
        $region42: #{tpu_custom_call.1} parent=27 // pred_check_branch
          %1391 = sbr.rel (%p1389) target = $region44
        $region43: #{tpu_custom_call.1} parent=27 // pred_region
          %s1393 = ssub.s32 128, 128
          %1394 = vsyncadd %s1385, %s1393
          %s1395 = smul.addr %s25, 2
          %s1396 = sadd.s32 %s24, %s1395
          %s1397 = smul.addr %s1396, 128
          %s1398 = scalar_lea.hbm %s2, %s1397
          %s1400 = sshll.u32 %s1388, 4
          %s1401 = int_to_ptr.vmem [resolvable:$true] %s1400
          %1403 = dma.vmem_to_hbm [thread:$0]  %s1401, 128, %s1398, %s1385
        $region44: #{tpu_custom_call.1} parent=27 // pred_fallthru
          _
      $region28: #{tpu_custom_call.1} parent=5 // pred_fallthru
        _
      %p1404 = scmp.le.s32.totalorder 2, %s15
      // Predicated region
      $region45: #{tpu_custom_call.1} parent=5 // pred_check
        %p1405 = pneg %p1404
      $region46: #{tpu_custom_call.1} parent=5 // pred_check_branch
        %1407 = sbr.rel (%p1405) target = $region48
      $region47: #{tpu_custom_call.1} parent=5 // pred_region
        %s1408 = ssub.s32 %s15, 2
        // Predicated region
        $region49: #{tpu_custom_call.1} parent=47 // pred_check
          %p1409 = pneg %p105
        $region50: #{tpu_custom_call.1} parent=47 // pred_check_branch
          %1411 = sbr.rel (%p1409) target = $region52
        $region51: #{tpu_custom_call.1} parent=47 // pred_region
          %s1412 = sand.u32 %s90, 1
          %s1413 = scalar_lea.sflag [#allocation6], %s1412
          %s1414 = sand.u32 %s90, 1
          %s1415 = smul.addr %s1414, 8
          %s1416 = scalar_lea.vmem [#allocation9], %s1415
          %1417 = dma.done %s1413, 128
        $region52: #{tpu_custom_call.1} parent=47 // pred_fallthru
          _
      $region48: #{tpu_custom_call.1} parent=5 // pred_fallthru
        _
    $region6: #{tpu_custom_call.1} parent=1 // loop_footer
      %s19 = sadd.s32 1, %s15
    $region7: #{tpu_custom_call.1} parent=1 // loop_footer_branch
      %14 = sbr.rel target = $region3
    $region8: #{tpu_custom_call.1} parent=1 // loop_exit
      _
    %1418 = vsyncpa [#allocation5], 1
    %s1419 = scalar_lea.sflag [#allocation5], 1
    %1420 = vsyncpa %s1419, 1
    %1421 = vsyncpa [#allocation8], 1
    %1422 = vsyncpa [#allocation6], 1
    %s1423 = scalar_lea.sflag [#allocation6], 1
    %1424 = vsyncpa %s1423, 1

</llo_original>
